<compile_context>
chip_gen: v5e
topology: v5e:2x2
jax: 0.10.0
libtpu: 0.0.40
codegen_flags: <defaults>
</compile_context>

<pallas_src>
import math
from functools import partial

import jax
import jax.numpy as jnp
from jax.experimental import pallas as pl
from jax.experimental.pallas import tpu as pltpu

EPS = 1e-6  # LayerNormalization eps (torch ref: alpha*(x-mean)/(std+eps)+bias)


# --------------------------------------------------------------------------
# Fused EncoderBlock kernel. Grid = (batch,). Everything for one batch element
# (activations, weights, norms) lives in VMEM for the whole block.
# --------------------------------------------------------------------------
def _encoder_block_kernel(
    src_ref, scaf_ref, prop_ref,                 # activations (1, S*, D)
    src_bias_ref, scaf_bias_ref,                 # additive attn masks (1, 1, S*)
    sa_wq_ref, sa_wk_ref, sa_wv_ref, sa_wo_ref,  # self-attn weights (D, D) bf16
    ca_wq_ref, ca_wk_ref, ca_wv_ref, ca_wo_ref,  # cross-attn weights (D, D) bf16
    w1_ref, b1_ref, w2_ref, b2_ref,              # feed-forward weights
    ln_a_ref, ln_b_ref,                          # (6, D) layernorm alpha / bias
    o_ref,
    *, num_heads):

    bf16 = jnp.bfloat16

    x = src_ref[0].astype(jnp.float32)    # (S, D) residual stream, f32
    scaf = scaf_ref[0]                    # (Ssc, D) bf16 (matmul input only)
    prop = prop_ref[0]                    # (Sp,  D) bf16
    src_bias = src_bias_ref[0]            # (1, S)   f32 additive mask
    scaf_bias = scaf_bias_ref[0]          # (1, Ssc) f32 additive mask

    D = x.shape[-1]
    dk = D // num_heads

    def layer_norm(y, idx):
        # matches torch ref: alpha * (x - mean) / (std + eps) + bias,
        # unbiased std (divide by D-1).  Exact divide on the (S,1) stats
        # (approx reciprocal is reserved for the softmax).
        alpha = ln_a_ref[idx:idx + 1, :]      # (1, D)
        beta = ln_b_ref[idx:idx + 1, :]       # (1, D)
        mean = jnp.mean(y, axis=-1, keepdims=True)
        var = jnp.sum((y - mean) ** 2, axis=-1, keepdims=True) / (D - 1)
        inv = 1.0 / (jnp.sqrt(var) + EPS)
        return (y - mean) * inv * alpha + beta

    def mha(xq, xkv, bias, wq_ref, wk_ref, wv_ref, wo_ref):
        # xq: (Sq, D) bf16, xkv: (Skv, D) bf16.
        # Lane-dense projections against the UNSPLIT (D, D) weights — full MXU.
        # 1/sqrt(dk) is folded into wq in the wrapper.
        q = jnp.dot(xq, wq_ref[...], preferred_element_type=jnp.float32)
        k = jnp.dot(xkv, wk_ref[...], preferred_element_type=jnp.float32)
        v = jnp.dot(xkv, wv_ref[...], preferred_element_type=jnp.float32)
        q = q.astype(bf16)
        k = k.astype(bf16)
        v = v.astype(bf16)

        # Per-head scores / softmax / PV.  num_heads is a small compile-time
        # constant; each head is a plain 2-D NT matmul (native MXU), no 3-D
        # broadcast or (H, Sq, D) intermediates are materialized.
        ctx_heads = []
        for h in range(num_heads):
            sl = slice(h * dk, (h + 1) * dk)
            qh = q[:, sl]                                     # (Sq, dk)
            kh = k[:, sl]                                     # (Skv, dk)
            vh = v[:, sl]                                     # (Skv, dk)
            s = jnp.einsum('qe,ke->qk', qh, kh,
                           preferred_element_type=jnp.float32)  # (Sq, Skv) f32
            if bias is not None:
                s = s + bias                                  # (1, Skv) bcast
            s = s - jnp.max(s, axis=-1, keepdims=True)
            e = jnp.exp(s)
            p = e * pl.reciprocal(jnp.sum(e, axis=-1, keepdims=True),
                                  approx=True)
            ctx_heads.append(
                jnp.dot(p.astype(bf16), vh,
                        preferred_element_type=jnp.float32))  # (Sq, dk) f32

        # Merge heads and apply the UNSPLIT output projection in one matmul
        # with full contraction depth K = D.
        ctx = jnp.concatenate(ctx_heads, axis=-1).astype(bf16)   # (Sq, D)
        return jnp.dot(ctx, wo_ref[...],
                       preferred_element_type=jnp.float32)       # (Sq, D) f32

    def ffn(y):
        h = jnp.dot(y.astype(bf16), w1_ref[...],
                    preferred_element_type=jnp.float32) + b1_ref[...]
        h = jnp.maximum(h, 0.0)
        return jnp.dot(h.astype(bf16), w2_ref[...],
                       preferred_element_type=jnp.float32) + b2_ref[...]

    # Dropout inside each residual connection is a no-op in eval mode.
    # 0: self attention
    xn = layer_norm(x, 0).astype(bf16)
    x = x + mha(xn, xn, src_bias, sa_wq_ref, sa_wk_ref, sa_wv_ref, sa_wo_ref)
    # 1: feed forward
    x = x + ffn(layer_norm(x, 1))
    # 2: cross attention with scaffold
    x = x + mha(layer_norm(x, 2).astype(bf16), scaf, scaf_bias,
                ca_wq_ref, ca_wk_ref, ca_wv_ref, ca_wo_ref)
    # 3: feed forward
    x = x + ffn(layer_norm(x, 3))
    # 4: cross attention with properties (mask = None)
    x = x + mha(layer_norm(x, 4).astype(bf16), prop, None,
                ca_wq_ref, ca_wk_ref, ca_wv_ref, ca_wo_ref)
    # 5: feed forward
    x = x + ffn(layer_norm(x, 5))

    o_ref[0] = x.astype(o_ref.dtype)


# --------------------------------------------------------------------------
# Wrapper: weight prep (scale folding, bf16 cast) + single pallas_call
# --------------------------------------------------------------------------
def encoder_block_forward(params, src_seq, scaffold, properties,
                          src_mask, scaffold_mask, *, num_heads):
    B, S, D = src_seq.shape
    Ssc = scaffold.shape[1]
    Sp = properties.shape[1]
    dk = D // num_heads
    bf16 = jnp.bfloat16

    sa_wq, sa_wk, sa_wv, sa_wo = params["self_attn"]
    ca_wq, ca_wk, ca_wv, ca_wo = params["cross_attn"]
    w1, b1, w2, b2 = params["ffn"]
    Dff = w1.shape[1]

    # Fold 1/sqrt(dk) into Wq; keep weights unsplit; feed the MXU bf16.
    scale = 1.0 / math.sqrt(dk)
    sa_w = ((sa_wq * scale).astype(bf16), sa_wk.astype(bf16),
            sa_wv.astype(bf16), sa_wo.astype(bf16))
    ca_w = ((ca_wq * scale).astype(bf16), ca_wk.astype(bf16),
            ca_wv.astype(bf16), ca_wo.astype(bf16))
    w1b, w2b = w1.astype(bf16), w2.astype(bf16)

    ln_a = jnp.stack([a for (a, _) in params["layernorms"]], axis=0)  # (6, D)
    ln_b = jnp.stack([b for (_, b) in params["layernorms"]], axis=0)  # (6, D)

    # Additive mask bias: 0 where keep, -1e9 where masked (torch masked_fill).
    def to_bias(mask, Skv):
        if mask is None:
            mask = jnp.ones((B, Skv), jnp.float32)
        return ((mask.astype(jnp.float32) - 1.0) * 1e9).reshape(B, 1, Skv)

    src_bias = to_bias(src_mask, S)
    scaf_bias = to_bias(scaffold_mask, Ssc)

    # K/V-only activations go in bf16 (halves DMA + VMEM); the residual-stream
    # input stays in its original dtype (f32 math in-kernel).
    scaffold_b = scaffold.astype(bf16)
    properties_b = properties.astype(bf16)

    kern = partial(_encoder_block_kernel, num_heads=num_heads)

    def full(shape):       # weight-like operand: whole array, constant block
        return pl.BlockSpec(shape, lambda b, _n=len(shape): (0,) * _n)

    def batched(shape):    # per-batch operand
        return pl.BlockSpec((1,) + shape,
                            lambda b, _n=len(shape): (b,) + (0,) * _n)

    in_specs = [
        batched((S, D)), batched((Ssc, D)), batched((Sp, D)),
        batched((1, S)), batched((1, Ssc)),
        full((D, D)), full((D, D)), full((D, D)), full((D, D)),   # self-attn
        full((D, D)), full((D, D)), full((D, D)), full((D, D)),   # cross-attn
        full((D, Dff)), full((1, Dff)), full((Dff, D)), full((1, D)),
        full((6, D)), full((6, D)),
    ]

    # NOTE: demo shapes (D=32) under-fill lanes; at real deployment shapes keep
    # D and Dff multiples of 128 and the last (lane) dim of every block.
    return pl.pallas_call(
        kern,
        out_shape=jax.ShapeDtypeStruct((B, S, D), src_seq.dtype),
        grid=(B,),
        in_specs=in_specs,
        out_specs=pl.BlockSpec((1, S, D), lambda b: (b, 0, 0)),
        compiler_params=pltpu.CompilerParams(
            dimension_semantics=("parallel",),
            vmem_limit_bytes=48 * 1024 * 1024),  # > v5e/v6e scoped default, < v7x 64 MiB
    )(src_seq, scaffold_b, properties_b, src_bias, scaf_bias,
      *sa_w, *ca_w,
      w1b, b1.reshape(1, Dff), w2b, b2.reshape(1, D),
      ln_a, ln_b)


# --------------------------------------------------------------------------
# Deterministic parameter init + demo
# --------------------------------------------------------------------------
def init_params(key, d_model, d_ff):
    ks = jax.random.split(key, 12)
    w = lambda k, shp: (jax.random.normal(k, shp, jnp.float32) * 0.05)
    self_attn = tuple(w(ks[i], (d_model, d_model)) for i in range(4))
    cross_attn = tuple(w(ks[4 + i], (d_model, d_model)) for i in range(4))
    ffn = (w(ks[8], (d_model, d_ff)), jnp.zeros((d_ff,), jnp.float32),
           w(ks[9], (d_ff, d_model)), jnp.zeros((d_model,), jnp.float32))
    layernorms = [(jnp.ones((d_model,), jnp.float32),
                   jnp.zeros((d_model,), jnp.float32)) for _ in range(6)]
    return {"self_attn": self_attn, "cross_attn": cross_attn,
            "ffn": ffn, "layernorms": layernorms}


if __name__ == "__main__":
    B, S, S_SC, S_P = 2, 8, 8, 4
    D_MODEL, N_HEADS, D_FF = 32, 4, 64

    key = jax.random.PRNGKey(0)
    kp, k1, k2, k3 = jax.random.split(key, 4)
    params = init_params(kp, D_MODEL, D_FF)

    src_seq = jax.random.normal(k1, (B, S, D_MODEL), jnp.float32)
    scaffold = jax.random.normal(k2, (B, S_SC, D_MODEL), jnp.float32)
    properties = jax.random.normal(k3, (B, S_P, D_MODEL), jnp.float32)

    # torch convention: masks are (B, 1, 1, Skv) with 1=keep, 0=mask
    src_mask4 = jnp.ones((B, 1, 1, S), jnp.float32).at[1, 0, 0, -2:].set(0.0)
    scaffold_mask4 = jnp.ones((B, 1, 1, S_SC), jnp.float32).at[0, 0, 0, -1:].set(0.0)
    src_mask = src_mask4.reshape(B, S)
    scaffold_mask = scaffold_mask4.reshape(B, S_SC)

    fwd = jax.jit(partial(encoder_block_forward, num_heads=N_HEADS))
    out = fwd(params, src_seq, scaffold, properties, src_mask, scaffold_mask)
    out = jax.block_until_ready(out)

    assert out.shape == (B, S, D_MODEL)
    assert bool(jnp.all(jnp.isfinite(out)))
    print("KERNEL_OK")
</pallas_src>

<mosaic_0001>
module attributes {stable_mosaic.version = 11 : i64} {
  func.func @_encoder_block_kernel(%arg0: i32, %arg1: memref<1x8x32xf32, #tpu.memory_space<vmem>>, %arg2: memref<1x8x32xbf16, #tpu.memory_space<vmem>>, %arg3: memref<1x4x32xbf16, #tpu.memory_space<vmem>>, %arg4: memref<1x1x8xf32, #tpu.memory_space<vmem>>, %arg5: memref<1x1x8xf32, #tpu.memory_space<vmem>>, %arg6: memref<32x32xbf16, #tpu.memory_space<vmem>>, %arg7: memref<32x32xbf16, #tpu.memory_space<vmem>>, %arg8: memref<32x32xbf16, #tpu.memory_space<vmem>>, %arg9: memref<32x32xbf16, #tpu.memory_space<vmem>>, %arg10: memref<32x32xbf16, #tpu.memory_space<vmem>>, %arg11: memref<32x32xbf16, #tpu.memory_space<vmem>>, %arg12: memref<32x32xbf16, #tpu.memory_space<vmem>>, %arg13: memref<32x32xbf16, #tpu.memory_space<vmem>>, %arg14: memref<32x64xbf16, #tpu.memory_space<vmem>>, %arg15: memref<1x64xf32, #tpu.memory_space<vmem>>, %arg16: memref<64x32xbf16, #tpu.memory_space<vmem>>, %arg17: memref<1x32xf32, #tpu.memory_space<vmem>>, %arg18: memref<6x32xf32, #tpu.memory_space<vmem>>, %arg19: memref<6x32xf32, #tpu.memory_space<vmem>>, %arg20: memref<1x8x32xf32, #tpu.memory_space<vmem>>) attributes {dimension_semantics = [#tpu.dimension_semantics<parallel>], iteration_bounds = array<i64: 2>, scalar_prefetch = 0 : i64, scratch_operands = 0 : i64, tpu.core_type = #tpu.core_type<tc>, window_params = [{transform_indices = @transform_0, window_bounds = array<i64: 1, 8, 32>}, {transform_indices = @transform_1, window_bounds = array<i64: 1, 8, 32>}, {transform_indices = @transform_2, window_bounds = array<i64: 1, 4, 32>}, {transform_indices = @transform_3, window_bounds = array<i64: 1, 1, 8>}, {transform_indices = @transform_4, window_bounds = array<i64: 1, 1, 8>}, {pipeline_mode = #tpu.pipeline_mode<synchronous>, transform_indices = @transform_5, window_bounds = array<i64: 32, 32>}, {pipeline_mode = #tpu.pipeline_mode<synchronous>, transform_indices = @transform_6, window_bounds = array<i64: 32, 32>}, {pipeline_mode = #tpu.pipeline_mode<synchronous>, transform_indices = @transform_7, window_bounds = array<i64: 32, 32>}, {pipeline_mode = #tpu.pipeline_mode<synchronous>, transform_indices = @transform_8, window_bounds = array<i64: 32, 32>}, {pipeline_mode = #tpu.pipeline_mode<synchronous>, transform_indices = @transform_9, window_bounds = array<i64: 32, 32>}, {pipeline_mode = #tpu.pipeline_mode<synchronous>, transform_indices = @transform_10, window_bounds = array<i64: 32, 32>}, {pipeline_mode = #tpu.pipeline_mode<synchronous>, transform_indices = @transform_11, window_bounds = array<i64: 32, 32>}, {pipeline_mode = #tpu.pipeline_mode<synchronous>, transform_indices = @transform_12, window_bounds = array<i64: 32, 32>}, {pipeline_mode = #tpu.pipeline_mode<synchronous>, transform_indices = @transform_13, window_bounds = array<i64: 32, 64>}, {pipeline_mode = #tpu.pipeline_mode<synchronous>, transform_indices = @transform_14, window_bounds = array<i64: 1, 64>}, {pipeline_mode = #tpu.pipeline_mode<synchronous>, transform_indices = @transform_15, window_bounds = array<i64: 64, 32>}, {pipeline_mode = #tpu.pipeline_mode<synchronous>, transform_indices = @transform_16, window_bounds = array<i64: 1, 32>}, {pipeline_mode = #tpu.pipeline_mode<synchronous>, transform_indices = @transform_17, window_bounds = array<i64: 6, 32>}, {pipeline_mode = #tpu.pipeline_mode<synchronous>, transform_indices = @transform_18, window_bounds = array<i64: 6, 32>}, {transform_indices = @transform_19, window_bounds = array<i64: 1, 8, 32>}]} {
    %c0 = arith.constant 0 : index
    %c0_0 = arith.constant 0 : index
    %c0_1 = arith.constant 0 : index
    %0 = vector.load %arg1[%c0, %c0_0, %c0_1] : memref<1x8x32xf32, #tpu.memory_space<vmem>>, vector<1x8x32xf32>
    %1 = vector.shape_cast %0 : vector<1x8x32xf32> to vector<8x32xf32>
    %c0_2 = arith.constant 0 : index
    %c0_3 = arith.constant 0 : index
    %c0_4 = arith.constant 0 : index
    %2 = vector.load %arg2[%c0_2, %c0_3, %c0_4] : memref<1x8x32xbf16, #tpu.memory_space<vmem>>, vector<1x8x32xbf16>
    %3 = vector.shape_cast %2 : vector<1x8x32xbf16> to vector<8x32xbf16>
    %c0_5 = arith.constant 0 : index
    %c0_6 = arith.constant 0 : index
    %c0_7 = arith.constant 0 : index
    %4 = vector.load %arg3[%c0_5, %c0_6, %c0_7] : memref<1x4x32xbf16, #tpu.memory_space<vmem>>, vector<1x4x32xbf16>
    %5 = vector.shape_cast %4 : vector<1x4x32xbf16> to vector<4x32xbf16>
    %c0_8 = arith.constant 0 : index
    %c0_9 = arith.constant 0 : index
    %c0_10 = arith.constant 0 : index
    %6 = vector.load %arg4[%c0_8, %c0_9, %c0_10] : memref<1x1x8xf32, #tpu.memory_space<vmem>>, vector<1x1x8xf32>
    %7 = vector.shape_cast %6 : vector<1x1x8xf32> to vector<1x8xf32>
    %c0_11 = arith.constant 0 : index
    %c0_12 = arith.constant 0 : index
    %c0_13 = arith.constant 0 : index
    %8 = vector.load %arg5[%c0_11, %c0_12, %c0_13] : memref<1x1x8xf32, #tpu.memory_space<vmem>>, vector<1x1x8xf32>
    %9 = vector.shape_cast %8 : vector<1x1x8xf32> to vector<1x8xf32>
    %c0_14 = arith.constant 0 : index
    %c0_15 = arith.constant 0 : index
    %10 = vector.load %arg18[%c0_14, %c0_15] : memref<6x32xf32, #tpu.memory_space<vmem>>, vector<1x32xf32>
    %c0_16 = arith.constant 0 : index
    %c0_17 = arith.constant 0 : index
    %11 = vector.load %arg19[%c0_16, %c0_17] : memref<6x32xf32, #tpu.memory_space<vmem>>, vector<1x32xf32>
    %cst = arith.constant dense<0.000000e+00> : vector<8xf32>
    %12 = vector.multi_reduction <add>, %1, %cst [1] : vector<8x32xf32> to vector<8xf32>
    %13 = vector.shape_cast %12 : vector<8xf32> to vector<8x1xf32>
    %cst_18 = arith.constant 3.200000e+01 : f32
    %14 = vector.broadcast %cst_18 : f32 to vector<8x1xf32>
    %15 = arith.divf %13, %14 : vector<8x1xf32>
    %16 = vector.broadcast %15 : vector<8x1xf32> to vector<8x32xf32>
    %17 = arith.subf %1, %16 : vector<8x32xf32>
    %18 = arith.mulf %17, %17 : vector<8x32xf32>
    %cst_19 = arith.constant dense<0.000000e+00> : vector<8xf32>
    %19 = vector.multi_reduction <add>, %18, %cst_19 [1] : vector<8x32xf32> to vector<8xf32>
    %20 = vector.shape_cast %19 : vector<8xf32> to vector<8x1xf32>
    %cst_20 = arith.constant 3.100000e+01 : f32
    %21 = vector.broadcast %cst_20 : f32 to vector<8x1xf32>
    %22 = arith.divf %20, %21 : vector<8x1xf32>
    %23 = math.sqrt %22 : vector<8x1xf32>
    %cst_21 = arith.constant 9.99999997E-7 : f32
    %24 = vector.broadcast %cst_21 : f32 to vector<8x1xf32>
    %25 = arith.addf %23, %24 : vector<8x1xf32>
    %cst_22 = arith.constant 1.000000e+00 : f32
    %26 = vector.broadcast %cst_22 : f32 to vector<8x1xf32>
    %27 = arith.divf %26, %25 : vector<8x1xf32>
    %28 = vector.broadcast %15 : vector<8x1xf32> to vector<8x32xf32>
    %29 = arith.subf %1, %28 : vector<8x32xf32>
    %30 = vector.broadcast %27 : vector<8x1xf32> to vector<8x32xf32>
    %31 = arith.mulf %29, %30 : vector<8x32xf32>
    %32 = vector.broadcast %10 : vector<1x32xf32> to vector<8x32xf32>
    %33 = arith.mulf %31, %32 : vector<8x32xf32>
    %34 = vector.broadcast %11 : vector<1x32xf32> to vector<8x32xf32>
    %35 = arith.addf %33, %34 : vector<8x32xf32>
    %36 = arith.truncf %35 : vector<8x32xf32> to vector<8x32xbf16>
    %c0_23 = arith.constant 0 : index
    %c0_24 = arith.constant 0 : index
    %37 = vector.load %arg6[%c0_23, %c0_24] : memref<32x32xbf16, #tpu.memory_space<vmem>>, vector<32x32xbf16>
    %cst_25 = arith.constant dense<0.000000e+00> : vector<8x32xf32>
    %38 = tpu.matmul %36, %37, %cst_25 {dimension_numbers = #tpu.dot_dimension_numbers<[1], [0], [0], [1], [0, 0, 1, 1], [], []>} : vector<8x32xbf16>, vector<32x32xbf16>, vector<8x32xf32> -> vector<8x32xf32>
    %c0_26 = arith.constant 0 : index
    %c0_27 = arith.constant 0 : index
    %39 = vector.load %arg7[%c0_26, %c0_27] : memref<32x32xbf16, #tpu.memory_space<vmem>>, vector<32x32xbf16>
    %cst_28 = arith.constant dense<0.000000e+00> : vector<8x32xf32>
    %40 = tpu.matmul %36, %39, %cst_28 {dimension_numbers = #tpu.dot_dimension_numbers<[1], [0], [0], [1], [0, 0, 1, 1], [], []>} : vector<8x32xbf16>, vector<32x32xbf16>, vector<8x32xf32> -> vector<8x32xf32>
    %c0_29 = arith.constant 0 : index
    %c0_30 = arith.constant 0 : index
    %41 = vector.load %arg8[%c0_29, %c0_30] : memref<32x32xbf16, #tpu.memory_space<vmem>>, vector<32x32xbf16>
    %cst_31 = arith.constant dense<0.000000e+00> : vector<8x32xf32>
    %42 = tpu.matmul %36, %41, %cst_31 {dimension_numbers = #tpu.dot_dimension_numbers<[1], [0], [0], [1], [0, 0, 1, 1], [], []>} : vector<8x32xbf16>, vector<32x32xbf16>, vector<8x32xf32> -> vector<8x32xf32>
    %43 = arith.truncf %38 : vector<8x32xf32> to vector<8x32xbf16>
    %44 = arith.truncf %40 : vector<8x32xf32> to vector<8x32xbf16>
    %45 = arith.truncf %42 : vector<8x32xf32> to vector<8x32xbf16>
    %46 = vector.extract_strided_slice %43 {offsets = [0, 0], sizes = [8, 8], strides = [1, 1]} : vector<8x32xbf16> to vector<8x8xbf16>
    %47 = vector.extract_strided_slice %44 {offsets = [0, 0], sizes = [8, 8], strides = [1, 1]} : vector<8x32xbf16> to vector<8x8xbf16>
    %48 = vector.extract_strided_slice %45 {offsets = [0, 0], sizes = [8, 8], strides = [1, 1]} : vector<8x32xbf16> to vector<8x8xbf16>
    "tpu.trace_start"() <{level = 10 : i32, message = "qe,ke->qk"}> : () -> ()
    %cst_32 = arith.constant dense<0.000000e+00> : vector<8x8xf32>
    %49 = tpu.matmul %46, %47, %cst_32 {dimension_numbers = #tpu.dot_dimension_numbers<[1], [1], [0], [0], [0, 0, 1, 0], [], []>} : vector<8x8xbf16>, vector<8x8xbf16>, vector<8x8xf32> -> vector<8x8xf32>
    "tpu.trace_stop"() : () -> ()
    %50 = vector.broadcast %7 : vector<1x8xf32> to vector<8x8xf32>
    %51 = arith.addf %49, %50 : vector<8x8xf32>
    %cst_33 = arith.constant dense<0xFF800000> : vector<8xf32>
    %52 = vector.multi_reduction <maximumf>, %51, %cst_33 [1] : vector<8x8xf32> to vector<8xf32>
    %53 = vector.shape_cast %52 : vector<8xf32> to vector<8x1xf32>
    %54 = vector.broadcast %53 : vector<8x1xf32> to vector<8x8xf32>
    %55 = arith.subf %51, %54 : vector<8x8xf32>
    %56 = math.exp %55 : vector<8x8xf32>
    %cst_34 = arith.constant dense<0.000000e+00> : vector<8xf32>
    %57 = vector.multi_reduction <add>, %56, %cst_34 [1] : vector<8x8xf32> to vector<8xf32>
    %58 = vector.shape_cast %57 : vector<8xf32> to vector<8x1xf32>
    %59 = tpu.reciprocal %58 {approx = true} : vector<8x1xf32> -> vector<8x1xf32>
    %60 = vector.broadcast %59 : vector<8x1xf32> to vector<8x8xf32>
    %61 = arith.mulf %56, %60 : vector<8x8xf32>
    %62 = arith.truncf %61 : vector<8x8xf32> to vector<8x8xbf16>
    %cst_35 = arith.constant dense<0.000000e+00> : vector<8x8xf32>
    %63 = tpu.matmul %62, %48, %cst_35 {dimension_numbers = #tpu.dot_dimension_numbers<[1], [0], [0], [1], [0, 0, 1, 1], [], []>} : vector<8x8xbf16>, vector<8x8xbf16>, vector<8x8xf32> -> vector<8x8xf32>
    %64 = vector.extract_strided_slice %43 {offsets = [0, 8], sizes = [8, 8], strides = [1, 1]} : vector<8x32xbf16> to vector<8x8xbf16>
    %65 = vector.extract_strided_slice %44 {offsets = [0, 8], sizes = [8, 8], strides = [1, 1]} : vector<8x32xbf16> to vector<8x8xbf16>
    %66 = vector.extract_strided_slice %45 {offsets = [0, 8], sizes = [8, 8], strides = [1, 1]} : vector<8x32xbf16> to vector<8x8xbf16>
    "tpu.trace_start"() <{level = 10 : i32, message = "qe,ke->qk"}> : () -> ()
    %cst_36 = arith.constant dense<0.000000e+00> : vector<8x8xf32>
    %67 = tpu.matmul %64, %65, %cst_36 {dimension_numbers = #tpu.dot_dimension_numbers<[1], [1], [0], [0], [0, 0, 1, 0], [], []>} : vector<8x8xbf16>, vector<8x8xbf16>, vector<8x8xf32> -> vector<8x8xf32>
    "tpu.trace_stop"() : () -> ()
    %68 = vector.broadcast %7 : vector<1x8xf32> to vector<8x8xf32>
    %69 = arith.addf %67, %68 : vector<8x8xf32>
    %cst_37 = arith.constant dense<0xFF800000> : vector<8xf32>
    %70 = vector.multi_reduction <maximumf>, %69, %cst_37 [1] : vector<8x8xf32> to vector<8xf32>
    %71 = vector.shape_cast %70 : vector<8xf32> to vector<8x1xf32>
    %72 = vector.broadcast %71 : vector<8x1xf32> to vector<8x8xf32>
    %73 = arith.subf %69, %72 : vector<8x8xf32>
    %74 = math.exp %73 : vector<8x8xf32>
    %cst_38 = arith.constant dense<0.000000e+00> : vector<8xf32>
    %75 = vector.multi_reduction <add>, %74, %cst_38 [1] : vector<8x8xf32> to vector<8xf32>
    %76 = vector.shape_cast %75 : vector<8xf32> to vector<8x1xf32>
    %77 = tpu.reciprocal %76 {approx = true} : vector<8x1xf32> -> vector<8x1xf32>
    %78 = vector.broadcast %77 : vector<8x1xf32> to vector<8x8xf32>
    %79 = arith.mulf %74, %78 : vector<8x8xf32>
    %80 = arith.truncf %79 : vector<8x8xf32> to vector<8x8xbf16>
    %cst_39 = arith.constant dense<0.000000e+00> : vector<8x8xf32>
    %81 = tpu.matmul %80, %66, %cst_39 {dimension_numbers = #tpu.dot_dimension_numbers<[1], [0], [0], [1], [0, 0, 1, 1], [], []>} : vector<8x8xbf16>, vector<8x8xbf16>, vector<8x8xf32> -> vector<8x8xf32>
    %82 = vector.extract_strided_slice %43 {offsets = [0, 16], sizes = [8, 8], strides = [1, 1]} : vector<8x32xbf16> to vector<8x8xbf16>
    %83 = vector.extract_strided_slice %44 {offsets = [0, 16], sizes = [8, 8], strides = [1, 1]} : vector<8x32xbf16> to vector<8x8xbf16>
    %84 = vector.extract_strided_slice %45 {offsets = [0, 16], sizes = [8, 8], strides = [1, 1]} : vector<8x32xbf16> to vector<8x8xbf16>
    "tpu.trace_start"() <{level = 10 : i32, message = "qe,ke->qk"}> : () -> ()
    %cst_40 = arith.constant dense<0.000000e+00> : vector<8x8xf32>
    %85 = tpu.matmul %82, %83, %cst_40 {dimension_numbers = #tpu.dot_dimension_numbers<[1], [1], [0], [0], [0, 0, 1, 0], [], []>} : vector<8x8xbf16>, vector<8x8xbf16>, vector<8x8xf32> -> vector<8x8xf32>
    "tpu.trace_stop"() : () -> ()
    %86 = vector.broadcast %7 : vector<1x8xf32> to vector<8x8xf32>
    %87 = arith.addf %85, %86 : vector<8x8xf32>
    %cst_41 = arith.constant dense<0xFF800000> : vector<8xf32>
    %88 = vector.multi_reduction <maximumf>, %87, %cst_41 [1] : vector<8x8xf32> to vector<8xf32>
    %89 = vector.shape_cast %88 : vector<8xf32> to vector<8x1xf32>
    %90 = vector.broadcast %89 : vector<8x1xf32> to vector<8x8xf32>
    %91 = arith.subf %87, %90 : vector<8x8xf32>
    %92 = math.exp %91 : vector<8x8xf32>
    %cst_42 = arith.constant dense<0.000000e+00> : vector<8xf32>
    %93 = vector.multi_reduction <add>, %92, %cst_42 [1] : vector<8x8xf32> to vector<8xf32>
    %94 = vector.shape_cast %93 : vector<8xf32> to vector<8x1xf32>
    %95 = tpu.reciprocal %94 {approx = true} : vector<8x1xf32> -> vector<8x1xf32>
    %96 = vector.broadcast %95 : vector<8x1xf32> to vector<8x8xf32>
    %97 = arith.mulf %92, %96 : vector<8x8xf32>
    %98 = arith.truncf %97 : vector<8x8xf32> to vector<8x8xbf16>
    %cst_43 = arith.constant dense<0.000000e+00> : vector<8x8xf32>
    %99 = tpu.matmul %98, %84, %cst_43 {dimension_numbers = #tpu.dot_dimension_numbers<[1], [0], [0], [1], [0, 0, 1, 1], [], []>} : vector<8x8xbf16>, vector<8x8xbf16>, vector<8x8xf32> -> vector<8x8xf32>
    %100 = vector.extract_strided_slice %43 {offsets = [0, 24], sizes = [8, 8], strides = [1, 1]} : vector<8x32xbf16> to vector<8x8xbf16>
    %101 = vector.extract_strided_slice %44 {offsets = [0, 24], sizes = [8, 8], strides = [1, 1]} : vector<8x32xbf16> to vector<8x8xbf16>
    %102 = vector.extract_strided_slice %45 {offsets = [0, 24], sizes = [8, 8], strides = [1, 1]} : vector<8x32xbf16> to vector<8x8xbf16>
    "tpu.trace_start"() <{level = 10 : i32, message = "qe,ke->qk"}> : () -> ()
    %cst_44 = arith.constant dense<0.000000e+00> : vector<8x8xf32>
    %103 = tpu.matmul %100, %101, %cst_44 {dimension_numbers = #tpu.dot_dimension_numbers<[1], [1], [0], [0], [0, 0, 1, 0], [], []>} : vector<8x8xbf16>, vector<8x8xbf16>, vector<8x8xf32> -> vector<8x8xf32>
    "tpu.trace_stop"() : () -> ()
    %104 = vector.broadcast %7 : vector<1x8xf32> to vector<8x8xf32>
    %105 = arith.addf %103, %104 : vector<8x8xf32>
    %cst_45 = arith.constant dense<0xFF800000> : vector<8xf32>
    %106 = vector.multi_reduction <maximumf>, %105, %cst_45 [1] : vector<8x8xf32> to vector<8xf32>
    %107 = vector.shape_cast %106 : vector<8xf32> to vector<8x1xf32>
    %108 = vector.broadcast %107 : vector<8x1xf32> to vector<8x8xf32>
    %109 = arith.subf %105, %108 : vector<8x8xf32>
    %110 = math.exp %109 : vector<8x8xf32>
    %cst_46 = arith.constant dense<0.000000e+00> : vector<8xf32>
    %111 = vector.multi_reduction <add>, %110, %cst_46 [1] : vector<8x8xf32> to vector<8xf32>
    %112 = vector.shape_cast %111 : vector<8xf32> to vector<8x1xf32>
    %113 = tpu.reciprocal %112 {approx = true} : vector<8x1xf32> -> vector<8x1xf32>
    %114 = vector.broadcast %113 : vector<8x1xf32> to vector<8x8xf32>
    %115 = arith.mulf %110, %114 : vector<8x8xf32>
    %116 = arith.truncf %115 : vector<8x8xf32> to vector<8x8xbf16>
    %cst_47 = arith.constant dense<0.000000e+00> : vector<8x8xf32>
    %117 = tpu.matmul %116, %102, %cst_47 {dimension_numbers = #tpu.dot_dimension_numbers<[1], [0], [0], [1], [0, 0, 1, 1], [], []>} : vector<8x8xbf16>, vector<8x8xbf16>, vector<8x8xf32> -> vector<8x8xf32>
    %118 = tpu.concatenate %63, %81, %99, %117 in 1 : vector<8x8xf32>, vector<8x8xf32>, vector<8x8xf32>, vector<8x8xf32> -> vector<8x32xf32>
    %119 = arith.truncf %118 : vector<8x32xf32> to vector<8x32xbf16>
    %c0_48 = arith.constant 0 : index
    %c0_49 = arith.constant 0 : index
    %120 = vector.load %arg9[%c0_48, %c0_49] : memref<32x32xbf16, #tpu.memory_space<vmem>>, vector<32x32xbf16>
    %cst_50 = arith.constant dense<0.000000e+00> : vector<8x32xf32>
    %121 = tpu.matmul %119, %120, %cst_50 {dimension_numbers = #tpu.dot_dimension_numbers<[1], [0], [0], [1], [0, 0, 1, 1], [], []>} : vector<8x32xbf16>, vector<32x32xbf16>, vector<8x32xf32> -> vector<8x32xf32>
    %122 = arith.addf %1, %121 : vector<8x32xf32>
    %c1 = arith.constant 1 : index
    %c0_51 = arith.constant 0 : index
    %123 = vector.load %arg18[%c1, %c0_51] : memref<6x32xf32, #tpu.memory_space<vmem>>, vector<1x32xf32>
    %c1_52 = arith.constant 1 : index
    %c0_53 = arith.constant 0 : index
    %124 = vector.load %arg19[%c1_52, %c0_53] : memref<6x32xf32, #tpu.memory_space<vmem>>, vector<1x32xf32>
    %cst_54 = arith.constant dense<0.000000e+00> : vector<8xf32>
    %125 = vector.multi_reduction <add>, %122, %cst_54 [1] : vector<8x32xf32> to vector<8xf32>
    %126 = vector.shape_cast %125 : vector<8xf32> to vector<8x1xf32>
    %cst_55 = arith.constant 3.200000e+01 : f32
    %127 = vector.broadcast %cst_55 : f32 to vector<8x1xf32>
    %128 = arith.divf %126, %127 : vector<8x1xf32>
    %129 = vector.broadcast %128 : vector<8x1xf32> to vector<8x32xf32>
    %130 = arith.subf %122, %129 : vector<8x32xf32>
    %131 = arith.mulf %130, %130 : vector<8x32xf32>
    %cst_56 = arith.constant dense<0.000000e+00> : vector<8xf32>
    %132 = vector.multi_reduction <add>, %131, %cst_56 [1] : vector<8x32xf32> to vector<8xf32>
    %133 = vector.shape_cast %132 : vector<8xf32> to vector<8x1xf32>
    %cst_57 = arith.constant 3.100000e+01 : f32
    %134 = vector.broadcast %cst_57 : f32 to vector<8x1xf32>
    %135 = arith.divf %133, %134 : vector<8x1xf32>
    %136 = math.sqrt %135 : vector<8x1xf32>
    %cst_58 = arith.constant 9.99999997E-7 : f32
    %137 = vector.broadcast %cst_58 : f32 to vector<8x1xf32>
    %138 = arith.addf %136, %137 : vector<8x1xf32>
    %cst_59 = arith.constant 1.000000e+00 : f32
    %139 = vector.broadcast %cst_59 : f32 to vector<8x1xf32>
    %140 = arith.divf %139, %138 : vector<8x1xf32>
    %141 = vector.broadcast %128 : vector<8x1xf32> to vector<8x32xf32>
    %142 = arith.subf %122, %141 : vector<8x32xf32>
    %143 = vector.broadcast %140 : vector<8x1xf32> to vector<8x32xf32>
    %144 = arith.mulf %142, %143 : vector<8x32xf32>
    %145 = vector.broadcast %123 : vector<1x32xf32> to vector<8x32xf32>
    %146 = arith.mulf %144, %145 : vector<8x32xf32>
    %147 = vector.broadcast %124 : vector<1x32xf32> to vector<8x32xf32>
    %148 = arith.addf %146, %147 : vector<8x32xf32>
    %149 = arith.truncf %148 : vector<8x32xf32> to vector<8x32xbf16>
    %c0_60 = arith.constant 0 : index
    %c0_61 = arith.constant 0 : index
    %150 = vector.load %arg14[%c0_60, %c0_61] : memref<32x64xbf16, #tpu.memory_space<vmem>>, vector<32x64xbf16>
    %cst_62 = arith.constant dense<0.000000e+00> : vector<8x64xf32>
    %151 = tpu.matmul %149, %150, %cst_62 {dimension_numbers = #tpu.dot_dimension_numbers<[1], [0], [0], [1], [0, 0, 1, 1], [], []>} : vector<8x32xbf16>, vector<32x64xbf16>, vector<8x64xf32> -> vector<8x64xf32>
    %c0_63 = arith.constant 0 : index
    %c0_64 = arith.constant 0 : index
    %152 = vector.load %arg15[%c0_63, %c0_64] : memref<1x64xf32, #tpu.memory_space<vmem>>, vector<1x64xf32>
    %153 = vector.broadcast %152 : vector<1x64xf32> to vector<8x64xf32>
    %154 = arith.addf %151, %153 : vector<8x64xf32>
    %cst_65 = arith.constant 0.000000e+00 : f32
    %155 = vector.broadcast %cst_65 : f32 to vector<8x64xf32>
    %156 = arith.maximumf %154, %155 : vector<8x64xf32>
    %157 = arith.truncf %156 : vector<8x64xf32> to vector<8x64xbf16>
    %c0_66 = arith.constant 0 : index
    %c0_67 = arith.constant 0 : index
    %158 = vector.load %arg16[%c0_66, %c0_67] : memref<64x32xbf16, #tpu.memory_space<vmem>>, vector<64x32xbf16>
    %cst_68 = arith.constant dense<0.000000e+00> : vector<8x32xf32>
    %159 = tpu.matmul %157, %158, %cst_68 {dimension_numbers = #tpu.dot_dimension_numbers<[1], [0], [0], [1], [0, 0, 1, 1], [], []>} : vector<8x64xbf16>, vector<64x32xbf16>, vector<8x32xf32> -> vector<8x32xf32>
    %c0_69 = arith.constant 0 : index
    %c0_70 = arith.constant 0 : index
    %160 = vector.load %arg17[%c0_69, %c0_70] : memref<1x32xf32, #tpu.memory_space<vmem>>, vector<1x32xf32>
    %161 = vector.broadcast %160 : vector<1x32xf32> to vector<8x32xf32>
    %162 = arith.addf %159, %161 : vector<8x32xf32>
    %163 = arith.addf %122, %162 : vector<8x32xf32>
    %c2 = arith.constant 2 : index
    %c0_71 = arith.constant 0 : index
    %164 = vector.load %arg18[%c2, %c0_71] : memref<6x32xf32, #tpu.memory_space<vmem>>, vector<1x32xf32>
    %c2_72 = arith.constant 2 : index
    %c0_73 = arith.constant 0 : index
    %165 = vector.load %arg19[%c2_72, %c0_73] : memref<6x32xf32, #tpu.memory_space<vmem>>, vector<1x32xf32>
    %cst_74 = arith.constant dense<0.000000e+00> : vector<8xf32>
    %166 = vector.multi_reduction <add>, %163, %cst_74 [1] : vector<8x32xf32> to vector<8xf32>
    %167 = vector.shape_cast %166 : vector<8xf32> to vector<8x1xf32>
    %cst_75 = arith.constant 3.200000e+01 : f32
    %168 = vector.broadcast %cst_75 : f32 to vector<8x1xf32>
    %169 = arith.divf %167, %168 : vector<8x1xf32>
    %170 = vector.broadcast %169 : vector<8x1xf32> to vector<8x32xf32>
    %171 = arith.subf %163, %170 : vector<8x32xf32>
    %172 = arith.mulf %171, %171 : vector<8x32xf32>
    %cst_76 = arith.constant dense<0.000000e+00> : vector<8xf32>
    %173 = vector.multi_reduction <add>, %172, %cst_76 [1] : vector<8x32xf32> to vector<8xf32>
    %174 = vector.shape_cast %173 : vector<8xf32> to vector<8x1xf32>
    %cst_77 = arith.constant 3.100000e+01 : f32
    %175 = vector.broadcast %cst_77 : f32 to vector<8x1xf32>
    %176 = arith.divf %174, %175 : vector<8x1xf32>
    %177 = math.sqrt %176 : vector<8x1xf32>
    %cst_78 = arith.constant 9.99999997E-7 : f32
    %178 = vector.broadcast %cst_78 : f32 to vector<8x1xf32>
    %179 = arith.addf %177, %178 : vector<8x1xf32>
    %cst_79 = arith.constant 1.000000e+00 : f32
    %180 = vector.broadcast %cst_79 : f32 to vector<8x1xf32>
    %181 = arith.divf %180, %179 : vector<8x1xf32>
    %182 = vector.broadcast %169 : vector<8x1xf32> to vector<8x32xf32>
    %183 = arith.subf %163, %182 : vector<8x32xf32>
    %184 = vector.broadcast %181 : vector<8x1xf32> to vector<8x32xf32>
    %185 = arith.mulf %183, %184 : vector<8x32xf32>
    %186 = vector.broadcast %164 : vector<1x32xf32> to vector<8x32xf32>
    %187 = arith.mulf %185, %186 : vector<8x32xf32>
    %188 = vector.broadcast %165 : vector<1x32xf32> to vector<8x32xf32>
    %189 = arith.addf %187, %188 : vector<8x32xf32>
    %190 = arith.truncf %189 : vector<8x32xf32> to vector<8x32xbf16>
    %c0_80 = arith.constant 0 : index
    %c0_81 = arith.constant 0 : index
    %191 = vector.load %arg10[%c0_80, %c0_81] : memref<32x32xbf16, #tpu.memory_space<vmem>>, vector<32x32xbf16>
    %cst_82 = arith.constant dense<0.000000e+00> : vector<8x32xf32>
    %192 = tpu.matmul %190, %191, %cst_82 {dimension_numbers = #tpu.dot_dimension_numbers<[1], [0], [0], [1], [0, 0, 1, 1], [], []>} : vector<8x32xbf16>, vector<32x32xbf16>, vector<8x32xf32> -> vector<8x32xf32>
    %c0_83 = arith.constant 0 : index
    %c0_84 = arith.constant 0 : index
    %193 = vector.load %arg11[%c0_83, %c0_84] : memref<32x32xbf16, #tpu.memory_space<vmem>>, vector<32x32xbf16>
    %cst_85 = arith.constant dense<0.000000e+00> : vector<8x32xf32>
    %194 = tpu.matmul %3, %193, %cst_85 {dimension_numbers = #tpu.dot_dimension_numbers<[1], [0], [0], [1], [0, 0, 1, 1], [], []>} : vector<8x32xbf16>, vector<32x32xbf16>, vector<8x32xf32> -> vector<8x32xf32>
    %c0_86 = arith.constant 0 : index
    %c0_87 = arith.constant 0 : index
    %195 = vector.load %arg12[%c0_86, %c0_87] : memref<32x32xbf16, #tpu.memory_space<vmem>>, vector<32x32xbf16>
    %cst_88 = arith.constant dense<0.000000e+00> : vector<8x32xf32>
    %196 = tpu.matmul %3, %195, %cst_88 {dimension_numbers = #tpu.dot_dimension_numbers<[1], [0], [0], [1], [0, 0, 1, 1], [], []>} : vector<8x32xbf16>, vector<32x32xbf16>, vector<8x32xf32> -> vector<8x32xf32>
    %197 = arith.truncf %192 : vector<8x32xf32> to vector<8x32xbf16>
    %198 = arith.truncf %194 : vector<8x32xf32> to vector<8x32xbf16>
    %199 = arith.truncf %196 : vector<8x32xf32> to vector<8x32xbf16>
    %200 = vector.extract_strided_slice %197 {offsets = [0, 0], sizes = [8, 8], strides = [1, 1]} : vector<8x32xbf16> to vector<8x8xbf16>
    %201 = vector.extract_strided_slice %198 {offsets = [0, 0], sizes = [8, 8], strides = [1, 1]} : vector<8x32xbf16> to vector<8x8xbf16>
    %202 = vector.extract_strided_slice %199 {offsets = [0, 0], sizes = [8, 8], strides = [1, 1]} : vector<8x32xbf16> to vector<8x8xbf16>
    "tpu.trace_start"() <{level = 10 : i32, message = "qe,ke->qk"}> : () -> ()
    %cst_89 = arith.constant dense<0.000000e+00> : vector<8x8xf32>
    %203 = tpu.matmul %200, %201, %cst_89 {dimension_numbers = #tpu.dot_dimension_numbers<[1], [1], [0], [0], [0, 0, 1, 0], [], []>} : vector<8x8xbf16>, vector<8x8xbf16>, vector<8x8xf32> -> vector<8x8xf32>
    "tpu.trace_stop"() : () -> ()
    %204 = vector.broadcast %9 : vector<1x8xf32> to vector<8x8xf32>
    %205 = arith.addf %203, %204 : vector<8x8xf32>
    %cst_90 = arith.constant dense<0xFF800000> : vector<8xf32>
    %206 = vector.multi_reduction <maximumf>, %205, %cst_90 [1] : vector<8x8xf32> to vector<8xf32>
    %207 = vector.shape_cast %206 : vector<8xf32> to vector<8x1xf32>
    %208 = vector.broadcast %207 : vector<8x1xf32> to vector<8x8xf32>
    %209 = arith.subf %205, %208 : vector<8x8xf32>
    %210 = math.exp %209 : vector<8x8xf32>
    %cst_91 = arith.constant dense<0.000000e+00> : vector<8xf32>
    %211 = vector.multi_reduction <add>, %210, %cst_91 [1] : vector<8x8xf32> to vector<8xf32>
    %212 = vector.shape_cast %211 : vector<8xf32> to vector<8x1xf32>
    %213 = tpu.reciprocal %212 {approx = true} : vector<8x1xf32> -> vector<8x1xf32>
    %214 = vector.broadcast %213 : vector<8x1xf32> to vector<8x8xf32>
    %215 = arith.mulf %210, %214 : vector<8x8xf32>
    %216 = arith.truncf %215 : vector<8x8xf32> to vector<8x8xbf16>
    %cst_92 = arith.constant dense<0.000000e+00> : vector<8x8xf32>
    %217 = tpu.matmul %216, %202, %cst_92 {dimension_numbers = #tpu.dot_dimension_numbers<[1], [0], [0], [1], [0, 0, 1, 1], [], []>} : vector<8x8xbf16>, vector<8x8xbf16>, vector<8x8xf32> -> vector<8x8xf32>
    %218 = vector.extract_strided_slice %197 {offsets = [0, 8], sizes = [8, 8], strides = [1, 1]} : vector<8x32xbf16> to vector<8x8xbf16>
    %219 = vector.extract_strided_slice %198 {offsets = [0, 8], sizes = [8, 8], strides = [1, 1]} : vector<8x32xbf16> to vector<8x8xbf16>
    %220 = vector.extract_strided_slice %199 {offsets = [0, 8], sizes = [8, 8], strides = [1, 1]} : vector<8x32xbf16> to vector<8x8xbf16>
    "tpu.trace_start"() <{level = 10 : i32, message = "qe,ke->qk"}> : () -> ()
    %cst_93 = arith.constant dense<0.000000e+00> : vector<8x8xf32>
    %221 = tpu.matmul %218, %219, %cst_93 {dimension_numbers = #tpu.dot_dimension_numbers<[1], [1], [0], [0], [0, 0, 1, 0], [], []>} : vector<8x8xbf16>, vector<8x8xbf16>, vector<8x8xf32> -> vector<8x8xf32>
    "tpu.trace_stop"() : () -> ()
    %222 = vector.broadcast %9 : vector<1x8xf32> to vector<8x8xf32>
    %223 = arith.addf %221, %222 : vector<8x8xf32>
    %cst_94 = arith.constant dense<0xFF800000> : vector<8xf32>
    %224 = vector.multi_reduction <maximumf>, %223, %cst_94 [1] : vector<8x8xf32> to vector<8xf32>
    %225 = vector.shape_cast %224 : vector<8xf32> to vector<8x1xf32>
    %226 = vector.broadcast %225 : vector<8x1xf32> to vector<8x8xf32>
    %227 = arith.subf %223, %226 : vector<8x8xf32>
    %228 = math.exp %227 : vector<8x8xf32>
    %cst_95 = arith.constant dense<0.000000e+00> : vector<8xf32>
    %229 = vector.multi_reduction <add>, %228, %cst_95 [1] : vector<8x8xf32> to vector<8xf32>
    %230 = vector.shape_cast %229 : vector<8xf32> to vector<8x1xf32>
    %231 = tpu.reciprocal %230 {approx = true} : vector<8x1xf32> -> vector<8x1xf32>
    %232 = vector.broadcast %231 : vector<8x1xf32> to vector<8x8xf32>
    %233 = arith.mulf %228, %232 : vector<8x8xf32>
    %234 = arith.truncf %233 : vector<8x8xf32> to vector<8x8xbf16>
    %cst_96 = arith.constant dense<0.000000e+00> : vector<8x8xf32>
    %235 = tpu.matmul %234, %220, %cst_96 {dimension_numbers = #tpu.dot_dimension_numbers<[1], [0], [0], [1], [0, 0, 1, 1], [], []>} : vector<8x8xbf16>, vector<8x8xbf16>, vector<8x8xf32> -> vector<8x8xf32>
    %236 = vector.extract_strided_slice %197 {offsets = [0, 16], sizes = [8, 8], strides = [1, 1]} : vector<8x32xbf16> to vector<8x8xbf16>
    %237 = vector.extract_strided_slice %198 {offsets = [0, 16], sizes = [8, 8], strides = [1, 1]} : vector<8x32xbf16> to vector<8x8xbf16>
    %238 = vector.extract_strided_slice %199 {offsets = [0, 16], sizes = [8, 8], strides = [1, 1]} : vector<8x32xbf16> to vector<8x8xbf16>
    "tpu.trace_start"() <{level = 10 : i32, message = "qe,ke->qk"}> : () -> ()
    %cst_97 = arith.constant dense<0.000000e+00> : vector<8x8xf32>
    %239 = tpu.matmul %236, %237, %cst_97 {dimension_numbers = #tpu.dot_dimension_numbers<[1], [1], [0], [0], [0, 0, 1, 0], [], []>} : vector<8x8xbf16>, vector<8x8xbf16>, vector<8x8xf32> -> vector<8x8xf32>
    "tpu.trace_stop"() : () -> ()
    %240 = vector.broadcast %9 : vector<1x8xf32> to vector<8x8xf32>
    %241 = arith.addf %239, %240 : vector<8x8xf32>
    %cst_98 = arith.constant dense<0xFF800000> : vector<8xf32>
    %242 = vector.multi_reduction <maximumf>, %241, %cst_98 [1] : vector<8x8xf32> to vector<8xf32>
    %243 = vector.shape_cast %242 : vector<8xf32> to vector<8x1xf32>
    %244 = vector.broadcast %243 : vector<8x1xf32> to vector<8x8xf32>
    %245 = arith.subf %241, %244 : vector<8x8xf32>
    %246 = math.exp %245 : vector<8x8xf32>
    %cst_99 = arith.constant dense<0.000000e+00> : vector<8xf32>
    %247 = vector.multi_reduction <add>, %246, %cst_99 [1] : vector<8x8xf32> to vector<8xf32>
    %248 = vector.shape_cast %247 : vector<8xf32> to vector<8x1xf32>
    %249 = tpu.reciprocal %248 {approx = true} : vector<8x1xf32> -> vector<8x1xf32>
    %250 = vector.broadcast %249 : vector<8x1xf32> to vector<8x8xf32>
    %251 = arith.mulf %246, %250 : vector<8x8xf32>
    %252 = arith.truncf %251 : vector<8x8xf32> to vector<8x8xbf16>
    %cst_100 = arith.constant dense<0.000000e+00> : vector<8x8xf32>
    %253 = tpu.matmul %252, %238, %cst_100 {dimension_numbers = #tpu.dot_dimension_numbers<[1], [0], [0], [1], [0, 0, 1, 1], [], []>} : vector<8x8xbf16>, vector<8x8xbf16>, vector<8x8xf32> -> vector<8x8xf32>
    %254 = vector.extract_strided_slice %197 {offsets = [0, 24], sizes = [8, 8], strides = [1, 1]} : vector<8x32xbf16> to vector<8x8xbf16>
    %255 = vector.extract_strided_slice %198 {offsets = [0, 24], sizes = [8, 8], strides = [1, 1]} : vector<8x32xbf16> to vector<8x8xbf16>
    %256 = vector.extract_strided_slice %199 {offsets = [0, 24], sizes = [8, 8], strides = [1, 1]} : vector<8x32xbf16> to vector<8x8xbf16>
    "tpu.trace_start"() <{level = 10 : i32, message = "qe,ke->qk"}> : () -> ()
    %cst_101 = arith.constant dense<0.000000e+00> : vector<8x8xf32>
    %257 = tpu.matmul %254, %255, %cst_101 {dimension_numbers = #tpu.dot_dimension_numbers<[1], [1], [0], [0], [0, 0, 1, 0], [], []>} : vector<8x8xbf16>, vector<8x8xbf16>, vector<8x8xf32> -> vector<8x8xf32>
    "tpu.trace_stop"() : () -> ()
    %258 = vector.broadcast %9 : vector<1x8xf32> to vector<8x8xf32>
    %259 = arith.addf %257, %258 : vector<8x8xf32>
    %cst_102 = arith.constant dense<0xFF800000> : vector<8xf32>
    %260 = vector.multi_reduction <maximumf>, %259, %cst_102 [1] : vector<8x8xf32> to vector<8xf32>
    %261 = vector.shape_cast %260 : vector<8xf32> to vector<8x1xf32>
    %262 = vector.broadcast %261 : vector<8x1xf32> to vector<8x8xf32>
    %263 = arith.subf %259, %262 : vector<8x8xf32>
    %264 = math.exp %263 : vector<8x8xf32>
    %cst_103 = arith.constant dense<0.000000e+00> : vector<8xf32>
    %265 = vector.multi_reduction <add>, %264, %cst_103 [1] : vector<8x8xf32> to vector<8xf32>
    %266 = vector.shape_cast %265 : vector<8xf32> to vector<8x1xf32>
    %267 = tpu.reciprocal %266 {approx = true} : vector<8x1xf32> -> vector<8x1xf32>
    %268 = vector.broadcast %267 : vector<8x1xf32> to vector<8x8xf32>
    %269 = arith.mulf %264, %268 : vector<8x8xf32>
    %270 = arith.truncf %269 : vector<8x8xf32> to vector<8x8xbf16>
    %cst_104 = arith.constant dense<0.000000e+00> : vector<8x8xf32>
    %271 = tpu.matmul %270, %256, %cst_104 {dimension_numbers = #tpu.dot_dimension_numbers<[1], [0], [0], [1], [0, 0, 1, 1], [], []>} : vector<8x8xbf16>, vector<8x8xbf16>, vector<8x8xf32> -> vector<8x8xf32>
    %272 = tpu.concatenate %217, %235, %253, %271 in 1 : vector<8x8xf32>, vector<8x8xf32>, vector<8x8xf32>, vector<8x8xf32> -> vector<8x32xf32>
    %273 = arith.truncf %272 : vector<8x32xf32> to vector<8x32xbf16>
    %c0_105 = arith.constant 0 : index
    %c0_106 = arith.constant 0 : index
    %274 = vector.load %arg13[%c0_105, %c0_106] : memref<32x32xbf16, #tpu.memory_space<vmem>>, vector<32x32xbf16>
    %cst_107 = arith.constant dense<0.000000e+00> : vector<8x32xf32>
    %275 = tpu.matmul %273, %274, %cst_107 {dimension_numbers = #tpu.dot_dimension_numbers<[1], [0], [0], [1], [0, 0, 1, 1], [], []>} : vector<8x32xbf16>, vector<32x32xbf16>, vector<8x32xf32> -> vector<8x32xf32>
    %276 = arith.addf %163, %275 : vector<8x32xf32>
    %c3 = arith.constant 3 : index
    %c0_108 = arith.constant 0 : index
    %277 = vector.load %arg18[%c3, %c0_108] : memref<6x32xf32, #tpu.memory_space<vmem>>, vector<1x32xf32>
    %c3_109 = arith.constant 3 : index
    %c0_110 = arith.constant 0 : index
    %278 = vector.load %arg19[%c3_109, %c0_110] : memref<6x32xf32, #tpu.memory_space<vmem>>, vector<1x32xf32>
    %cst_111 = arith.constant dense<0.000000e+00> : vector<8xf32>
    %279 = vector.multi_reduction <add>, %276, %cst_111 [1] : vector<8x32xf32> to vector<8xf32>
    %280 = vector.shape_cast %279 : vector<8xf32> to vector<8x1xf32>
    %cst_112 = arith.constant 3.200000e+01 : f32
    %281 = vector.broadcast %cst_112 : f32 to vector<8x1xf32>
    %282 = arith.divf %280, %281 : vector<8x1xf32>
    %283 = vector.broadcast %282 : vector<8x1xf32> to vector<8x32xf32>
    %284 = arith.subf %276, %283 : vector<8x32xf32>
    %285 = arith.mulf %284, %284 : vector<8x32xf32>
    %cst_113 = arith.constant dense<0.000000e+00> : vector<8xf32>
    %286 = vector.multi_reduction <add>, %285, %cst_113 [1] : vector<8x32xf32> to vector<8xf32>
    %287 = vector.shape_cast %286 : vector<8xf32> to vector<8x1xf32>
    %cst_114 = arith.constant 3.100000e+01 : f32
    %288 = vector.broadcast %cst_114 : f32 to vector<8x1xf32>
    %289 = arith.divf %287, %288 : vector<8x1xf32>
    %290 = math.sqrt %289 : vector<8x1xf32>
    %cst_115 = arith.constant 9.99999997E-7 : f32
    %291 = vector.broadcast %cst_115 : f32 to vector<8x1xf32>
    %292 = arith.addf %290, %291 : vector<8x1xf32>
    %cst_116 = arith.constant 1.000000e+00 : f32
    %293 = vector.broadcast %cst_116 : f32 to vector<8x1xf32>
    %294 = arith.divf %293, %292 : vector<8x1xf32>
    %295 = vector.broadcast %282 : vector<8x1xf32> to vector<8x32xf32>
    %296 = arith.subf %276, %295 : vector<8x32xf32>
    %297 = vector.broadcast %294 : vector<8x1xf32> to vector<8x32xf32>
    %298 = arith.mulf %296, %297 : vector<8x32xf32>
    %299 = vector.broadcast %277 : vector<1x32xf32> to vector<8x32xf32>
    %300 = arith.mulf %298, %299 : vector<8x32xf32>
    %301 = vector.broadcast %278 : vector<1x32xf32> to vector<8x32xf32>
    %302 = arith.addf %300, %301 : vector<8x32xf32>
    %303 = arith.truncf %302 : vector<8x32xf32> to vector<8x32xbf16>
    %c0_117 = arith.constant 0 : index
    %c0_118 = arith.constant 0 : index
    %304 = vector.load %arg14[%c0_117, %c0_118] : memref<32x64xbf16, #tpu.memory_space<vmem>>, vector<32x64xbf16>
    %cst_119 = arith.constant dense<0.000000e+00> : vector<8x64xf32>
    %305 = tpu.matmul %303, %304, %cst_119 {dimension_numbers = #tpu.dot_dimension_numbers<[1], [0], [0], [1], [0, 0, 1, 1], [], []>} : vector<8x32xbf16>, vector<32x64xbf16>, vector<8x64xf32> -> vector<8x64xf32>
    %c0_120 = arith.constant 0 : index
    %c0_121 = arith.constant 0 : index
    %306 = vector.load %arg15[%c0_120, %c0_121] : memref<1x64xf32, #tpu.memory_space<vmem>>, vector<1x64xf32>
    %307 = vector.broadcast %306 : vector<1x64xf32> to vector<8x64xf32>
    %308 = arith.addf %305, %307 : vector<8x64xf32>
    %cst_122 = arith.constant 0.000000e+00 : f32
    %309 = vector.broadcast %cst_122 : f32 to vector<8x64xf32>
    %310 = arith.maximumf %308, %309 : vector<8x64xf32>
    %311 = arith.truncf %310 : vector<8x64xf32> to vector<8x64xbf16>
    %c0_123 = arith.constant 0 : index
    %c0_124 = arith.constant 0 : index
    %312 = vector.load %arg16[%c0_123, %c0_124] : memref<64x32xbf16, #tpu.memory_space<vmem>>, vector<64x32xbf16>
    %cst_125 = arith.constant dense<0.000000e+00> : vector<8x32xf32>
    %313 = tpu.matmul %311, %312, %cst_125 {dimension_numbers = #tpu.dot_dimension_numbers<[1], [0], [0], [1], [0, 0, 1, 1], [], []>} : vector<8x64xbf16>, vector<64x32xbf16>, vector<8x32xf32> -> vector<8x32xf32>
    %c0_126 = arith.constant 0 : index
    %c0_127 = arith.constant 0 : index
    %314 = vector.load %arg17[%c0_126, %c0_127] : memref<1x32xf32, #tpu.memory_space<vmem>>, vector<1x32xf32>
    %315 = vector.broadcast %314 : vector<1x32xf32> to vector<8x32xf32>
    %316 = arith.addf %313, %315 : vector<8x32xf32>
    %317 = arith.addf %276, %316 : vector<8x32xf32>
    %c4 = arith.constant 4 : index
    %c0_128 = arith.constant 0 : index
    %318 = vector.load %arg18[%c4, %c0_128] : memref<6x32xf32, #tpu.memory_space<vmem>>, vector<1x32xf32>
    %c4_129 = arith.constant 4 : index
    %c0_130 = arith.constant 0 : index
    %319 = vector.load %arg19[%c4_129, %c0_130] : memref<6x32xf32, #tpu.memory_space<vmem>>, vector<1x32xf32>
    %cst_131 = arith.constant dense<0.000000e+00> : vector<8xf32>
    %320 = vector.multi_reduction <add>, %317, %cst_131 [1] : vector<8x32xf32> to vector<8xf32>
    %321 = vector.shape_cast %320 : vector<8xf32> to vector<8x1xf32>
    %cst_132 = arith.constant 3.200000e+01 : f32
    %322 = vector.broadcast %cst_132 : f32 to vector<8x1xf32>
    %323 = arith.divf %321, %322 : vector<8x1xf32>
    %324 = vector.broadcast %323 : vector<8x1xf32> to vector<8x32xf32>
    %325 = arith.subf %317, %324 : vector<8x32xf32>
    %326 = arith.mulf %325, %325 : vector<8x32xf32>
    %cst_133 = arith.constant dense<0.000000e+00> : vector<8xf32>
    %327 = vector.multi_reduction <add>, %326, %cst_133 [1] : vector<8x32xf32> to vector<8xf32>
    %328 = vector.shape_cast %327 : vector<8xf32> to vector<8x1xf32>
    %cst_134 = arith.constant 3.100000e+01 : f32
    %329 = vector.broadcast %cst_134 : f32 to vector<8x1xf32>
    %330 = arith.divf %328, %329 : vector<8x1xf32>
    %331 = math.sqrt %330 : vector<8x1xf32>
    %cst_135 = arith.constant 9.99999997E-7 : f32
    %332 = vector.broadcast %cst_135 : f32 to vector<8x1xf32>
    %333 = arith.addf %331, %332 : vector<8x1xf32>
    %cst_136 = arith.constant 1.000000e+00 : f32
    %334 = vector.broadcast %cst_136 : f32 to vector<8x1xf32>
    %335 = arith.divf %334, %333 : vector<8x1xf32>
    %336 = vector.broadcast %323 : vector<8x1xf32> to vector<8x32xf32>
    %337 = arith.subf %317, %336 : vector<8x32xf32>
    %338 = vector.broadcast %335 : vector<8x1xf32> to vector<8x32xf32>
    %339 = arith.mulf %337, %338 : vector<8x32xf32>
    %340 = vector.broadcast %318 : vector<1x32xf32> to vector<8x32xf32>
    %341 = arith.mulf %339, %340 : vector<8x32xf32>
    %342 = vector.broadcast %319 : vector<1x32xf32> to vector<8x32xf32>
    %343 = arith.addf %341, %342 : vector<8x32xf32>
    %344 = arith.truncf %343 : vector<8x32xf32> to vector<8x32xbf16>
    %c0_137 = arith.constant 0 : index
    %c0_138 = arith.constant 0 : index
    %345 = vector.load %arg10[%c0_137, %c0_138] : memref<32x32xbf16, #tpu.memory_space<vmem>>, vector<32x32xbf16>
    %cst_139 = arith.constant dense<0.000000e+00> : vector<8x32xf32>
    %346 = tpu.matmul %344, %345, %cst_139 {dimension_numbers = #tpu.dot_dimension_numbers<[1], [0], [0], [1], [0, 0, 1, 1], [], []>} : vector<8x32xbf16>, vector<32x32xbf16>, vector<8x32xf32> -> vector<8x32xf32>
    %c0_140 = arith.constant 0 : index
    %c0_141 = arith.constant 0 : index
    %347 = vector.load %arg11[%c0_140, %c0_141] : memref<32x32xbf16, #tpu.memory_space<vmem>>, vector<32x32xbf16>
    %cst_142 = arith.constant dense<0.000000e+00> : vector<4x32xf32>
    %348 = tpu.matmul %5, %347, %cst_142 {dimension_numbers = #tpu.dot_dimension_numbers<[1], [0], [0], [1], [0, 0, 1, 1], [], []>} : vector<4x32xbf16>, vector<32x32xbf16>, vector<4x32xf32> -> vector<4x32xf32>
    %c0_143 = arith.constant 0 : index
    %c0_144 = arith.constant 0 : index
    %349 = vector.load %arg12[%c0_143, %c0_144] : memref<32x32xbf16, #tpu.memory_space<vmem>>, vector<32x32xbf16>
    %cst_145 = arith.constant dense<0.000000e+00> : vector<4x32xf32>
    %350 = tpu.matmul %5, %349, %cst_145 {dimension_numbers = #tpu.dot_dimension_numbers<[1], [0], [0], [1], [0, 0, 1, 1], [], []>} : vector<4x32xbf16>, vector<32x32xbf16>, vector<4x32xf32> -> vector<4x32xf32>
    %351 = arith.truncf %346 : vector<8x32xf32> to vector<8x32xbf16>
    %352 = arith.truncf %348 : vector<4x32xf32> to vector<4x32xbf16>
    %353 = arith.truncf %350 : vector<4x32xf32> to vector<4x32xbf16>
    %354 = vector.extract_strided_slice %351 {offsets = [0, 0], sizes = [8, 8], strides = [1, 1]} : vector<8x32xbf16> to vector<8x8xbf16>
    %355 = vector.extract_strided_slice %352 {offsets = [0, 0], sizes = [4, 8], strides = [1, 1]} : vector<4x32xbf16> to vector<4x8xbf16>
    %356 = vector.extract_strided_slice %353 {offsets = [0, 0], sizes = [4, 8], strides = [1, 1]} : vector<4x32xbf16> to vector<4x8xbf16>
    "tpu.trace_start"() <{level = 10 : i32, message = "qe,ke->qk"}> : () -> ()
    %cst_146 = arith.constant dense<0.000000e+00> : vector<8x4xf32>
    %357 = tpu.matmul %354, %355, %cst_146 {dimension_numbers = #tpu.dot_dimension_numbers<[1], [1], [0], [0], [0, 0, 1, 0], [], []>} : vector<8x8xbf16>, vector<4x8xbf16>, vector<8x4xf32> -> vector<8x4xf32>
    "tpu.trace_stop"() : () -> ()
    %cst_147 = arith.constant dense<0xFF800000> : vector<8xf32>
    %358 = vector.multi_reduction <maximumf>, %357, %cst_147 [1] : vector<8x4xf32> to vector<8xf32>
    %359 = vector.shape_cast %358 : vector<8xf32> to vector<8x1xf32>
    %360 = vector.broadcast %359 : vector<8x1xf32> to vector<8x4xf32>
    %361 = arith.subf %357, %360 : vector<8x4xf32>
    %362 = math.exp %361 : vector<8x4xf32>
    %cst_148 = arith.constant dense<0.000000e+00> : vector<8xf32>
    %363 = vector.multi_reduction <add>, %362, %cst_148 [1] : vector<8x4xf32> to vector<8xf32>
    %364 = vector.shape_cast %363 : vector<8xf32> to vector<8x1xf32>
    %365 = tpu.reciprocal %364 {approx = true} : vector<8x1xf32> -> vector<8x1xf32>
    %366 = vector.broadcast %365 : vector<8x1xf32> to vector<8x4xf32>
    %367 = arith.mulf %362, %366 : vector<8x4xf32>
    %368 = arith.truncf %367 : vector<8x4xf32> to vector<8x4xbf16>
    %cst_149 = arith.constant dense<0.000000e+00> : vector<8x8xf32>
    %369 = tpu.matmul %368, %356, %cst_149 {dimension_numbers = #tpu.dot_dimension_numbers<[1], [0], [0], [1], [0, 0, 1, 1], [], []>} : vector<8x4xbf16>, vector<4x8xbf16>, vector<8x8xf32> -> vector<8x8xf32>
    %370 = vector.extract_strided_slice %351 {offsets = [0, 8], sizes = [8, 8], strides = [1, 1]} : vector<8x32xbf16> to vector<8x8xbf16>
    %371 = vector.extract_strided_slice %352 {offsets = [0, 8], sizes = [4, 8], strides = [1, 1]} : vector<4x32xbf16> to vector<4x8xbf16>
    %372 = vector.extract_strided_slice %353 {offsets = [0, 8], sizes = [4, 8], strides = [1, 1]} : vector<4x32xbf16> to vector<4x8xbf16>
    "tpu.trace_start"() <{level = 10 : i32, message = "qe,ke->qk"}> : () -> ()
    %cst_150 = arith.constant dense<0.000000e+00> : vector<8x4xf32>
    %373 = tpu.matmul %370, %371, %cst_150 {dimension_numbers = #tpu.dot_dimension_numbers<[1], [1], [0], [0], [0, 0, 1, 0], [], []>} : vector<8x8xbf16>, vector<4x8xbf16>, vector<8x4xf32> -> vector<8x4xf32>
    "tpu.trace_stop"() : () -> ()
    %cst_151 = arith.constant dense<0xFF800000> : vector<8xf32>
    %374 = vector.multi_reduction <maximumf>, %373, %cst_151 [1] : vector<8x4xf32> to vector<8xf32>
    %375 = vector.shape_cast %374 : vector<8xf32> to vector<8x1xf32>
    %376 = vector.broadcast %375 : vector<8x1xf32> to vector<8x4xf32>
    %377 = arith.subf %373, %376 : vector<8x4xf32>
    %378 = math.exp %377 : vector<8x4xf32>
    %cst_152 = arith.constant dense<0.000000e+00> : vector<8xf32>
    %379 = vector.multi_reduction <add>, %378, %cst_152 [1] : vector<8x4xf32> to vector<8xf32>
    %380 = vector.shape_cast %379 : vector<8xf32> to vector<8x1xf32>
    %381 = tpu.reciprocal %380 {approx = true} : vector<8x1xf32> -> vector<8x1xf32>
    %382 = vector.broadcast %381 : vector<8x1xf32> to vector<8x4xf32>
    %383 = arith.mulf %378, %382 : vector<8x4xf32>
    %384 = arith.truncf %383 : vector<8x4xf32> to vector<8x4xbf16>
    %cst_153 = arith.constant dense<0.000000e+00> : vector<8x8xf32>
    %385 = tpu.matmul %384, %372, %cst_153 {dimension_numbers = #tpu.dot_dimension_numbers<[1], [0], [0], [1], [0, 0, 1, 1], [], []>} : vector<8x4xbf16>, vector<4x8xbf16>, vector<8x8xf32> -> vector<8x8xf32>
    %386 = vector.extract_strided_slice %351 {offsets = [0, 16], sizes = [8, 8], strides = [1, 1]} : vector<8x32xbf16> to vector<8x8xbf16>
    %387 = vector.extract_strided_slice %352 {offsets = [0, 16], sizes = [4, 8], strides = [1, 1]} : vector<4x32xbf16> to vector<4x8xbf16>
    %388 = vector.extract_strided_slice %353 {offsets = [0, 16], sizes = [4, 8], strides = [1, 1]} : vector<4x32xbf16> to vector<4x8xbf16>
    "tpu.trace_start"() <{level = 10 : i32, message = "qe,ke->qk"}> : () -> ()
    %cst_154 = arith.constant dense<0.000000e+00> : vector<8x4xf32>
    %389 = tpu.matmul %386, %387, %cst_154 {dimension_numbers = #tpu.dot_dimension_numbers<[1], [1], [0], [0], [0, 0, 1, 0], [], []>} : vector<8x8xbf16>, vector<4x8xbf16>, vector<8x4xf32> -> vector<8x4xf32>
    "tpu.trace_stop"() : () -> ()
    %cst_155 = arith.constant dense<0xFF800000> : vector<8xf32>
    %390 = vector.multi_reduction <maximumf>, %389, %cst_155 [1] : vector<8x4xf32> to vector<8xf32>
    %391 = vector.shape_cast %390 : vector<8xf32> to vector<8x1xf32>
    %392 = vector.broadcast %391 : vector<8x1xf32> to vector<8x4xf32>
    %393 = arith.subf %389, %392 : vector<8x4xf32>
    %394 = math.exp %393 : vector<8x4xf32>
    %cst_156 = arith.constant dense<0.000000e+00> : vector<8xf32>
    %395 = vector.multi_reduction <add>, %394, %cst_156 [1] : vector<8x4xf32> to vector<8xf32>
    %396 = vector.shape_cast %395 : vector<8xf32> to vector<8x1xf32>
    %397 = tpu.reciprocal %396 {approx = true} : vector<8x1xf32> -> vector<8x1xf32>
    %398 = vector.broadcast %397 : vector<8x1xf32> to vector<8x4xf32>
    %399 = arith.mulf %394, %398 : vector<8x4xf32>
    %400 = arith.truncf %399 : vector<8x4xf32> to vector<8x4xbf16>
    %cst_157 = arith.constant dense<0.000000e+00> : vector<8x8xf32>
    %401 = tpu.matmul %400, %388, %cst_157 {dimension_numbers = #tpu.dot_dimension_numbers<[1], [0], [0], [1], [0, 0, 1, 1], [], []>} : vector<8x4xbf16>, vector<4x8xbf16>, vector<8x8xf32> -> vector<8x8xf32>
    %402 = vector.extract_strided_slice %351 {offsets = [0, 24], sizes = [8, 8], strides = [1, 1]} : vector<8x32xbf16> to vector<8x8xbf16>
    %403 = vector.extract_strided_slice %352 {offsets = [0, 24], sizes = [4, 8], strides = [1, 1]} : vector<4x32xbf16> to vector<4x8xbf16>
    %404 = vector.extract_strided_slice %353 {offsets = [0, 24], sizes = [4, 8], strides = [1, 1]} : vector<4x32xbf16> to vector<4x8xbf16>
    "tpu.trace_start"() <{level = 10 : i32, message = "qe,ke->qk"}> : () -> ()
    %cst_158 = arith.constant dense<0.000000e+00> : vector<8x4xf32>
    %405 = tpu.matmul %402, %403, %cst_158 {dimension_numbers = #tpu.dot_dimension_numbers<[1], [1], [0], [0], [0, 0, 1, 0], [], []>} : vector<8x8xbf16>, vector<4x8xbf16>, vector<8x4xf32> -> vector<8x4xf32>
    "tpu.trace_stop"() : () -> ()
    %cst_159 = arith.constant dense<0xFF800000> : vector<8xf32>
    %406 = vector.multi_reduction <maximumf>, %405, %cst_159 [1] : vector<8x4xf32> to vector<8xf32>
    %407 = vector.shape_cast %406 : vector<8xf32> to vector<8x1xf32>
    %408 = vector.broadcast %407 : vector<8x1xf32> to vector<8x4xf32>
    %409 = arith.subf %405, %408 : vector<8x4xf32>
    %410 = math.exp %409 : vector<8x4xf32>
    %cst_160 = arith.constant dense<0.000000e+00> : vector<8xf32>
    %411 = vector.multi_reduction <add>, %410, %cst_160 [1] : vector<8x4xf32> to vector<8xf32>
    %412 = vector.shape_cast %411 : vector<8xf32> to vector<8x1xf32>
    %413 = tpu.reciprocal %412 {approx = true} : vector<8x1xf32> -> vector<8x1xf32>
    %414 = vector.broadcast %413 : vector<8x1xf32> to vector<8x4xf32>
    %415 = arith.mulf %410, %414 : vector<8x4xf32>
    %416 = arith.truncf %415 : vector<8x4xf32> to vector<8x4xbf16>
    %cst_161 = arith.constant dense<0.000000e+00> : vector<8x8xf32>
    %417 = tpu.matmul %416, %404, %cst_161 {dimension_numbers = #tpu.dot_dimension_numbers<[1], [0], [0], [1], [0, 0, 1, 1], [], []>} : vector<8x4xbf16>, vector<4x8xbf16>, vector<8x8xf32> -> vector<8x8xf32>
    %418 = tpu.concatenate %369, %385, %401, %417 in 1 : vector<8x8xf32>, vector<8x8xf32>, vector<8x8xf32>, vector<8x8xf32> -> vector<8x32xf32>
    %419 = arith.truncf %418 : vector<8x32xf32> to vector<8x32xbf16>
    %c0_162 = arith.constant 0 : index
    %c0_163 = arith.constant 0 : index
    %420 = vector.load %arg13[%c0_162, %c0_163] : memref<32x32xbf16, #tpu.memory_space<vmem>>, vector<32x32xbf16>
    %cst_164 = arith.constant dense<0.000000e+00> : vector<8x32xf32>
    %421 = tpu.matmul %419, %420, %cst_164 {dimension_numbers = #tpu.dot_dimension_numbers<[1], [0], [0], [1], [0, 0, 1, 1], [], []>} : vector<8x32xbf16>, vector<32x32xbf16>, vector<8x32xf32> -> vector<8x32xf32>
    %422 = arith.addf %317, %421 : vector<8x32xf32>
    %c5 = arith.constant 5 : index
    %c0_165 = arith.constant 0 : index
    %423 = vector.load %arg18[%c5, %c0_165] : memref<6x32xf32, #tpu.memory_space<vmem>>, vector<1x32xf32>
    %c5_166 = arith.constant 5 : index
    %c0_167 = arith.constant 0 : index
    %424 = vector.load %arg19[%c5_166, %c0_167] : memref<6x32xf32, #tpu.memory_space<vmem>>, vector<1x32xf32>
    %cst_168 = arith.constant dense<0.000000e+00> : vector<8xf32>
    %425 = vector.multi_reduction <add>, %422, %cst_168 [1] : vector<8x32xf32> to vector<8xf32>
    %426 = vector.shape_cast %425 : vector<8xf32> to vector<8x1xf32>
    %cst_169 = arith.constant 3.200000e+01 : f32
    %427 = vector.broadcast %cst_169 : f32 to vector<8x1xf32>
    %428 = arith.divf %426, %427 : vector<8x1xf32>
    %429 = vector.broadcast %428 : vector<8x1xf32> to vector<8x32xf32>
    %430 = arith.subf %422, %429 : vector<8x32xf32>
    %431 = arith.mulf %430, %430 : vector<8x32xf32>
    %cst_170 = arith.constant dense<0.000000e+00> : vector<8xf32>
    %432 = vector.multi_reduction <add>, %431, %cst_170 [1] : vector<8x32xf32> to vector<8xf32>
    %433 = vector.shape_cast %432 : vector<8xf32> to vector<8x1xf32>
    %cst_171 = arith.constant 3.100000e+01 : f32
    %434 = vector.broadcast %cst_171 : f32 to vector<8x1xf32>
    %435 = arith.divf %433, %434 : vector<8x1xf32>
    %436 = math.sqrt %435 : vector<8x1xf32>
    %cst_172 = arith.constant 9.99999997E-7 : f32
    %437 = vector.broadcast %cst_172 : f32 to vector<8x1xf32>
    %438 = arith.addf %436, %437 : vector<8x1xf32>
    %cst_173 = arith.constant 1.000000e+00 : f32
    %439 = vector.broadcast %cst_173 : f32 to vector<8x1xf32>
    %440 = arith.divf %439, %438 : vector<8x1xf32>
    %441 = vector.broadcast %428 : vector<8x1xf32> to vector<8x32xf32>
    %442 = arith.subf %422, %441 : vector<8x32xf32>
    %443 = vector.broadcast %440 : vector<8x1xf32> to vector<8x32xf32>
    %444 = arith.mulf %442, %443 : vector<8x32xf32>
    %445 = vector.broadcast %423 : vector<1x32xf32> to vector<8x32xf32>
    %446 = arith.mulf %444, %445 : vector<8x32xf32>
    %447 = vector.broadcast %424 : vector<1x32xf32> to vector<8x32xf32>
    %448 = arith.addf %446, %447 : vector<8x32xf32>
    %449 = arith.truncf %448 : vector<8x32xf32> to vector<8x32xbf16>
    %c0_174 = arith.constant 0 : index
    %c0_175 = arith.constant 0 : index
    %450 = vector.load %arg14[%c0_174, %c0_175] : memref<32x64xbf16, #tpu.memory_space<vmem>>, vector<32x64xbf16>
    %cst_176 = arith.constant dense<0.000000e+00> : vector<8x64xf32>
    %451 = tpu.matmul %449, %450, %cst_176 {dimension_numbers = #tpu.dot_dimension_numbers<[1], [0], [0], [1], [0, 0, 1, 1], [], []>} : vector<8x32xbf16>, vector<32x64xbf16>, vector<8x64xf32> -> vector<8x64xf32>
    %c0_177 = arith.constant 0 : index
    %c0_178 = arith.constant 0 : index
    %452 = vector.load %arg15[%c0_177, %c0_178] : memref<1x64xf32, #tpu.memory_space<vmem>>, vector<1x64xf32>
    %453 = vector.broadcast %452 : vector<1x64xf32> to vector<8x64xf32>
    %454 = arith.addf %451, %453 : vector<8x64xf32>
    %cst_179 = arith.constant 0.000000e+00 : f32
    %455 = vector.broadcast %cst_179 : f32 to vector<8x64xf32>
    %456 = arith.maximumf %454, %455 : vector<8x64xf32>
    %457 = arith.truncf %456 : vector<8x64xf32> to vector<8x64xbf16>
    %c0_180 = arith.constant 0 : index
    %c0_181 = arith.constant 0 : index
    %458 = vector.load %arg16[%c0_180, %c0_181] : memref<64x32xbf16, #tpu.memory_space<vmem>>, vector<64x32xbf16>
    %cst_182 = arith.constant dense<0.000000e+00> : vector<8x32xf32>
    %459 = tpu.matmul %457, %458, %cst_182 {dimension_numbers = #tpu.dot_dimension_numbers<[1], [0], [0], [1], [0, 0, 1, 1], [], []>} : vector<8x64xbf16>, vector<64x32xbf16>, vector<8x32xf32> -> vector<8x32xf32>
    %c0_183 = arith.constant 0 : index
    %c0_184 = arith.constant 0 : index
    %460 = vector.load %arg17[%c0_183, %c0_184] : memref<1x32xf32, #tpu.memory_space<vmem>>, vector<1x32xf32>
    %461 = vector.broadcast %460 : vector<1x32xf32> to vector<8x32xf32>
    %462 = arith.addf %459, %461 : vector<8x32xf32>
    %463 = arith.addf %422, %462 : vector<8x32xf32>
    %c0_185 = arith.constant 0 : index
    %c0_186 = arith.constant 0 : index
    %c0_187 = arith.constant 0 : index
    %464 = vector.load %arg20[%c0_185, %c0_186, %c0_187] : memref<1x8x32xf32, #tpu.memory_space<vmem>>, vector<1x8x32xf32>
    %465 = vector.shape_cast %464 : vector<1x8x32xf32> to vector<8x32xf32>
    %466 = vector.shape_cast %463 : vector<8x32xf32> to vector<1x8x32xf32>
    tpu.vector_store %arg20[%c0_185, %c0_186, %c0_187], %466 {strides = array<i32>} : memref<1x8x32xf32, #tpu.memory_space<vmem>>, vector<1x8x32xf32>,
    return
  }
  func.func @transform_0(%arg0: i32) -> (i32, i32, i32) {
    %c0_i32 = arith.constant 0 : i32
    %c0_i32_0 = arith.constant 0 : i32
    %c0_i32_1 = arith.constant 0 : i32
    return %arg0, %c0_i32, %c0_i32_0 : i32, i32, i32
  }
  func.func @transform_1(%arg0: i32) -> (i32, i32, i32) {
    %c0_i32 = arith.constant 0 : i32
    %c0_i32_0 = arith.constant 0 : i32
    %c0_i32_1 = arith.constant 0 : i32
    return %arg0, %c0_i32, %c0_i32_0 : i32, i32, i32
  }
  func.func @transform_2(%arg0: i32) -> (i32, i32, i32) {
    %c0_i32 = arith.constant 0 : i32
    %c0_i32_0 = arith.constant 0 : i32
    %c0_i32_1 = arith.constant 0 : i32
    return %arg0, %c0_i32, %c0_i32_0 : i32, i32, i32
  }
  func.func @transform_3(%arg0: i32) -> (i32, i32, i32) {
    %c0_i32 = arith.constant 0 : i32
    %c0_i32_0 = arith.constant 0 : i32
    %c0_i32_1 = arith.constant 0 : i32
    return %arg0, %c0_i32, %c0_i32_0 : i32, i32, i32
  }
  func.func @transform_4(%arg0: i32) -> (i32, i32, i32) {
    %c0_i32 = arith.constant 0 : i32
    %c0_i32_0 = arith.constant 0 : i32
    %c0_i32_1 = arith.constant 0 : i32
    return %arg0, %c0_i32, %c0_i32_0 : i32, i32, i32
  }
  func.func @transform_5(%arg0: i32) -> (i32, i32) {
    %c0_i32 = arith.constant 0 : i32
    %c0_i32_0 = arith.constant 0 : i32
    %c0_i32_1 = arith.constant 0 : i32
    return %c0_i32, %c0_i32_0 : i32, i32
  }
  func.func @transform_6(%arg0: i32) -> (i32, i32) {
    %c0_i32 = arith.constant 0 : i32
    %c0_i32_0 = arith.constant 0 : i32
    %c0_i32_1 = arith.constant 0 : i32
    return %c0_i32, %c0_i32_0 : i32, i32
  }
  func.func @transform_7(%arg0: i32) -> (i32, i32) {
    %c0_i32 = arith.constant 0 : i32
    %c0_i32_0 = arith.constant 0 : i32
    %c0_i32_1 = arith.constant 0 : i32
    return %c0_i32, %c0_i32_0 : i32, i32
  }
  func.func @transform_8(%arg0: i32) -> (i32, i32) {
    %c0_i32 = arith.constant 0 : i32
    %c0_i32_0 = arith.constant 0 : i32
    %c0_i32_1 = arith.constant 0 : i32
    return %c0_i32, %c0_i32_0 : i32, i32
  }
  func.func @transform_9(%arg0: i32) -> (i32, i32) {
    %c0_i32 = arith.constant 0 : i32
    %c0_i32_0 = arith.constant 0 : i32
    %c0_i32_1 = arith.constant 0 : i32
    return %c0_i32, %c0_i32_0 : i32, i32
  }
  func.func @transform_10(%arg0: i32) -> (i32, i32) {
    %c0_i32 = arith.constant 0 : i32
    %c0_i32_0 = arith.constant 0 : i32
    %c0_i32_1 = arith.constant 0 : i32
    return %c0_i32, %c0_i32_0 : i32, i32
  }
  func.func @transform_11(%arg0: i32) -> (i32, i32) {
    %c0_i32 = arith.constant 0 : i32
    %c0_i32_0 = arith.constant 0 : i32
    %c0_i32_1 = arith.constant 0 : i32
    return %c0_i32, %c0_i32_0 : i32, i32
  }
  func.func @transform_12(%arg0: i32) -> (i32, i32) {
    %c0_i32 = arith.constant 0 : i32
    %c0_i32_0 = arith.constant 0 : i32
    %c0_i32_1 = arith.constant 0 : i32
    return %c0_i32, %c0_i32_0 : i32, i32
  }
  func.func @transform_13(%arg0: i32) -> (i32, i32) {
    %c0_i32 = arith.constant 0 : i32
    %c0_i32_0 = arith.constant 0 : i32
    %c0_i32_1 = arith.constant 0 : i32
    return %c0_i32, %c0_i32_0 : i32, i32
  }
  func.func @transform_14(%arg0: i32) -> (i32, i32) {
    %c0_i32 = arith.constant 0 : i32
    %c0_i32_0 = arith.constant 0 : i32
    %c0_i32_1 = arith.constant 0 : i32
    return %c0_i32, %c0_i32_0 : i32, i32
  }
  func.func @transform_15(%arg0: i32) -> (i32, i32) {
    %c0_i32 = arith.constant 0 : i32
    %c0_i32_0 = arith.constant 0 : i32
    %c0_i32_1 = arith.constant 0 : i32
    return %c0_i32, %c0_i32_0 : i32, i32
  }
  func.func @transform_16(%arg0: i32) -> (i32, i32) {
    %c0_i32 = arith.constant 0 : i32
    %c0_i32_0 = arith.constant 0 : i32
    %c0_i32_1 = arith.constant 0 : i32
    return %c0_i32, %c0_i32_0 : i32, i32
  }
  func.func @transform_17(%arg0: i32) -> (i32, i32) {
    %c0_i32 = arith.constant 0 : i32
    %c0_i32_0 = arith.constant 0 : i32
    %c0_i32_1 = arith.constant 0 : i32
    return %c0_i32, %c0_i32_0 : i32, i32
  }
  func.func @transform_18(%arg0: i32) -> (i32, i32) {
    %c0_i32 = arith.constant 0 : i32
    %c0_i32_0 = arith.constant 0 : i32
    %c0_i32_1 = arith.constant 0 : i32
    return %c0_i32, %c0_i32_0 : i32, i32
  }
  func.func @transform_19(%arg0: i32) -> (i32, i32, i32) {
    %c0_i32 = arith.constant 0 : i32
    %c0_i32_0 = arith.constant 0 : i32
    %c0_i32_1 = arith.constant 0 : i32
    return %arg0, %c0_i32, %c0_i32_0 : i32, i32, i32
  }
}

</mosaic_0001>

<llo_original>
// kernel: encoder_block_forward.1
$region0: #{encoder_block_forward.1}
  #allocation0 [shape = 'u32[]', space=smem, size = 0x4, offset = 0x4, fixed_abs, tag = 'smem constant byte address 0x4 - core index']
  #allocation1 [shape = 'u32[72,128]{1,0:T(1,128)}', space=vmem, size = 0x9000, scoped, tag = 'internal scratch']
  %s0 = inlined_call_operand.vmem [shape: f32[2,8,32], index: 0, kind: input, shape index: {}]
  %s1 = inlined_call_operand.vmem [shape: bf16[2,8,32], index: 1, kind: input, shape index: {}]
  %s2 = inlined_call_operand.vmem [shape: bf16[2,4,32], index: 2, kind: input, shape index: {}]
  %s3 = inlined_call_operand.vmem [shape: f32[2,1,8], index: 3, kind: input, shape index: {}]
  %s4 = inlined_call_operand.vmem [shape: f32[2,1,8], index: 4, kind: input, shape index: {}]
  %s5 = inlined_call_operand.vmem [shape: bf16[32,32], index: 5, kind: input, shape index: {}]
  %s6 = inlined_call_operand.vmem [shape: bf16[32,32], index: 6, kind: input, shape index: {}]
  %s7 = inlined_call_operand.vmem [shape: bf16[32,32], index: 7, kind: input, shape index: {}]
  %s8 = inlined_call_operand.vmem [shape: bf16[32,32], index: 8, kind: input, shape index: {}]
  %s9 = inlined_call_operand.vmem [shape: bf16[32,32], index: 9, kind: input, shape index: {}]
  %s10 = inlined_call_operand.vmem [shape: bf16[32,32], index: 10, kind: input, shape index: {}]
  %s11 = inlined_call_operand.vmem [shape: bf16[32,32], index: 11, kind: input, shape index: {}]
  %s12 = inlined_call_operand.vmem [shape: bf16[32,32], index: 12, kind: input, shape index: {}]
  %s13 = inlined_call_operand.vmem [shape: bf16[32,64], index: 13, kind: input, shape index: {}]
  %s14 = inlined_call_operand.vmem [shape: f32[1,64], index: 14, kind: input, shape index: {}]
  %s15 = inlined_call_operand.vmem [shape: bf16[64,32], index: 15, kind: input, shape index: {}]
  %s16 = inlined_call_operand.vmem [shape: f32[1,32], index: 16, kind: input, shape index: {}]
  %s17 = inlined_call_operand.vmem [shape: f32[6,32], index: 17, kind: input, shape index: {}]
  %s18 = inlined_call_operand.vmem [shape: f32[6,32], index: 18, kind: input, shape index: {}]
  %s19 = inlined_call_operand.hbm [shape: f32[2,8,32], index: 19, kind: output, shape index: {}]
  %s20 = sld [smem:[#allocation0]]
  $region109: #{encoder_block_forward.1} parent=0
    _
  %s22 = ssub.s32 1, %s20
  %s23 = scalar_select 0, %s22, %s20
  $region1: #{encoder_block_forward.1} parent=0
    #allocation2 [shape = 'u8[8192]{0}', space=vmem, size = 0x2000, scoped, tag = 'output window, operand 0']
    #allocation3 [shape = 's32[2]{0}', space=sflag, size = 0x8, scoped, tag = 'scoped memory for encoder_block_forward.1']
    %24 = vsyncpa [#allocation3], 0
    %s25 = scalar_lea.sflag [#allocation3], 1
    %26 = vsyncpa %s25, 0
    loop: start=0, step=1, limit=4
    $region2: #{encoder_block_forward.1} parent=1 // loop_pre_header
      _
    $region3: #{encoder_block_forward.1} parent=1 // loop_header
      %s28 = sphi 0, %s32
      %p29 = scmp.ge.s32.totalorder %s28, 4
      %s38 = sphi 0, %s40
      %s41 = sphi 0, %s38
      %s42 = sphi 0, %s41
      %s58 = sphi 0, %s42
      %s64 = sphi 0, %s66
      %s67 = sphi 0, %s64
      %s68 = sphi 0, %s67
      %s84 = sphi 0, %s68
      %s90 = sphi 0, %s92
      %s93 = sphi 0, %s90
      %s94 = sphi 0, %s93
      %s110 = sphi 0, %s94
      %s116 = sphi 0, %s118
      %s119 = sphi 0, %s116
      %s120 = sphi 0, %s119
      %s136 = sphi 0, %s120
      %s142 = sphi 0, %s144
      %s145 = sphi 0, %s142
      %s146 = sphi 0, %s145
      %s162 = sphi 0, %s146
      %s166 = sphi 0, %s166
      %s168 = sphi 0, %s166
      %s169 = sphi 0, %s168
      %s183 = sphi 0, %s169
      %s187 = sphi 0, %s187
      %s189 = sphi 0, %s187
      %s190 = sphi 0, %s189
      %s204 = sphi 0, %s190
      %s208 = sphi 0, %s208
      %s210 = sphi 0, %s208
      %s211 = sphi 0, %s210
      %s225 = sphi 0, %s211
      %s229 = sphi 0, %s229
      %s231 = sphi 0, %s229
      %s232 = sphi 0, %s231
      %s246 = sphi 0, %s232
      %s250 = sphi 0, %s250
      %s252 = sphi 0, %s250
      %s253 = sphi 0, %s252
      %s267 = sphi 0, %s253
      %s271 = sphi 0, %s271
      %s273 = sphi 0, %s271
      %s274 = sphi 0, %s273
      %s288 = sphi 0, %s274
      %s292 = sphi 0, %s292
      %s294 = sphi 0, %s292
      %s295 = sphi 0, %s294
      %s309 = sphi 0, %s295
      %s313 = sphi 0, %s313
      %s315 = sphi 0, %s313
      %s316 = sphi 0, %s315
      %s330 = sphi 0, %s316
      %s334 = sphi 0, %s334
      %s336 = sphi 0, %s334
      %s337 = sphi 0, %s336
      %s351 = sphi 0, %s337
      %s355 = sphi 0, %s355
      %s357 = sphi 0, %s355
      %s358 = sphi 0, %s357
      %s372 = sphi 0, %s358
      %s376 = sphi 0, %s376
      %s378 = sphi 0, %s376
      %s379 = sphi 0, %s378
      %s393 = sphi 0, %s379
      %s397 = sphi 0, %s397
      %s399 = sphi 0, %s397
      %s400 = sphi 0, %s399
      %s414 = sphi 0, %s400
      %s418 = sphi 0, %s418
      %s420 = sphi 0, %s418
      %s421 = sphi 0, %s420
      %s435 = sphi 0, %s421
      %s439 = sphi 0, %s439
      %s441 = sphi 0, %s439
      %s442 = sphi 0, %s441
      %s456 = sphi 0, %s442
      %s462 = sphi 0, %s464
      %s465 = sphi 0, %s462
      %s466 = sphi 0, %s465
      %s482 = sphi 0, %s466
    $region4: #{encoder_block_forward.1} parent=1 // loop_header_branch
      %31 = sbr.rel (%p29) target = $region8
    $region5: #{encoder_block_forward.1} parent=1 // loop_body
      %s33 = ssub.s32 %s28, 1
      %s34 = ssub.s32 %s28, 2
      %s35 = sadd.s32 %s28, 1
      %s36 = ssub.s32 %s28, %s35
      %p37 = scmp.eq.s32.totalorder %s36, 0
      %s39 = sadd.s32 %s38, 1
      %s40 = scalar_select %p37, %s38, %s39
      %p43 = pneg %p37
      %p44 = scmp.eq.s32.totalorder %s28, 1
      %p45 = por %p43, %p44
      %p46 = scmp.ne.s32.totalorder %s38, %s41
      %p47 = scmp.eq.s32.totalorder %s28, 0
      %p48 = por %p46, %p47
      %p49 = scmp.ne.s32.totalorder %s38, %s41
      %p50 = scmp.eq.s32.totalorder %s33, 1
      %p51 = por %p49, %p50
      %p52 = scmp.ne.s32.totalorder %s41, %s42
      %p53 = scmp.eq.s32.totalorder %s33, 0
      %p54 = por %p52, %p53
      %p55 = scmp.ne.s32.totalorder %s41, %s42
      %p56 = scmp.eq.s32.totalorder %s34, 1
      %p57 = por %p55, %p56
      %p59 = scmp.ne.s32.totalorder %s42, %s58
      %p60 = scmp.eq.s32.totalorder %s34, 0
      %p61 = por %p59, %p60
      %s62 = ssub.s32 %s28, %s35
      %p63 = scmp.eq.s32.totalorder %s62, 0
      %s65 = sadd.s32 %s64, 1
      %s66 = scalar_select %p63, %s64, %s65
      %p69 = pneg %p63
      %p70 = scmp.eq.s32.totalorder %s28, 1
      %p71 = por %p69, %p70
      %p72 = scmp.ne.s32.totalorder %s64, %s67
      %p73 = scmp.eq.s32.totalorder %s28, 0
      %p74 = por %p72, %p73
      %p75 = scmp.ne.s32.totalorder %s64, %s67
      %p76 = scmp.eq.s32.totalorder %s33, 1
      %p77 = por %p75, %p76
      %p78 = scmp.ne.s32.totalorder %s67, %s68
      %p79 = scmp.eq.s32.totalorder %s33, 0
      %p80 = por %p78, %p79
      %p81 = scmp.ne.s32.totalorder %s67, %s68
      %p82 = scmp.eq.s32.totalorder %s34, 1
      %p83 = por %p81, %p82
      %p85 = scmp.ne.s32.totalorder %s68, %s84
      %p86 = scmp.eq.s32.totalorder %s34, 0
      %p87 = por %p85, %p86
      %s88 = ssub.s32 %s28, %s35
      %p89 = scmp.eq.s32.totalorder %s88, 0
      %s91 = sadd.s32 %s90, 1
      %s92 = scalar_select %p89, %s90, %s91
      %p95 = pneg %p89
      %p96 = scmp.eq.s32.totalorder %s28, 1
      %p97 = por %p95, %p96
      %p98 = scmp.ne.s32.totalorder %s90, %s93
      %p99 = scmp.eq.s32.totalorder %s28, 0
      %p100 = por %p98, %p99
      %p101 = scmp.ne.s32.totalorder %s90, %s93
      %p102 = scmp.eq.s32.totalorder %s33, 1
      %p103 = por %p101, %p102
      %p104 = scmp.ne.s32.totalorder %s93, %s94
      %p105 = scmp.eq.s32.totalorder %s33, 0
      %p106 = por %p104, %p105
      %p107 = scmp.ne.s32.totalorder %s93, %s94
      %p108 = scmp.eq.s32.totalorder %s34, 1
      %p109 = por %p107, %p108
      %p111 = scmp.ne.s32.totalorder %s94, %s110
      %p112 = scmp.eq.s32.totalorder %s34, 0
      %p113 = por %p111, %p112
      %s114 = ssub.s32 %s28, %s35
      %p115 = scmp.eq.s32.totalorder %s114, 0
      %s117 = sadd.s32 %s116, 1
      %s118 = scalar_select %p115, %s116, %s117
      %p121 = pneg %p115
      %p122 = scmp.eq.s32.totalorder %s28, 1
      %p123 = por %p121, %p122
      %p124 = scmp.ne.s32.totalorder %s116, %s119
      %p125 = scmp.eq.s32.totalorder %s28, 0
      %p126 = por %p124, %p125
      %p127 = scmp.ne.s32.totalorder %s116, %s119
      %p128 = scmp.eq.s32.totalorder %s33, 1
      %p129 = por %p127, %p128
      %p130 = scmp.ne.s32.totalorder %s119, %s120
      %p131 = scmp.eq.s32.totalorder %s33, 0
      %p132 = por %p130, %p131
      %p133 = scmp.ne.s32.totalorder %s119, %s120
      %p134 = scmp.eq.s32.totalorder %s34, 1
      %p135 = por %p133, %p134
      %p137 = scmp.ne.s32.totalorder %s120, %s136
      %p138 = scmp.eq.s32.totalorder %s34, 0
      %p139 = por %p137, %p138
      %s140 = ssub.s32 %s28, %s35
      %p141 = scmp.eq.s32.totalorder %s140, 0
      %s143 = sadd.s32 %s142, 1
      %s144 = scalar_select %p141, %s142, %s143
      %p147 = pneg %p141
      %p148 = scmp.eq.s32.totalorder %s28, 1
      %p149 = por %p147, %p148
      %p150 = scmp.ne.s32.totalorder %s142, %s145
      %p151 = scmp.eq.s32.totalorder %s28, 0
      %p152 = por %p150, %p151
      %p153 = scmp.ne.s32.totalorder %s142, %s145
      %p154 = scmp.eq.s32.totalorder %s33, 1
      %p155 = por %p153, %p154
      %p156 = scmp.ne.s32.totalorder %s145, %s146
      %p157 = scmp.eq.s32.totalorder %s33, 0
      %p158 = por %p156, %p157
      %p159 = scmp.ne.s32.totalorder %s145, %s146
      %p160 = scmp.eq.s32.totalorder %s34, 1
      %p161 = por %p159, %p160
      %p163 = scmp.ne.s32.totalorder %s146, %s162
      %p164 = scmp.eq.s32.totalorder %s34, 0
      %p165 = por %p163, %p164
      %s167 = sadd.s32 %s166, 1
      %p170 = scmp.eq.s32.totalorder %s28, 1
      %p171 = scmp.ne.s32.totalorder %s166, %s168
      %p172 = scmp.eq.s32.totalorder %s28, 0
      %p173 = por %p171, %p172
      %p174 = scmp.ne.s32.totalorder %s166, %s168
      %p175 = scmp.eq.s32.totalorder %s33, 1
      %p176 = por %p174, %p175
      %p177 = scmp.ne.s32.totalorder %s168, %s169
      %p178 = scmp.eq.s32.totalorder %s33, 0
      %p179 = por %p177, %p178
      %p180 = scmp.ne.s32.totalorder %s168, %s169
      %p181 = scmp.eq.s32.totalorder %s34, 1
      %p182 = por %p180, %p181
      %p184 = scmp.ne.s32.totalorder %s169, %s183
      %p185 = scmp.eq.s32.totalorder %s34, 0
      %p186 = por %p184, %p185
      %s188 = sadd.s32 %s187, 1
      %p191 = scmp.eq.s32.totalorder %s28, 1
      %p192 = scmp.ne.s32.totalorder %s187, %s189
      %p193 = scmp.eq.s32.totalorder %s28, 0
      %p194 = por %p192, %p193
      %p195 = scmp.ne.s32.totalorder %s187, %s189
      %p196 = scmp.eq.s32.totalorder %s33, 1
      %p197 = por %p195, %p196
      %p198 = scmp.ne.s32.totalorder %s189, %s190
      %p199 = scmp.eq.s32.totalorder %s33, 0
      %p200 = por %p198, %p199
      %p201 = scmp.ne.s32.totalorder %s189, %s190
      %p202 = scmp.eq.s32.totalorder %s34, 1
      %p203 = por %p201, %p202
      %p205 = scmp.ne.s32.totalorder %s190, %s204
      %p206 = scmp.eq.s32.totalorder %s34, 0
      %p207 = por %p205, %p206
      %s209 = sadd.s32 %s208, 1
      %p212 = scmp.eq.s32.totalorder %s28, 1
      %p213 = scmp.ne.s32.totalorder %s208, %s210
      %p214 = scmp.eq.s32.totalorder %s28, 0
      %p215 = por %p213, %p214
      %p216 = scmp.ne.s32.totalorder %s208, %s210
      %p217 = scmp.eq.s32.totalorder %s33, 1
      %p218 = por %p216, %p217
      %p219 = scmp.ne.s32.totalorder %s210, %s211
      %p220 = scmp.eq.s32.totalorder %s33, 0
      %p221 = por %p219, %p220
      %p222 = scmp.ne.s32.totalorder %s210, %s211
      %p223 = scmp.eq.s32.totalorder %s34, 1
      %p224 = por %p222, %p223
      %p226 = scmp.ne.s32.totalorder %s211, %s225
      %p227 = scmp.eq.s32.totalorder %s34, 0
      %p228 = por %p226, %p227
      %s230 = sadd.s32 %s229, 1
      %p233 = scmp.eq.s32.totalorder %s28, 1
      %p234 = scmp.ne.s32.totalorder %s229, %s231
      %p235 = scmp.eq.s32.totalorder %s28, 0
      %p236 = por %p234, %p235
      %p237 = scmp.ne.s32.totalorder %s229, %s231
      %p238 = scmp.eq.s32.totalorder %s33, 1
      %p239 = por %p237, %p238
      %p240 = scmp.ne.s32.totalorder %s231, %s232
      %p241 = scmp.eq.s32.totalorder %s33, 0
      %p242 = por %p240, %p241
      %p243 = scmp.ne.s32.totalorder %s231, %s232
      %p244 = scmp.eq.s32.totalorder %s34, 1
      %p245 = por %p243, %p244
      %p247 = scmp.ne.s32.totalorder %s232, %s246
      %p248 = scmp.eq.s32.totalorder %s34, 0
      %p249 = por %p247, %p248
      %s251 = sadd.s32 %s250, 1
      %p254 = scmp.eq.s32.totalorder %s28, 1
      %p255 = scmp.ne.s32.totalorder %s250, %s252
      %p256 = scmp.eq.s32.totalorder %s28, 0
      %p257 = por %p255, %p256
      %p258 = scmp.ne.s32.totalorder %s250, %s252
      %p259 = scmp.eq.s32.totalorder %s33, 1
      %p260 = por %p258, %p259
      %p261 = scmp.ne.s32.totalorder %s252, %s253
      %p262 = scmp.eq.s32.totalorder %s33, 0
      %p263 = por %p261, %p262
      %p264 = scmp.ne.s32.totalorder %s252, %s253
      %p265 = scmp.eq.s32.totalorder %s34, 1
      %p266 = por %p264, %p265
      %p268 = scmp.ne.s32.totalorder %s253, %s267
      %p269 = scmp.eq.s32.totalorder %s34, 0
      %p270 = por %p268, %p269
      %s272 = sadd.s32 %s271, 1
      %p275 = scmp.eq.s32.totalorder %s28, 1
      %p276 = scmp.ne.s32.totalorder %s271, %s273
      %p277 = scmp.eq.s32.totalorder %s28, 0
      %p278 = por %p276, %p277
      %p279 = scmp.ne.s32.totalorder %s271, %s273
      %p280 = scmp.eq.s32.totalorder %s33, 1
      %p281 = por %p279, %p280
      %p282 = scmp.ne.s32.totalorder %s273, %s274
      %p283 = scmp.eq.s32.totalorder %s33, 0
      %p284 = por %p282, %p283
      %p285 = scmp.ne.s32.totalorder %s273, %s274
      %p286 = scmp.eq.s32.totalorder %s34, 1
      %p287 = por %p285, %p286
      %p289 = scmp.ne.s32.totalorder %s274, %s288
      %p290 = scmp.eq.s32.totalorder %s34, 0
      %p291 = por %p289, %p290
      %s293 = sadd.s32 %s292, 1
      %p296 = scmp.eq.s32.totalorder %s28, 1
      %p297 = scmp.ne.s32.totalorder %s292, %s294
      %p298 = scmp.eq.s32.totalorder %s28, 0
      %p299 = por %p297, %p298
      %p300 = scmp.ne.s32.totalorder %s292, %s294
      %p301 = scmp.eq.s32.totalorder %s33, 1
      %p302 = por %p300, %p301
      %p303 = scmp.ne.s32.totalorder %s294, %s295
      %p304 = scmp.eq.s32.totalorder %s33, 0
      %p305 = por %p303, %p304
      %p306 = scmp.ne.s32.totalorder %s294, %s295
      %p307 = scmp.eq.s32.totalorder %s34, 1
      %p308 = por %p306, %p307
      %p310 = scmp.ne.s32.totalorder %s295, %s309
      %p311 = scmp.eq.s32.totalorder %s34, 0
      %p312 = por %p310, %p311
      %s314 = sadd.s32 %s313, 1
      %p317 = scmp.eq.s32.totalorder %s28, 1
      %p318 = scmp.ne.s32.totalorder %s313, %s315
      %p319 = scmp.eq.s32.totalorder %s28, 0
      %p320 = por %p318, %p319
      %p321 = scmp.ne.s32.totalorder %s313, %s315
      %p322 = scmp.eq.s32.totalorder %s33, 1
      %p323 = por %p321, %p322
      %p324 = scmp.ne.s32.totalorder %s315, %s316
      %p325 = scmp.eq.s32.totalorder %s33, 0
      %p326 = por %p324, %p325
      %p327 = scmp.ne.s32.totalorder %s315, %s316
      %p328 = scmp.eq.s32.totalorder %s34, 1
      %p329 = por %p327, %p328
      %p331 = scmp.ne.s32.totalorder %s316, %s330
      %p332 = scmp.eq.s32.totalorder %s34, 0
      %p333 = por %p331, %p332
      %s335 = sadd.s32 %s334, 1
      %p338 = scmp.eq.s32.totalorder %s28, 1
      %p339 = scmp.ne.s32.totalorder %s334, %s336
      %p340 = scmp.eq.s32.totalorder %s28, 0
      %p341 = por %p339, %p340
      %p342 = scmp.ne.s32.totalorder %s334, %s336
      %p343 = scmp.eq.s32.totalorder %s33, 1
      %p344 = por %p342, %p343
      %p345 = scmp.ne.s32.totalorder %s336, %s337
      %p346 = scmp.eq.s32.totalorder %s33, 0
      %p347 = por %p345, %p346
      %p348 = scmp.ne.s32.totalorder %s336, %s337
      %p349 = scmp.eq.s32.totalorder %s34, 1
      %p350 = por %p348, %p349
      %p352 = scmp.ne.s32.totalorder %s337, %s351
      %p353 = scmp.eq.s32.totalorder %s34, 0
      %p354 = por %p352, %p353
      %s356 = sadd.s32 %s355, 1
      %p359 = scmp.eq.s32.totalorder %s28, 1
      %p360 = scmp.ne.s32.totalorder %s355, %s357
      %p361 = scmp.eq.s32.totalorder %s28, 0
      %p362 = por %p360, %p361
      %p363 = scmp.ne.s32.totalorder %s355, %s357
      %p364 = scmp.eq.s32.totalorder %s33, 1
      %p365 = por %p363, %p364
      %p366 = scmp.ne.s32.totalorder %s357, %s358
      %p367 = scmp.eq.s32.totalorder %s33, 0
      %p368 = por %p366, %p367
      %p369 = scmp.ne.s32.totalorder %s357, %s358
      %p370 = scmp.eq.s32.totalorder %s34, 1
      %p371 = por %p369, %p370
      %p373 = scmp.ne.s32.totalorder %s358, %s372
      %p374 = scmp.eq.s32.totalorder %s34, 0
      %p375 = por %p373, %p374
      %s377 = sadd.s32 %s376, 1
      %p380 = scmp.eq.s32.totalorder %s28, 1
      %p381 = scmp.ne.s32.totalorder %s376, %s378
      %p382 = scmp.eq.s32.totalorder %s28, 0
      %p383 = por %p381, %p382
      %p384 = scmp.ne.s32.totalorder %s376, %s378
      %p385 = scmp.eq.s32.totalorder %s33, 1
      %p386 = por %p384, %p385
      %p387 = scmp.ne.s32.totalorder %s378, %s379
      %p388 = scmp.eq.s32.totalorder %s33, 0
      %p389 = por %p387, %p388
      %p390 = scmp.ne.s32.totalorder %s378, %s379
      %p391 = scmp.eq.s32.totalorder %s34, 1
      %p392 = por %p390, %p391
      %p394 = scmp.ne.s32.totalorder %s379, %s393
      %p395 = scmp.eq.s32.totalorder %s34, 0
      %p396 = por %p394, %p395
      %s398 = sadd.s32 %s397, 1
      %p401 = scmp.eq.s32.totalorder %s28, 1
      %p402 = scmp.ne.s32.totalorder %s397, %s399
      %p403 = scmp.eq.s32.totalorder %s28, 0
      %p404 = por %p402, %p403
      %p405 = scmp.ne.s32.totalorder %s397, %s399
      %p406 = scmp.eq.s32.totalorder %s33, 1
      %p407 = por %p405, %p406
      %p408 = scmp.ne.s32.totalorder %s399, %s400
      %p409 = scmp.eq.s32.totalorder %s33, 0
      %p410 = por %p408, %p409
      %p411 = scmp.ne.s32.totalorder %s399, %s400
      %p412 = scmp.eq.s32.totalorder %s34, 1
      %p413 = por %p411, %p412
      %p415 = scmp.ne.s32.totalorder %s400, %s414
      %p416 = scmp.eq.s32.totalorder %s34, 0
      %p417 = por %p415, %p416
      %s419 = sadd.s32 %s418, 1
      %p422 = scmp.eq.s32.totalorder %s28, 1
      %p423 = scmp.ne.s32.totalorder %s418, %s420
      %p424 = scmp.eq.s32.totalorder %s28, 0
      %p425 = por %p423, %p424
      %p426 = scmp.ne.s32.totalorder %s418, %s420
      %p427 = scmp.eq.s32.totalorder %s33, 1
      %p428 = por %p426, %p427
      %p429 = scmp.ne.s32.totalorder %s420, %s421
      %p430 = scmp.eq.s32.totalorder %s33, 0
      %p431 = por %p429, %p430
      %p432 = scmp.ne.s32.totalorder %s420, %s421
      %p433 = scmp.eq.s32.totalorder %s34, 1
      %p434 = por %p432, %p433
      %p436 = scmp.ne.s32.totalorder %s421, %s435
      %p437 = scmp.eq.s32.totalorder %s34, 0
      %p438 = por %p436, %p437
      %s440 = sadd.s32 %s439, 1
      %p443 = scmp.eq.s32.totalorder %s28, 1
      %p444 = scmp.ne.s32.totalorder %s439, %s441
      %p445 = scmp.eq.s32.totalorder %s28, 0
      %p446 = por %p444, %p445
      %p447 = scmp.ne.s32.totalorder %s439, %s441
      %p448 = scmp.eq.s32.totalorder %s33, 1
      %p449 = por %p447, %p448
      %p450 = scmp.ne.s32.totalorder %s441, %s442
      %p451 = scmp.eq.s32.totalorder %s33, 0
      %p452 = por %p450, %p451
      %p453 = scmp.ne.s32.totalorder %s441, %s442
      %p454 = scmp.eq.s32.totalorder %s34, 1
      %p455 = por %p453, %p454
      %p457 = scmp.ne.s32.totalorder %s442, %s456
      %p458 = scmp.eq.s32.totalorder %s34, 0
      %p459 = por %p457, %p458
      %s460 = ssub.s32 %s28, %s35
      %p461 = scmp.eq.s32.totalorder %s460, 0
      %s463 = sadd.s32 %s462, 1
      %s464 = scalar_select %p461, %s462, %s463
      %p467 = pneg %p461
      %p468 = scmp.eq.s32.totalorder %s28, 1
      %p469 = por %p467, %p468
      %p470 = scmp.ne.s32.totalorder %s462, %s465
      %p471 = scmp.eq.s32.totalorder %s28, 0
      %p472 = por %p470, %p471
      %p473 = scmp.ne.s32.totalorder %s462, %s465
      %p474 = scmp.eq.s32.totalorder %s33, 1
      %p475 = por %p473, %p474
      %p476 = scmp.ne.s32.totalorder %s465, %s466
      %p477 = scmp.eq.s32.totalorder %s33, 0
      %p478 = por %p476, %p477
      %p479 = scmp.ne.s32.totalorder %s465, %s466
      %p480 = scmp.eq.s32.totalorder %s34, 1
      %p481 = por %p479, %p480
      %p483 = scmp.ne.s32.totalorder %s466, %s482
      %p484 = scmp.eq.s32.totalorder %s34, 0
      %p485 = por %p483, %p484
      %p486 = scmp.le.s32.totalorder 1, %s28
      %p487 = scmp.lt.s32.totalorder %s28, 3
      %p488 = pnand %p486, %p487
      %p489 = pneg %p488
      // Predicated region
      $region9: #{encoder_block_forward.1} parent=5 // pred_check
        _
      $region10: #{encoder_block_forward.1} parent=5 // pred_check_branch
        %491 = sbr.rel (%p488) target = $region12
      $region11: #{encoder_block_forward.1} parent=5 // pred_region
        %s492 = ssub.s32 %s28, 1
        // Predicated region
        $region13: #{encoder_block_forward.1} parent=11 // pred_check
          %p493 = pneg %p179
        $region14: #{encoder_block_forward.1} parent=11 // pred_check_branch
          %495 = sbr.rel (%p493) target = $region16
        $region15: #{encoder_block_forward.1} parent=11 // pred_region
          _
        $region16: #{encoder_block_forward.1} parent=11 // pred_fallthru
          _
        // Predicated region
        $region17: #{encoder_block_forward.1} parent=11 // pred_check
          %p496 = pneg %p200
        $region18: #{encoder_block_forward.1} parent=11 // pred_check_branch
          %498 = sbr.rel (%p496) target = $region20
        $region19: #{encoder_block_forward.1} parent=11 // pred_region
          _
        $region20: #{encoder_block_forward.1} parent=11 // pred_fallthru
          _
        // Predicated region
        $region21: #{encoder_block_forward.1} parent=11 // pred_check
          %p499 = pneg %p221
        $region22: #{encoder_block_forward.1} parent=11 // pred_check_branch
          %501 = sbr.rel (%p499) target = $region24
        $region23: #{encoder_block_forward.1} parent=11 // pred_region
          _
        $region24: #{encoder_block_forward.1} parent=11 // pred_fallthru
          _
        // Predicated region
        $region25: #{encoder_block_forward.1} parent=11 // pred_check
          %p502 = pneg %p242
        $region26: #{encoder_block_forward.1} parent=11 // pred_check_branch
          %504 = sbr.rel (%p502) target = $region28
        $region27: #{encoder_block_forward.1} parent=11 // pred_region
          _
        $region28: #{encoder_block_forward.1} parent=11 // pred_fallthru
          _
        // Predicated region
        $region29: #{encoder_block_forward.1} parent=11 // pred_check
          %p505 = pneg %p263
        $region30: #{encoder_block_forward.1} parent=11 // pred_check_branch
          %507 = sbr.rel (%p505) target = $region32
        $region31: #{encoder_block_forward.1} parent=11 // pred_region
          _
        $region32: #{encoder_block_forward.1} parent=11 // pred_fallthru
          _
        // Predicated region
        $region33: #{encoder_block_forward.1} parent=11 // pred_check
          %p508 = pneg %p284
        $region34: #{encoder_block_forward.1} parent=11 // pred_check_branch
          %510 = sbr.rel (%p508) target = $region36
        $region35: #{encoder_block_forward.1} parent=11 // pred_region
          _
        $region36: #{encoder_block_forward.1} parent=11 // pred_fallthru
          _
        // Predicated region
        $region37: #{encoder_block_forward.1} parent=11 // pred_check
          %p511 = pneg %p305
        $region38: #{encoder_block_forward.1} parent=11 // pred_check_branch
          %513 = sbr.rel (%p511) target = $region40
        $region39: #{encoder_block_forward.1} parent=11 // pred_region
          _
        $region40: #{encoder_block_forward.1} parent=11 // pred_fallthru
          _
        // Predicated region
        $region41: #{encoder_block_forward.1} parent=11 // pred_check
          %p514 = pneg %p326
        $region42: #{encoder_block_forward.1} parent=11 // pred_check_branch
          %516 = sbr.rel (%p514) target = $region44
        $region43: #{encoder_block_forward.1} parent=11 // pred_region
          _
        $region44: #{encoder_block_forward.1} parent=11 // pred_fallthru
          _
        // Predicated region
        $region45: #{encoder_block_forward.1} parent=11 // pred_check
          %p517 = pneg %p347
        $region46: #{encoder_block_forward.1} parent=11 // pred_check_branch
          %519 = sbr.rel (%p517) target = $region48
        $region47: #{encoder_block_forward.1} parent=11 // pred_region
          _
        $region48: #{encoder_block_forward.1} parent=11 // pred_fallthru
          _
        // Predicated region
        $region49: #{encoder_block_forward.1} parent=11 // pred_check
          %p520 = pneg %p368
        $region50: #{encoder_block_forward.1} parent=11 // pred_check_branch
          %522 = sbr.rel (%p520) target = $region52
        $region51: #{encoder_block_forward.1} parent=11 // pred_region
          _
        $region52: #{encoder_block_forward.1} parent=11 // pred_fallthru
          _
        // Predicated region
        $region53: #{encoder_block_forward.1} parent=11 // pred_check
          %p523 = pneg %p389
        $region54: #{encoder_block_forward.1} parent=11 // pred_check_branch
          %525 = sbr.rel (%p523) target = $region56
        $region55: #{encoder_block_forward.1} parent=11 // pred_region
          _
        $region56: #{encoder_block_forward.1} parent=11 // pred_fallthru
          _
        // Predicated region
        $region57: #{encoder_block_forward.1} parent=11 // pred_check
          %p526 = pneg %p410
        $region58: #{encoder_block_forward.1} parent=11 // pred_check_branch
          %528 = sbr.rel (%p526) target = $region60
        $region59: #{encoder_block_forward.1} parent=11 // pred_region
          _
        $region60: #{encoder_block_forward.1} parent=11 // pred_fallthru
          _
        // Predicated region
        $region61: #{encoder_block_forward.1} parent=11 // pred_check
          %p529 = pneg %p431
        $region62: #{encoder_block_forward.1} parent=11 // pred_check_branch
          %531 = sbr.rel (%p529) target = $region64
        $region63: #{encoder_block_forward.1} parent=11 // pred_region
          _
        $region64: #{encoder_block_forward.1} parent=11 // pred_fallthru
          _
        // Predicated region
        $region65: #{encoder_block_forward.1} parent=11 // pred_check
          %p532 = pneg %p452
        $region66: #{encoder_block_forward.1} parent=11 // pred_check_branch
          %534 = sbr.rel (%p532) target = $region68
        $region67: #{encoder_block_forward.1} parent=11 // pred_region
          _
        $region68: #{encoder_block_forward.1} parent=11 // pred_fallthru
          _
      $region12: #{encoder_block_forward.1} parent=5 // pred_fallthru
        _
      %p535 = scmp.lt.s32.totalorder %s28, 2
      // Predicated region
      $region69: #{encoder_block_forward.1} parent=5 // pred_check
        %p536 = pneg %p535
      $region70: #{encoder_block_forward.1} parent=5 // pred_check_branch
        %538 = sbr.rel (%p536) target = $region72
      $region71: #{encoder_block_forward.1} parent=5 // pred_region
        // Predicated region
        $region73: #{encoder_block_forward.1} parent=71 // pred_check
          %p539 = pneg %p48
        $region74: #{encoder_block_forward.1} parent=71 // pred_check_branch
          %541 = sbr.rel (%p539) target = $region76
        $region75: #{encoder_block_forward.1} parent=71 // pred_region
          %p542 = scmp.lt.s32.totalorder %s28, 1
          %s543 = scalar_select %p542, %s28, 1
          %s544 = smul.addr %s543, 8
          %s545 = scalar_lea.vmem %s0, %s544
        $region76: #{encoder_block_forward.1} parent=71 // pred_fallthru
          _
        // Predicated region
        $region77: #{encoder_block_forward.1} parent=71 // pred_check
          %p546 = pneg %p74
        $region78: #{encoder_block_forward.1} parent=71 // pred_check_branch
          %548 = sbr.rel (%p546) target = $region80
        $region79: #{encoder_block_forward.1} parent=71 // pred_region
          %p549 = scmp.lt.s32.totalorder %s28, 1
          %s550 = scalar_select %p549, %s28, 1
          %s551 = smul.addr %s550, 4
          %s552 = scalar_lea.vmem %s1, %s551
        $region80: #{encoder_block_forward.1} parent=71 // pred_fallthru
          _
        // Predicated region
        $region81: #{encoder_block_forward.1} parent=71 // pred_check
          %p553 = pneg %p100
        $region82: #{encoder_block_forward.1} parent=71 // pred_check_branch
          %555 = sbr.rel (%p553) target = $region84
        $region83: #{encoder_block_forward.1} parent=71 // pred_region
          %p556 = scmp.lt.s32.totalorder %s28, 1
          %s557 = scalar_select %p556, %s28, 1
          %s558 = smul.addr %s557, 2
          %s559 = scalar_lea.vmem %s2, %s558
        $region84: #{encoder_block_forward.1} parent=71 // pred_fallthru
          _
        // Predicated region
        $region85: #{encoder_block_forward.1} parent=71 // pred_check
          %p560 = pneg %p126
        $region86: #{encoder_block_forward.1} parent=71 // pred_check_branch
          %562 = sbr.rel (%p560) target = $region88
        $region87: #{encoder_block_forward.1} parent=71 // pred_region
          %p563 = scmp.lt.s32.totalorder %s28, 1
          %s564 = scalar_select %p563, %s28, 1
          %s565 = scalar_lea.vmem %s3, %s564
        $region88: #{encoder_block_forward.1} parent=71 // pred_fallthru
          _
        // Predicated region
        $region89: #{encoder_block_forward.1} parent=71 // pred_check
          %p566 = pneg %p152
        $region90: #{encoder_block_forward.1} parent=71 // pred_check_branch
          %568 = sbr.rel (%p566) target = $region92
        $region91: #{encoder_block_forward.1} parent=71 // pred_region
          %p569 = scmp.lt.s32.totalorder %s28, 1
          %s570 = scalar_select %p569, %s28, 1
          %s571 = scalar_lea.vmem %s4, %s570
        $region92: #{encoder_block_forward.1} parent=71 // pred_fallthru
          _
      $region72: #{encoder_block_forward.1} parent=5 // pred_fallthru
        _
      %p572 = scmp.le.s32.totalorder 1, %s28
      %p573 = scmp.lt.s32.totalorder %s28, 3
      %p574 = pnand %p572, %p573
      %p575 = pneg %p574
      // Predicated region
      $region93: #{encoder_block_forward.1} parent=5 // pred_check
        _
      $region94: #{encoder_block_forward.1} parent=5 // pred_check_branch
        %577 = sbr.rel (%p574) target = $region96
      $region95: #{encoder_block_forward.1} parent=5 // pred_region
        %s578 = ssub.s32 %s28, 1
        %p579 = scmp.lt.s32.totalorder %s33, 1
        %s580 = scalar_select %p579, %s33, 1
        %s581 = smul.addr %s580, 8
        %s582 = scalar_lea.vmem %s0, %s581
        %p583 = pneg %p54
        %p584 = pneg %p51
        %p585 = scmp.lt.s32.totalorder %s33, 1
        %s586 = scalar_select %p585, %s33, 1
        %s587 = smul.addr %s586, 4
        %s588 = scalar_lea.vmem %s1, %s587
        %p589 = pneg %p80
        %p590 = pneg %p77
        %p591 = scmp.lt.s32.totalorder %s33, 1
        %s592 = scalar_select %p591, %s33, 1
        %s593 = smul.addr %s592, 2
        %s594 = scalar_lea.vmem %s2, %s593
        %p595 = pneg %p106
        %p596 = pneg %p103
        %p597 = scmp.lt.s32.totalorder %s33, 1
        %s598 = scalar_select %p597, %s33, 1
        %s599 = scalar_lea.vmem %s3, %s598
        %p600 = pneg %p132
        %p601 = pneg %p129
        %p602 = scmp.lt.s32.totalorder %s33, 1
        %s603 = scalar_select %p602, %s33, 1
        %s604 = scalar_lea.vmem %s4, %s603
        %p605 = pneg %p158
        %p606 = pneg %p155
        %p607 = pneg %p179
        %p608 = pneg %p176
        %p609 = pneg %p200
        %p610 = pneg %p197
        %p611 = pneg %p221
        %p612 = pneg %p218
        %p613 = pneg %p242
        %p614 = pneg %p239
        %p615 = pneg %p263
        %p616 = pneg %p260
        %p617 = pneg %p284
        %p618 = pneg %p281
        %p619 = pneg %p305
        %p620 = pneg %p302
        %p621 = pneg %p326
        %p622 = pneg %p323
        %p623 = pneg %p347
        %p624 = pneg %p344
        %p625 = pneg %p368
        %p626 = pneg %p365
        %p627 = pneg %p389
        %p628 = pneg %p386
        %p629 = pneg %p410
        %p630 = pneg %p407
        %p631 = pneg %p431
        %p632 = pneg %p428
        %p633 = pneg %p452
        %p634 = pneg %p449
        %p635 = pneg %p478
        %p636 = pneg %p475
        %s637 = sand.u32 %s465, 1
        %s638 = scalar_lea.sflag [#allocation3], %s637
        %s639 = sand.u32 %s465, 1
        %s640 = smul.addr %s639, 8
        %s641 = scalar_lea.vmem [#allocation2], %s640
        %p642 = scmp.lt.s32.totalorder %s33, 1
        %s643 = scalar_select %p642, %s33, 1
        %s644 = smul.addr %s643, 8
        %s645 = scalar_lea.vmem %s0, %s644
        %p646 = scmp.lt.s32.totalorder %s33, 1
        %s647 = scalar_select %p646, %s33, 1
        %s648 = smul.addr %s647, 4
        %s649 = scalar_lea.vmem %s1, %s648
        %p650 = scmp.lt.s32.totalorder %s33, 1
        %s651 = scalar_select %p650, %s33, 1
        %s652 = smul.addr %s651, 2
        %s653 = scalar_lea.vmem %s2, %s652
        %p654 = scmp.lt.s32.totalorder %s33, 1
        %s655 = scalar_select %p654, %s33, 1
        %s656 = scalar_lea.vmem %s3, %s655
        %p657 = scmp.lt.s32.totalorder %s33, 1
        %s658 = scalar_select %p657, %s33, 1
        %s659 = scalar_lea.vmem %s4, %s658
        %v661 = vld [vmem:[%s645] sm:$0xff]
        %v662 = vld [vmem:[%s649] sm:$0xf]
        %v663 = vld [vmem:[%s653] sm:$0x3]
        %v664 = vld [vmem:[%s656] sm:$0x1]
        %v665 = vld [vmem:[%s659] sm:$0x1]
        %v666 = vld [vmem:[%s17] sm:$0x1]
        %v667 = vld [vmem:[%s18] sm:$0x1]
        %vm668 = vcmask 261120
        %v669 = vsel %vm668, %v661, 0.0
        %670 = vadd.xlane.f32.xlu0 %v669
        %v671 = vpop.xlane.xlu0 %670
        %v672 = vrcp.pop 32.0
        %v673 = vmul.f32 32.0, %v672
        %v674 = vsub.f32 1.0, %v673
        %v675 = vmul.f32 %v672, %v674
        %v676 = vadd.f32 %v672, %v675
        %vm677 = vweird.f32 %v672
        %v678 = vsel %vm677, %v672, %v676
        %v679 = vmul.f32 %v671, %v678
        %v680 = vsub.f32 %v661, %v679
        %v681 = vmul.f32 %v680, %v680
        %v682 = vsel %vm668, %v681, 0.0
        %683 = vadd.xlane.f32.xlu0 %v682
        %v684 = vpop.xlane.xlu0 %683
        %v685 = vrcp.pop 31.0
        %v686 = vmul.f32 31.0, %v685
        %v687 = vsub.f32 1.0, %v686
        %v688 = vmul.f32 %v685, %v687
        %v689 = vadd.f32 %v685, %v688
        %vm690 = vweird.f32 %v685
        %v691 = vsel %vm690, %v685, %v689
        %v692 = vmul.f32 %v684, %v691
        %v693 = vrsqrt.pop %v692
        %v694 = vmul.f32 %v693, %v692
        %v695 = vmul.f32 %v694, %v693
        %v696 = vmul.f32 0.5, %v695
        %v697 = vsub.f32 1.5, %v696
        %v698 = vmul.f32 %v693, %v697
        %v699 = vmul.f32 %v692, %v698
        %vm700 = vcmp.eq.f32.partialorder %v692, inf
        %v701 = vsel %vm700, %v692, %v699
        %vm702 = vcmp.eq.f32.partialorder %v692, 0.0
        %v703 = vand.u32 %v692, 2147483648
        %v704 = vsel %vm702, %v703, %v701
        %v705 = vadd.f32 %v704, 1e-06
        %v706 = vrcp.pop %v705
        %v707 = vmul.f32 %v705, %v706
        %v708 = vsub.f32 1.0, %v707
        %v709 = vmul.f32 %v706, %v708
        %v710 = vadd.f32 %v706, %v709
        %vm711 = vweird.f32 %v705
        %vm712 = vweird.f32 %v706
        %vm713 = vmor %vm711, %vm712
        %v714 = vsel %vm713, %v706, %v710
        %v715 = vand.u32 2147483647, %v705
        %vm716 = vcmp.eq.f32.partialorder %v715, 8.507059e+37
        %v717 = vand.u32 %v705, 2147483648
        %v718 = vor.u32 1.1754944e-38, %v717
        %v719 = vsel %vm716, %v718, %v714
        %v720 = vmul.f32 1.0, %v719
        %v721 = vmul.f32 %v680, %v720
        %v722 = vperm.slane %v666, 0
        %v723 = vmul.f32 %v721, %v722
        %v724 = vperm.slane %v667, 0
        %v725 = vadd.f32 %v723, %v724
        %v726 = vpack.c.bf16 %v725, %v725
        %v727 = vld [vmem:[%s5] sm:$0xf]
        %v728 = vld [vmem:[%s5 + $0x4] sm:$0xf]
        %v729 = vld [vmem:[%s5 + $0x8] sm:$0xf]
        %v730 = vld [vmem:[%s5 + $0xc] sm:$0xf]
        %v735 = vunpack.c.l.b16 %v727
        %v736 = vunpack.c.l.b16 %v728
        %v737 = vunpack.c.l.b16 %v729
        %v738 = vunpack.c.l.b16 %v730
        %v739 = vpack.c.b16 %v736, %v735
        %v740 = vpack.c.b16 %v738, %v737
        %v744 = vsel %vm668, %v726, 0
        %746 = vmatpush.bf16.msra.mxu0 0
        %747 = vmatpush.bf16.msra.mxu0 0
        %748 = vmatpush.bf16.msra.mxu0 0
        %749 = vmatpush.bf16.msra.mxu0 0
        %750 = vmatpush.bf16.msra.mxu0 0
        %751 = vmatpush.bf16.msra.mxu0 0
        %752 = vmatpush.bf16.msra.mxu0 %v740
        %753 = vmatpush.bf16.msra.mxu0 %v739
        %754 = vmatmul.bf16.gmra.mxu0 %v744
        %v755 = vpop.f32.mrf.mxu0
        %v756 = vadd.f32 0.0, %v755
        %v757 = vpop.f32.mrf.mxu0
        %758 = vdwg.mxu0
        %v759 = vld [vmem:[%s6] sm:$0xf]
        %v760 = vld [vmem:[%s6 + $0x4] sm:$0xf]
        %v761 = vld [vmem:[%s6 + $0x8] sm:$0xf]
        %v762 = vld [vmem:[%s6 + $0xc] sm:$0xf]
        %v767 = vunpack.c.l.b16 %v759
        %v768 = vunpack.c.l.b16 %v760
        %v769 = vunpack.c.l.b16 %v761
        %v770 = vunpack.c.l.b16 %v762
        %v771 = vpack.c.b16 %v768, %v767
        %v772 = vpack.c.b16 %v770, %v769
        %775 = vmatpush.bf16.msra.mxu0 0
        %776 = vmatpush.bf16.msra.mxu0 0
        %777 = vmatpush.bf16.msra.mxu0 0
        %778 = vmatpush.bf16.msra.mxu0 0
        %779 = vmatpush.bf16.msra.mxu0 0
        %780 = vmatpush.bf16.msra.mxu0 0
        %781 = vmatpush.bf16.msra.mxu0 %v772
        %782 = vmatpush.bf16.msra.mxu0 %v771
        %783 = vmatmul.bf16.gmra.mxu0 %v744
        %v784 = vpop.f32.mrf.mxu0
        %v785 = vadd.f32 0.0, %v784
        %v786 = vpop.f32.mrf.mxu0
        %787 = vdwg.mxu0
        %v788 = vld [vmem:[%s7] sm:$0xf]
        %v789 = vld [vmem:[%s7 + $0x4] sm:$0xf]
        %v790 = vld [vmem:[%s7 + $0x8] sm:$0xf]
        %v791 = vld [vmem:[%s7 + $0xc] sm:$0xf]
        %v796 = vunpack.c.l.b16 %v788
        %v797 = vunpack.c.l.b16 %v789
        %v798 = vunpack.c.l.b16 %v790
        %v799 = vunpack.c.l.b16 %v791
        %v800 = vpack.c.b16 %v797, %v796
        %v801 = vpack.c.b16 %v799, %v798
        %804 = vmatpush.bf16.msra.mxu0 0
        %805 = vmatpush.bf16.msra.mxu0 0
        %806 = vmatpush.bf16.msra.mxu0 0
        %807 = vmatpush.bf16.msra.mxu0 0
        %808 = vmatpush.bf16.msra.mxu0 0
        %809 = vmatpush.bf16.msra.mxu0 0
        %810 = vmatpush.bf16.msra.mxu0 %v801
        %811 = vmatpush.bf16.msra.mxu0 %v800
        %812 = vmatmul.bf16.gmra.mxu0 %v744
        %v813 = vpop.f32.mrf.mxu0
        %v814 = vadd.f32 0.0, %v813
        %v815 = vpop.f32.mrf.mxu0
        %816 = vdwg.mxu0
        %v817 = vpack.c.bf16 %v756, %v756
        %v818 = vpack.c.bf16 %v785, %v785
        %v819 = vpack.c.bf16 %v814, %v814
        %v821 = vperm.slane %v664, 0
        %vm823 = vcmask 64512
        %v825 = vsel %vm823, %v817, 0
        %v828 = vsel %vm823, %v818, 0
        %830 = vmatpush.bf16.xpose.msra.mxu0 0
        %831 = vmatpush.bf16.xpose.msra.mxu0 0
        %832 = vmatpush.bf16.xpose.msra.mxu0 0
        %833 = vmatpush.bf16.xpose.msra.mxu0 0
        %834 = vmatpush.bf16.xpose.msra.mxu0 0
        %835 = vmatpush.bf16.xpose.msra.mxu0 0
        %836 = vmatpush.bf16.xpose.msra.mxu0 0
        %837 = vmatpush.bf16.xpose.msra.mxu0 %v828
        %838 = vmatmul.bf16.gmra.mxu0 %v825
        %v839 = vpop.f32.mrf.mxu0
        %v840 = vadd.f32 %v821, %v839
        %v841 = vpop.f32.mrf.mxu0
        %842 = vdwg.mxu0
        %v843 = vsel %vm823, %v840, -inf
        %844 = vmax.xlane.f32.xlu0 %v843
        %v845 = vpop.xlane.xlu0 %844
        %v846 = vsub.f32 %v840, %v845
        %v847 = vmul.f32 %v846, 1.442695
        %v848 = vpow.pop %v847
        %v849 = vsel %vm823, %v848, 0.0
        %850 = vadd.xlane.f32.xlu0 %v849
        %v851 = vpop.xlane.xlu0 %850
        %v852 = vrcp.pop %v851
        %v853 = vmul.f32 %v848, %v852
        %v854 = vpack.c.bf16 %v853, %v853
        %v856 = vsel %vm823, %v854, 0
        %vm858 = vcmask 1043456
        %v860 = vsel %vm858, %v819, 0
        %862 = vmatpush.bf16.msra.mxu0 0
        %863 = vmatpush.bf16.msra.mxu0 0
        %864 = vmatpush.bf16.msra.mxu0 0
        %865 = vmatpush.bf16.msra.mxu0 0
        %866 = vmatpush.bf16.msra.mxu0 0
        %867 = vmatpush.bf16.msra.mxu0 0
        %868 = vmatpush.bf16.msra.mxu0 0
        %869 = vmatpush.bf16.msra.mxu0 %v860
        %870 = vmatmul.bf16.gmra.mxu0 %v856
        %v871 = vpop.f32.mrf.mxu0
        %v872 = vadd.f32 0.0, %v871
        %v873 = vpop.f32.mrf.mxu0
        %874 = vdwg.mxu0
        %v876 = vunpack.c.l.b16 %v817
        %v877 = vpack.c.b16 %v876, %v876
        %878 = vrot.lane.b32.xlu0 %v877, 120
        %v879 = vpop.permute.xlu0 %878
        %v881 = vunpack.c.l.b16 %v818
        %v882 = vpack.c.b16 %v881, %v881
        %883 = vrot.lane.b32.xlu0 %v882, 120
        %v884 = vpop.permute.xlu0 %883
        %v886 = vsel %vm823, %v879, 0
        %v889 = vsel %vm823, %v884, 0
        %891 = vmatpush.bf16.xpose.msra.mxu0 0
        %892 = vmatpush.bf16.xpose.msra.mxu0 0
        %893 = vmatpush.bf16.xpose.msra.mxu0 0
        %894 = vmatpush.bf16.xpose.msra.mxu0 0
        %895 = vmatpush.bf16.xpose.msra.mxu0 0
        %896 = vmatpush.bf16.xpose.msra.mxu0 0
        %897 = vmatpush.bf16.xpose.msra.mxu0 0
        %898 = vmatpush.bf16.xpose.msra.mxu0 %v889
        %899 = vmatmul.bf16.gmra.mxu0 %v886
        %v900 = vpop.f32.mrf.mxu0
        %v901 = vadd.f32 %v821, %v900
        %v902 = vpop.f32.mrf.mxu0
        %903 = vdwg.mxu0
        %v904 = vsel %vm823, %v901, -inf
        %905 = vmax.xlane.f32.xlu0 %v904
        %v906 = vpop.xlane.xlu0 %905
        %v907 = vsub.f32 %v901, %v906
        %v908 = vmul.f32 %v907, 1.442695
        %v909 = vpow.pop %v908
        %v910 = vsel %vm823, %v909, 0.0
        %911 = vadd.xlane.f32.xlu0 %v910
        %v912 = vpop.xlane.xlu0 %911
        %v913 = vrcp.pop %v912
        %v914 = vmul.f32 %v909, %v913
        %v915 = vpack.c.bf16 %v914, %v914
        %v917 = vunpack.c.l.b16 %v819
        %v918 = vpack.c.b16 %v917, %v917
        %919 = vrot.lane.b32.xlu0 %v918, 120
        %v920 = vpop.permute.xlu0 %919
        %v922 = vsel %vm823, %v915, 0
        %v925 = vsel %vm858, %v920, 0
        %927 = vmatpush.bf16.msra.mxu0 0
        %928 = vmatpush.bf16.msra.mxu0 0
        %929 = vmatpush.bf16.msra.mxu0 0
        %930 = vmatpush.bf16.msra.mxu0 0
        %931 = vmatpush.bf16.msra.mxu0 0
        %932 = vmatpush.bf16.msra.mxu0 0
        %933 = vmatpush.bf16.msra.mxu0 0
        %934 = vmatpush.bf16.msra.mxu0 %v925
        %935 = vmatmul.bf16.gmra.mxu0 %v922
        %v936 = vpop.f32.mrf.mxu0
        %v937 = vadd.f32 0.0, %v936
        %v938 = vpop.f32.mrf.mxu0
        %939 = vdwg.mxu0
        %940 = vrot.lane.b32.xlu0 %v877, 112
        %v941 = vpop.permute.xlu0 %940
        %942 = vrot.lane.b32.xlu0 %v882, 112
        %v943 = vpop.permute.xlu0 %942
        %v945 = vsel %vm823, %v941, 0
        %v948 = vsel %vm823, %v943, 0
        %950 = vmatpush.bf16.xpose.msra.mxu0 0
        %951 = vmatpush.bf16.xpose.msra.mxu0 0
        %952 = vmatpush.bf16.xpose.msra.mxu0 0
        %953 = vmatpush.bf16.xpose.msra.mxu0 0
        %954 = vmatpush.bf16.xpose.msra.mxu0 0
        %955 = vmatpush.bf16.xpose.msra.mxu0 0
        %956 = vmatpush.bf16.xpose.msra.mxu0 0
        %957 = vmatpush.bf16.xpose.msra.mxu0 %v948
        %958 = vmatmul.bf16.gmra.mxu0 %v945
        %v959 = vpop.f32.mrf.mxu0
        %v960 = vadd.f32 %v821, %v959
        %v961 = vpop.f32.mrf.mxu0
        %962 = vdwg.mxu0
        %v963 = vsel %vm823, %v960, -inf
        %964 = vmax.xlane.f32.xlu0 %v963
        %v965 = vpop.xlane.xlu0 %964
        %v966 = vsub.f32 %v960, %v965
        %v967 = vmul.f32 %v966, 1.442695
        %v968 = vpow.pop %v967
        %v969 = vsel %vm823, %v968, 0.0
        %970 = vadd.xlane.f32.xlu0 %v969
        %v971 = vpop.xlane.xlu0 %970
        %v972 = vrcp.pop %v971
        %v973 = vmul.f32 %v968, %v972
        %v974 = vpack.c.bf16 %v973, %v973
        %975 = vrot.lane.b32.xlu0 %v918, 112
        %v976 = vpop.permute.xlu0 %975
        %v978 = vsel %vm823, %v974, 0
        %v981 = vsel %vm858, %v976, 0
        %983 = vmatpush.bf16.msra.mxu0 0
        %984 = vmatpush.bf16.msra.mxu0 0
        %985 = vmatpush.bf16.msra.mxu0 0
        %986 = vmatpush.bf16.msra.mxu0 0
        %987 = vmatpush.bf16.msra.mxu0 0
        %988 = vmatpush.bf16.msra.mxu0 0
        %989 = vmatpush.bf16.msra.mxu0 0
        %990 = vmatpush.bf16.msra.mxu0 %v981
        %991 = vmatmul.bf16.gmra.mxu0 %v978
        %v992 = vpop.f32.mrf.mxu0
        %v993 = vadd.f32 0.0, %v992
        %v994 = vpop.f32.mrf.mxu0
        %995 = vdwg.mxu0
        %996 = vrot.lane.b32.xlu0 %v877, 104
        %v997 = vpop.permute.xlu0 %996
        %998 = vrot.lane.b32.xlu0 %v882, 104
        %v999 = vpop.permute.xlu0 %998
        %v1001 = vsel %vm823, %v997, 0
        %v1004 = vsel %vm823, %v999, 0
        %1006 = vmatpush.bf16.xpose.msra.mxu0 0
        %1007 = vmatpush.bf16.xpose.msra.mxu0 0
        %1008 = vmatpush.bf16.xpose.msra.mxu0 0
        %1009 = vmatpush.bf16.xpose.msra.mxu0 0
        %1010 = vmatpush.bf16.xpose.msra.mxu0 0
        %1011 = vmatpush.bf16.xpose.msra.mxu0 0
        %1012 = vmatpush.bf16.xpose.msra.mxu0 0
        %1013 = vmatpush.bf16.xpose.msra.mxu0 %v1004
        %1014 = vmatmul.bf16.gmra.mxu0 %v1001
        %v1015 = vpop.f32.mrf.mxu0
        %v1016 = vadd.f32 %v821, %v1015
        %v1017 = vpop.f32.mrf.mxu0
        %1018 = vdwg.mxu0
        %v1019 = vsel %vm823, %v1016, -inf
        %1020 = vmax.xlane.f32.xlu0 %v1019
        %v1021 = vpop.xlane.xlu0 %1020
        %v1022 = vsub.f32 %v1016, %v1021
        %v1023 = vmul.f32 %v1022, 1.442695
        %v1024 = vpow.pop %v1023
        %v1025 = vsel %vm823, %v1024, 0.0
        %1026 = vadd.xlane.f32.xlu0 %v1025
        %v1027 = vpop.xlane.xlu0 %1026
        %v1028 = vrcp.pop %v1027
        %v1029 = vmul.f32 %v1024, %v1028
        %v1030 = vpack.c.bf16 %v1029, %v1029
        %1031 = vrot.lane.b32.xlu0 %v918, 104
        %v1032 = vpop.permute.xlu0 %1031
        %v1034 = vsel %vm823, %v1030, 0
        %v1037 = vsel %vm858, %v1032, 0
        %1039 = vmatpush.bf16.msra.mxu0 0
        %1040 = vmatpush.bf16.msra.mxu0 0
        %1041 = vmatpush.bf16.msra.mxu0 0
        %1042 = vmatpush.bf16.msra.mxu0 0
        %1043 = vmatpush.bf16.msra.mxu0 0
        %1044 = vmatpush.bf16.msra.mxu0 0
        %1045 = vmatpush.bf16.msra.mxu0 0
        %1046 = vmatpush.bf16.msra.mxu0 %v1037
        %1047 = vmatmul.bf16.gmra.mxu0 %v1034
        %v1048 = vpop.f32.mrf.mxu0
        %v1049 = vadd.f32 0.0, %v1048
        %v1050 = vpop.f32.mrf.mxu0
        %1051 = vdwg.mxu0
        %1053 = vrot.lane.b32.xlu0 %v937, 8
        %v1054 = vpop.permute.xlu0 %1053
        %1057 = vrot.lane.b32.xlu0 %v993, 16
        %v1058 = vpop.permute.xlu0 %1057
        %1061 = vrot.lane.b32.xlu0 %v1049, 24
        %v1062 = vpop.permute.xlu0 %1061
        %v1064 = vsel %vm823, %v872, %v1054
        %vm1065 = vcmask 130048
        %v1066 = vsel %vm1065, %v1064, %v1058
        %vm1067 = vcmask 195584
        %v1068 = vsel %vm1067, %v1066, %v1062
        %v1069 = vpack.c.bf16 %v1068, %v1068
        %v1070 = vld [vmem:[%s8] sm:$0xf]
        %v1071 = vld [vmem:[%s8 + $0x4] sm:$0xf]
        %v1072 = vld [vmem:[%s8 + $0x8] sm:$0xf]
        %v1073 = vld [vmem:[%s8 + $0xc] sm:$0xf]
        %v1078 = vunpack.c.l.b16 %v1070
        %v1079 = vunpack.c.l.b16 %v1071
        %v1080 = vunpack.c.l.b16 %v1072
        %v1081 = vunpack.c.l.b16 %v1073
        %v1082 = vpack.c.b16 %v1079, %v1078
        %v1083 = vpack.c.b16 %v1081, %v1080
        %v1087 = vsel %vm668, %v1069, 0
        %1089 = vmatpush.bf16.msra.mxu0 0
        %1090 = vmatpush.bf16.msra.mxu0 0
        %1091 = vmatpush.bf16.msra.mxu0 0
        %1092 = vmatpush.bf16.msra.mxu0 0
        %1093 = vmatpush.bf16.msra.mxu0 0
        %1094 = vmatpush.bf16.msra.mxu0 0
        %1095 = vmatpush.bf16.msra.mxu0 %v1083
        %1096 = vmatpush.bf16.msra.mxu0 %v1082
        %1097 = vmatmul.bf16.gmra.mxu0 %v1087
        %v1098 = vpop.f32.mrf.mxu0
        %v1099 = vadd.f32 0.0, %v1098
        %v1100 = vpop.f32.mrf.mxu0
        %1101 = vdwg.mxu0
        %v1102 = vadd.f32 %v661, %v1099
        %v1103 = vld [vmem:[%s17 + $0x1] sm:$0x1]
        %v1104 = vld [vmem:[%s18 + $0x1] sm:$0x1]
        %v1105 = vsel %vm668, %v1102, 0.0
        %1106 = vadd.xlane.f32.xlu0 %v1105
        %v1107 = vpop.xlane.xlu0 %1106
        %v1108 = vmul.f32 %v1107, %v678
        %v1109 = vsub.f32 %v1102, %v1108
        %v1110 = vmul.f32 %v1109, %v1109
        %v1111 = vsel %vm668, %v1110, 0.0
        %1112 = vadd.xlane.f32.xlu0 %v1111
        %v1113 = vpop.xlane.xlu0 %1112
        %v1114 = vmul.f32 %v1113, %v691
        %v1115 = vrsqrt.pop %v1114
        %v1116 = vmul.f32 %v1115, %v1114
        %v1117 = vmul.f32 %v1116, %v1115
        %v1118 = vmul.f32 0.5, %v1117
        %v1119 = vsub.f32 1.5, %v1118
        %v1120 = vmul.f32 %v1115, %v1119
        %v1121 = vmul.f32 %v1114, %v1120
        %vm1122 = vcmp.eq.f32.partialorder %v1114, inf
        %v1123 = vsel %vm1122, %v1114, %v1121
        %vm1124 = vcmp.eq.f32.partialorder %v1114, 0.0
        %v1125 = vand.u32 %v1114, 2147483648
        %v1126 = vsel %vm1124, %v1125, %v1123
        %v1127 = vadd.f32 %v1126, 1e-06
        %v1128 = vrcp.pop %v1127
        %v1129 = vmul.f32 %v1127, %v1128
        %v1130 = vsub.f32 1.0, %v1129
        %v1131 = vmul.f32 %v1128, %v1130
        %v1132 = vadd.f32 %v1128, %v1131
        %vm1133 = vweird.f32 %v1127
        %vm1134 = vweird.f32 %v1128
        %vm1135 = vmor %vm1133, %vm1134
        %v1136 = vsel %vm1135, %v1128, %v1132
        %v1137 = vand.u32 2147483647, %v1127
        %vm1138 = vcmp.eq.f32.partialorder %v1137, 8.507059e+37
        %v1139 = vand.u32 %v1127, 2147483648
        %v1140 = vor.u32 1.1754944e-38, %v1139
        %v1141 = vsel %vm1138, %v1140, %v1136
        %v1142 = vmul.f32 1.0, %v1141
        %v1143 = vmul.f32 %v1109, %v1142
        %v1144 = vperm.slane %v1103, 0
        %v1145 = vmul.f32 %v1143, %v1144
        %v1146 = vperm.slane %v1104, 0
        %v1147 = vadd.f32 %v1145, %v1146
        %v1148 = vpack.c.bf16 %v1147, %v1147
        %v1149 = vld [vmem:[%s13] sm:$0xf]
        %v1150 = vld [vmem:[%s13 + $0x4] sm:$0xf]
        %v1151 = vld [vmem:[%s13 + $0x8] sm:$0xf]
        %v1152 = vld [vmem:[%s13 + $0xc] sm:$0xf]
        %v1153 = vld [vmem:[%s14] sm:$0x1]
        %v1155 = vperm.slane %v1153, 0
        %v1161 = vunpack.c.l.b16 %v1149
        %v1162 = vunpack.c.l.b16 %v1150
        %v1163 = vunpack.c.l.b16 %v1151
        %v1164 = vunpack.c.l.b16 %v1152
        %v1165 = vpack.c.b16 %v1162, %v1161
        %v1166 = vpack.c.b16 %v1164, %v1163
        %v1170 = vsel %vm668, %v1148, 0
        %1172 = vmatpush.bf16.msra.mxu0 0
        %1173 = vmatpush.bf16.msra.mxu0 0
        %1174 = vmatpush.bf16.msra.mxu0 0
        %1175 = vmatpush.bf16.msra.mxu0 0
        %1176 = vmatpush.bf16.msra.mxu0 0
        %1177 = vmatpush.bf16.msra.mxu0 0
        %1178 = vmatpush.bf16.msra.mxu0 %v1166
        %1179 = vmatpush.bf16.msra.mxu0 %v1165
        %1180 = vmatmul.bf16.gmra.mxu0 %v1170
        %v1181 = vpop.f32.mrf.mxu0
        %v1182 = vadd.f32 %v1155, %v1181
        %v1183 = vpop.f32.mrf.mxu0
        %1184 = vdwg.mxu0
        %v1185 = vmax.f32 %v1182, 0.0
        %v1186 = vpack.c.bf16 %v1185, %v1185
        %v1187 = vld [vmem:[%s15] sm:$0xf]
        %v1188 = vld [vmem:[%s15 + $0x4] sm:$0xf]
        %v1189 = vld [vmem:[%s15 + $0x8] sm:$0xf]
        %v1190 = vld [vmem:[%s15 + $0xc] sm:$0xf]
        %v1191 = vld [vmem:[%s15 + $0x10] sm:$0xf]
        %v1192 = vld [vmem:[%s15 + $0x14] sm:$0xf]
        %v1193 = vld [vmem:[%s15 + $0x18] sm:$0xf]
        %v1194 = vld [vmem:[%s15 + $0x1c] sm:$0xf]
        %v1195 = vld [vmem:[%s16] sm:$0x1]
        %v1197 = vperm.slane %v1195, 0
        %v1207 = vunpack.c.l.b16 %v1187
        %v1208 = vunpack.c.l.b16 %v1188
        %v1209 = vunpack.c.l.b16 %v1189
        %v1210 = vunpack.c.l.b16 %v1190
        %v1211 = vunpack.c.l.b16 %v1191
        %v1212 = vunpack.c.l.b16 %v1192
        %v1213 = vunpack.c.l.b16 %v1193
        %v1214 = vunpack.c.l.b16 %v1194
        %v1215 = vpack.c.b16 %v1208, %v1207
        %v1216 = vpack.c.b16 %v1210, %v1209
        %v1217 = vpack.c.b16 %v1212, %v1211
        %v1218 = vpack.c.b16 %v1214, %v1213
        %vm1223 = vcmask 523264
        %v1225 = vsel %vm1223, %v1186, 0
        %1227 = vmatpush.bf16.msra.mxu0 0
        %1228 = vmatpush.bf16.msra.mxu0 0
        %1229 = vmatpush.bf16.msra.mxu0 0
        %1230 = vmatpush.bf16.msra.mxu0 0
        %1231 = vmatpush.bf16.msra.mxu0 %v1218
        %1232 = vmatpush.bf16.msra.mxu0 %v1217
        %1233 = vmatpush.bf16.msra.mxu0 %v1216
        %1234 = vmatpush.bf16.msra.mxu0 %v1215
        %1235 = vmatmul.bf16.gmra.mxu0 %v1225
        %v1236 = vpop.f32.mrf.mxu0
        %v1237 = vadd.f32 %v1197, %v1236
        %v1238 = vpop.f32.mrf.mxu0
        %1239 = vdwg.mxu0
        %v1240 = vadd.f32 %v1102, %v1237
        %v1241 = vld [vmem:[%s17 + $0x2] sm:$0x1]
        %v1242 = vld [vmem:[%s18 + $0x2] sm:$0x1]
        %v1243 = vsel %vm668, %v1240, 0.0
        %1244 = vadd.xlane.f32.xlu0 %v1243
        %v1245 = vpop.xlane.xlu0 %1244
        %v1246 = vmul.f32 %v1245, %v678
        %v1247 = vsub.f32 %v1240, %v1246
        %v1248 = vmul.f32 %v1247, %v1247
        %v1249 = vsel %vm668, %v1248, 0.0
        %1250 = vadd.xlane.f32.xlu0 %v1249
        %v1251 = vpop.xlane.xlu0 %1250
        %v1252 = vmul.f32 %v1251, %v691
        %v1253 = vrsqrt.pop %v1252
        %v1254 = vmul.f32 %v1253, %v1252
        %v1255 = vmul.f32 %v1254, %v1253
        %v1256 = vmul.f32 0.5, %v1255
        %v1257 = vsub.f32 1.5, %v1256
        %v1258 = vmul.f32 %v1253, %v1257
        %v1259 = vmul.f32 %v1252, %v1258
        %vm1260 = vcmp.eq.f32.partialorder %v1252, inf
        %v1261 = vsel %vm1260, %v1252, %v1259
        %vm1262 = vcmp.eq.f32.partialorder %v1252, 0.0
        %v1263 = vand.u32 %v1252, 2147483648
        %v1264 = vsel %vm1262, %v1263, %v1261
        %v1265 = vadd.f32 %v1264, 1e-06
        %v1266 = vrcp.pop %v1265
        %v1267 = vmul.f32 %v1265, %v1266
        %v1268 = vsub.f32 1.0, %v1267
        %v1269 = vmul.f32 %v1266, %v1268
        %v1270 = vadd.f32 %v1266, %v1269
        %vm1271 = vweird.f32 %v1265
        %vm1272 = vweird.f32 %v1266
        %vm1273 = vmor %vm1271, %vm1272
        %v1274 = vsel %vm1273, %v1266, %v1270
        %v1275 = vand.u32 2147483647, %v1265
        %vm1276 = vcmp.eq.f32.partialorder %v1275, 8.507059e+37
        %v1277 = vand.u32 %v1265, 2147483648
        %v1278 = vor.u32 1.1754944e-38, %v1277
        %v1279 = vsel %vm1276, %v1278, %v1274
        %v1280 = vmul.f32 1.0, %v1279
        %v1281 = vmul.f32 %v1247, %v1280
        %v1282 = vperm.slane %v1241, 0
        %v1283 = vmul.f32 %v1281, %v1282
        %v1284 = vperm.slane %v1242, 0
        %v1285 = vadd.f32 %v1283, %v1284
        %v1286 = vpack.c.bf16 %v1285, %v1285
        %v1287 = vld [vmem:[%s9] sm:$0xf]
        %v1288 = vld [vmem:[%s9 + $0x4] sm:$0xf]
        %v1289 = vld [vmem:[%s9 + $0x8] sm:$0xf]
        %v1290 = vld [vmem:[%s9 + $0xc] sm:$0xf]
        %v1295 = vunpack.c.l.b16 %v1287
        %v1296 = vunpack.c.l.b16 %v1288
        %v1297 = vunpack.c.l.b16 %v1289
        %v1298 = vunpack.c.l.b16 %v1290
        %v1299 = vpack.c.b16 %v1296, %v1295
        %v1300 = vpack.c.b16 %v1298, %v1297
        %v1304 = vsel %vm668, %v1286, 0
        %1306 = vmatpush.bf16.msra.mxu0 0
        %1307 = vmatpush.bf16.msra.mxu0 0
        %1308 = vmatpush.bf16.msra.mxu0 0
        %1309 = vmatpush.bf16.msra.mxu0 0
        %1310 = vmatpush.bf16.msra.mxu0 0
        %1311 = vmatpush.bf16.msra.mxu0 0
        %1312 = vmatpush.bf16.msra.mxu0 %v1300
        %1313 = vmatpush.bf16.msra.mxu0 %v1299
        %1314 = vmatmul.bf16.gmra.mxu0 %v1304
        %v1315 = vpop.f32.mrf.mxu0
        %v1316 = vadd.f32 0.0, %v1315
        %v1317 = vpop.f32.mrf.mxu0
        %1318 = vdwg.mxu0
        %v1319 = vld [vmem:[%s10] sm:$0xf]
        %v1320 = vld [vmem:[%s10 + $0x4] sm:$0xf]
        %v1321 = vld [vmem:[%s10 + $0x8] sm:$0xf]
        %v1322 = vld [vmem:[%s10 + $0xc] sm:$0xf]
        %v1327 = vunpack.c.l.b16 %v1319
        %v1328 = vunpack.c.l.b16 %v1320
        %v1329 = vunpack.c.l.b16 %v1321
        %v1330 = vunpack.c.l.b16 %v1322
        %v1331 = vpack.c.b16 %v1328, %v1327
        %v1332 = vpack.c.b16 %v1330, %v1329
        %v1336 = vsel %vm668, %v662, 0
        %1338 = vmatpush.bf16.msra.mxu0 0
        %1339 = vmatpush.bf16.msra.mxu0 0
        %1340 = vmatpush.bf16.msra.mxu0 0
        %1341 = vmatpush.bf16.msra.mxu0 0
        %1342 = vmatpush.bf16.msra.mxu0 0
        %1343 = vmatpush.bf16.msra.mxu0 0
        %1344 = vmatpush.bf16.msra.mxu0 %v1332
        %1345 = vmatpush.bf16.msra.mxu0 %v1331
        %1346 = vmatmul.bf16.gmra.mxu0 %v1336
        %v1347 = vpop.f32.mrf.mxu0
        %v1348 = vadd.f32 0.0, %v1347
        %v1349 = vpop.f32.mrf.mxu0
        %1350 = vdwg.mxu0
        %v1351 = vld [vmem:[%s11] sm:$0xf]
        %v1352 = vld [vmem:[%s11 + $0x4] sm:$0xf]
        %v1353 = vld [vmem:[%s11 + $0x8] sm:$0xf]
        %v1354 = vld [vmem:[%s11 + $0xc] sm:$0xf]
        %v1359 = vunpack.c.l.b16 %v1351
        %v1360 = vunpack.c.l.b16 %v1352
        %v1361 = vunpack.c.l.b16 %v1353
        %v1362 = vunpack.c.l.b16 %v1354
        %v1363 = vpack.c.b16 %v1360, %v1359
        %v1364 = vpack.c.b16 %v1362, %v1361
        %1367 = vmatpush.bf16.msra.mxu0 0
        %1368 = vmatpush.bf16.msra.mxu0 0
        %1369 = vmatpush.bf16.msra.mxu0 0
        %1370 = vmatpush.bf16.msra.mxu0 0
        %1371 = vmatpush.bf16.msra.mxu0 0
        %1372 = vmatpush.bf16.msra.mxu0 0
        %1373 = vmatpush.bf16.msra.mxu0 %v1364
        %1374 = vmatpush.bf16.msra.mxu0 %v1363
        %1375 = vmatmul.bf16.gmra.mxu0 %v1336
        %v1376 = vpop.f32.mrf.mxu0
        %v1377 = vadd.f32 0.0, %v1376
        %v1378 = vpop.f32.mrf.mxu0
        %1379 = vdwg.mxu0
        %v1380 = vpack.c.bf16 %v1316, %v1316
        %v1381 = vpack.c.bf16 %v1348, %v1348
        %v1382 = vpack.c.bf16 %v1377, %v1377
        %v1384 = vperm.slane %v665, 0
        %v1387 = vsel %vm823, %v1380, 0
        %v1390 = vsel %vm823, %v1381, 0
        %1392 = vmatpush.bf16.xpose.msra.mxu0 0
        %1393 = vmatpush.bf16.xpose.msra.mxu0 0
        %1394 = vmatpush.bf16.xpose.msra.mxu0 0
        %1395 = vmatpush.bf16.xpose.msra.mxu0 0
        %1396 = vmatpush.bf16.xpose.msra.mxu0 0
        %1397 = vmatpush.bf16.xpose.msra.mxu0 0
        %1398 = vmatpush.bf16.xpose.msra.mxu0 0
        %1399 = vmatpush.bf16.xpose.msra.mxu0 %v1390
        %1400 = vmatmul.bf16.gmra.mxu0 %v1387
        %v1401 = vpop.f32.mrf.mxu0
        %v1402 = vadd.f32 %v1384, %v1401
        %v1403 = vpop.f32.mrf.mxu0
        %1404 = vdwg.mxu0
        %v1405 = vsel %vm823, %v1402, -inf
        %1406 = vmax.xlane.f32.xlu0 %v1405
        %v1407 = vpop.xlane.xlu0 %1406
        %v1408 = vsub.f32 %v1402, %v1407
        %v1409 = vmul.f32 %v1408, 1.442695
        %v1410 = vpow.pop %v1409
        %v1411 = vsel %vm823, %v1410, 0.0
        %1412 = vadd.xlane.f32.xlu0 %v1411
        %v1413 = vpop.xlane.xlu0 %1412
        %v1414 = vrcp.pop %v1413
        %v1415 = vmul.f32 %v1410, %v1414
        %v1416 = vpack.c.bf16 %v1415, %v1415
        %v1418 = vsel %vm823, %v1416, 0
        %v1421 = vsel %vm858, %v1382, 0
        %1423 = vmatpush.bf16.msra.mxu0 0
        %1424 = vmatpush.bf16.msra.mxu0 0
        %1425 = vmatpush.bf16.msra.mxu0 0
        %1426 = vmatpush.bf16.msra.mxu0 0
        %1427 = vmatpush.bf16.msra.mxu0 0
        %1428 = vmatpush.bf16.msra.mxu0 0
        %1429 = vmatpush.bf16.msra.mxu0 0
        %1430 = vmatpush.bf16.msra.mxu0 %v1421
        %1431 = vmatmul.bf16.gmra.mxu0 %v1418
        %v1432 = vpop.f32.mrf.mxu0
        %v1433 = vadd.f32 0.0, %v1432
        %v1434 = vpop.f32.mrf.mxu0
        %1435 = vdwg.mxu0
        %v1437 = vunpack.c.l.b16 %v1380
        %v1438 = vpack.c.b16 %v1437, %v1437
        %1439 = vrot.lane.b32.xlu0 %v1438, 120
        %v1440 = vpop.permute.xlu0 %1439
        %v1442 = vunpack.c.l.b16 %v1381
        %v1443 = vpack.c.b16 %v1442, %v1442
        %1444 = vrot.lane.b32.xlu0 %v1443, 120
        %v1445 = vpop.permute.xlu0 %1444
        %v1447 = vsel %vm823, %v1440, 0
        %v1450 = vsel %vm823, %v1445, 0
        %1452 = vmatpush.bf16.xpose.msra.mxu0 0
        %1453 = vmatpush.bf16.xpose.msra.mxu0 0
        %1454 = vmatpush.bf16.xpose.msra.mxu0 0
        %1455 = vmatpush.bf16.xpose.msra.mxu0 0
        %1456 = vmatpush.bf16.xpose.msra.mxu0 0
        %1457 = vmatpush.bf16.xpose.msra.mxu0 0
        %1458 = vmatpush.bf16.xpose.msra.mxu0 0
        %1459 = vmatpush.bf16.xpose.msra.mxu0 %v1450
        %1460 = vmatmul.bf16.gmra.mxu0 %v1447
        %v1461 = vpop.f32.mrf.mxu0
        %v1462 = vadd.f32 %v1384, %v1461
        %v1463 = vpop.f32.mrf.mxu0
        %1464 = vdwg.mxu0
        %v1465 = vsel %vm823, %v1462, -inf
        %1466 = vmax.xlane.f32.xlu0 %v1465
        %v1467 = vpop.xlane.xlu0 %1466
        %v1468 = vsub.f32 %v1462, %v1467
        %v1469 = vmul.f32 %v1468, 1.442695
        %v1470 = vpow.pop %v1469
        %v1471 = vsel %vm823, %v1470, 0.0
        %1472 = vadd.xlane.f32.xlu0 %v1471
        %v1473 = vpop.xlane.xlu0 %1472
        %v1474 = vrcp.pop %v1473
        %v1475 = vmul.f32 %v1470, %v1474
        %v1476 = vpack.c.bf16 %v1475, %v1475
        %v1478 = vunpack.c.l.b16 %v1382
        %v1479 = vpack.c.b16 %v1478, %v1478
        %1480 = vrot.lane.b32.xlu0 %v1479, 120
        %v1481 = vpop.permute.xlu0 %1480
        %v1483 = vsel %vm823, %v1476, 0
        %v1486 = vsel %vm858, %v1481, 0
        %1488 = vmatpush.bf16.msra.mxu0 0
        %1489 = vmatpush.bf16.msra.mxu0 0
        %1490 = vmatpush.bf16.msra.mxu0 0
        %1491 = vmatpush.bf16.msra.mxu0 0
        %1492 = vmatpush.bf16.msra.mxu0 0
        %1493 = vmatpush.bf16.msra.mxu0 0
        %1494 = vmatpush.bf16.msra.mxu0 0
        %1495 = vmatpush.bf16.msra.mxu0 %v1486
        %1496 = vmatmul.bf16.gmra.mxu0 %v1483
        %v1497 = vpop.f32.mrf.mxu0
        %v1498 = vadd.f32 0.0, %v1497
        %v1499 = vpop.f32.mrf.mxu0
        %1500 = vdwg.mxu0
        %1501 = vrot.lane.b32.xlu0 %v1438, 112
        %v1502 = vpop.permute.xlu0 %1501
        %1503 = vrot.lane.b32.xlu0 %v1443, 112
        %v1504 = vpop.permute.xlu0 %1503
        %v1506 = vsel %vm823, %v1502, 0
        %v1509 = vsel %vm823, %v1504, 0
        %1511 = vmatpush.bf16.xpose.msra.mxu0 0
        %1512 = vmatpush.bf16.xpose.msra.mxu0 0
        %1513 = vmatpush.bf16.xpose.msra.mxu0 0
        %1514 = vmatpush.bf16.xpose.msra.mxu0 0
        %1515 = vmatpush.bf16.xpose.msra.mxu0 0
        %1516 = vmatpush.bf16.xpose.msra.mxu0 0
        %1517 = vmatpush.bf16.xpose.msra.mxu0 0
        %1518 = vmatpush.bf16.xpose.msra.mxu0 %v1509
        %1519 = vmatmul.bf16.gmra.mxu0 %v1506
        %v1520 = vpop.f32.mrf.mxu0
        %v1521 = vadd.f32 %v1384, %v1520
        %v1522 = vpop.f32.mrf.mxu0
        %1523 = vdwg.mxu0
        %v1524 = vsel %vm823, %v1521, -inf
        %1525 = vmax.xlane.f32.xlu0 %v1524
        %v1526 = vpop.xlane.xlu0 %1525
        %v1527 = vsub.f32 %v1521, %v1526
        %v1528 = vmul.f32 %v1527, 1.442695
        %v1529 = vpow.pop %v1528
        %v1530 = vsel %vm823, %v1529, 0.0
        %1531 = vadd.xlane.f32.xlu0 %v1530
        %v1532 = vpop.xlane.xlu0 %1531
        %v1533 = vrcp.pop %v1532
        %v1534 = vmul.f32 %v1529, %v1533
        %v1535 = vpack.c.bf16 %v1534, %v1534
        %1536 = vrot.lane.b32.xlu0 %v1479, 112
        %v1537 = vpop.permute.xlu0 %1536
        %v1539 = vsel %vm823, %v1535, 0
        %v1542 = vsel %vm858, %v1537, 0
        %1544 = vmatpush.bf16.msra.mxu0 0
        %1545 = vmatpush.bf16.msra.mxu0 0
        %1546 = vmatpush.bf16.msra.mxu0 0
        %1547 = vmatpush.bf16.msra.mxu0 0
        %1548 = vmatpush.bf16.msra.mxu0 0
        %1549 = vmatpush.bf16.msra.mxu0 0
        %1550 = vmatpush.bf16.msra.mxu0 0
        %1551 = vmatpush.bf16.msra.mxu0 %v1542
        %1552 = vmatmul.bf16.gmra.mxu0 %v1539
        %v1553 = vpop.f32.mrf.mxu0
        %v1554 = vadd.f32 0.0, %v1553
        %v1555 = vpop.f32.mrf.mxu0
        %1556 = vdwg.mxu0
        %1557 = vrot.lane.b32.xlu0 %v1438, 104
        %v1558 = vpop.permute.xlu0 %1557
        %1559 = vrot.lane.b32.xlu0 %v1443, 104
        %v1560 = vpop.permute.xlu0 %1559
        %v1562 = vsel %vm823, %v1558, 0
        %v1565 = vsel %vm823, %v1560, 0
        %1567 = vmatpush.bf16.xpose.msra.mxu0 0
        %1568 = vmatpush.bf16.xpose.msra.mxu0 0
        %1569 = vmatpush.bf16.xpose.msra.mxu0 0
        %1570 = vmatpush.bf16.xpose.msra.mxu0 0
        %1571 = vmatpush.bf16.xpose.msra.mxu0 0
        %1572 = vmatpush.bf16.xpose.msra.mxu0 0
        %1573 = vmatpush.bf16.xpose.msra.mxu0 0
        %1574 = vmatpush.bf16.xpose.msra.mxu0 %v1565
        %1575 = vmatmul.bf16.gmra.mxu0 %v1562
        %v1576 = vpop.f32.mrf.mxu0
        %v1577 = vadd.f32 %v1384, %v1576
        %v1578 = vpop.f32.mrf.mxu0
        %1579 = vdwg.mxu0
        %v1580 = vsel %vm823, %v1577, -inf
        %1581 = vmax.xlane.f32.xlu0 %v1580
        %v1582 = vpop.xlane.xlu0 %1581
        %v1583 = vsub.f32 %v1577, %v1582
        %v1584 = vmul.f32 %v1583, 1.442695
        %v1585 = vpow.pop %v1584
        %v1586 = vsel %vm823, %v1585, 0.0
        %1587 = vadd.xlane.f32.xlu0 %v1586
        %v1588 = vpop.xlane.xlu0 %1587
        %v1589 = vrcp.pop %v1588
        %v1590 = vmul.f32 %v1585, %v1589
        %v1591 = vpack.c.bf16 %v1590, %v1590
        %1592 = vrot.lane.b32.xlu0 %v1479, 104
        %v1593 = vpop.permute.xlu0 %1592
        %v1595 = vsel %vm823, %v1591, 0
        %v1598 = vsel %vm858, %v1593, 0
        %1600 = vmatpush.bf16.msra.mxu0 0
        %1601 = vmatpush.bf16.msra.mxu0 0
        %1602 = vmatpush.bf16.msra.mxu0 0
        %1603 = vmatpush.bf16.msra.mxu0 0
        %1604 = vmatpush.bf16.msra.mxu0 0
        %1605 = vmatpush.bf16.msra.mxu0 0
        %1606 = vmatpush.bf16.msra.mxu0 0
        %1607 = vmatpush.bf16.msra.mxu0 %v1598
        %1608 = vmatmul.bf16.gmra.mxu0 %v1595
        %v1609 = vpop.f32.mrf.mxu0
        %v1610 = vadd.f32 0.0, %v1609
        %v1611 = vpop.f32.mrf.mxu0
        %1612 = vdwg.mxu0
        %1614 = vrot.lane.b32.xlu0 %v1498, 8
        %v1615 = vpop.permute.xlu0 %1614
        %1618 = vrot.lane.b32.xlu0 %v1554, 16
        %v1619 = vpop.permute.xlu0 %1618
        %1622 = vrot.lane.b32.xlu0 %v1610, 24
        %v1623 = vpop.permute.xlu0 %1622
        %v1625 = vsel %vm823, %v1433, %v1615
        %v1626 = vsel %vm1065, %v1625, %v1619
        %v1627 = vsel %vm1067, %v1626, %v1623
        %v1628 = vpack.c.bf16 %v1627, %v1627
        %v1629 = vld [vmem:[%s12] sm:$0xf]
        %v1630 = vld [vmem:[%s12 + $0x4] sm:$0xf]
        %v1631 = vld [vmem:[%s12 + $0x8] sm:$0xf]
        %v1632 = vld [vmem:[%s12 + $0xc] sm:$0xf]
        %v1637 = vunpack.c.l.b16 %v1629
        %v1638 = vunpack.c.l.b16 %v1630
        %v1639 = vunpack.c.l.b16 %v1631
        %v1640 = vunpack.c.l.b16 %v1632
        %v1641 = vpack.c.b16 %v1638, %v1637
        %v1642 = vpack.c.b16 %v1640, %v1639
        %v1646 = vsel %vm668, %v1628, 0
        %1648 = vmatpush.bf16.msra.mxu0 0
        %1649 = vmatpush.bf16.msra.mxu0 0
        %1650 = vmatpush.bf16.msra.mxu0 0
        %1651 = vmatpush.bf16.msra.mxu0 0
        %1652 = vmatpush.bf16.msra.mxu0 0
        %1653 = vmatpush.bf16.msra.mxu0 0
        %1654 = vmatpush.bf16.msra.mxu0 %v1642
        %1655 = vmatpush.bf16.msra.mxu0 %v1641
        %1656 = vmatmul.bf16.gmra.mxu0 %v1646
        %v1657 = vpop.f32.mrf.mxu0
        %v1658 = vadd.f32 0.0, %v1657
        %v1659 = vpop.f32.mrf.mxu0
        %1660 = vdwg.mxu0
        %v1661 = vadd.f32 %v1240, %v1658
        %v1662 = vld [vmem:[%s17 + $0x3] sm:$0x1]
        %v1663 = vld [vmem:[%s18 + $0x3] sm:$0x1]
        %v1664 = vsel %vm668, %v1661, 0.0
        %1665 = vadd.xlane.f32.xlu0 %v1664
        %v1666 = vpop.xlane.xlu0 %1665
        %v1667 = vmul.f32 %v1666, %v678
        %v1668 = vsub.f32 %v1661, %v1667
        %v1669 = vmul.f32 %v1668, %v1668
        %v1670 = vsel %vm668, %v1669, 0.0
        %1671 = vadd.xlane.f32.xlu0 %v1670
        %v1672 = vpop.xlane.xlu0 %1671
        %v1673 = vmul.f32 %v1672, %v691
        %v1674 = vrsqrt.pop %v1673
        %v1675 = vmul.f32 %v1674, %v1673
        %v1676 = vmul.f32 %v1675, %v1674
        %v1677 = vmul.f32 0.5, %v1676
        %v1678 = vsub.f32 1.5, %v1677
        %v1679 = vmul.f32 %v1674, %v1678
        %v1680 = vmul.f32 %v1673, %v1679
        %vm1681 = vcmp.eq.f32.partialorder %v1673, inf
        %v1682 = vsel %vm1681, %v1673, %v1680
        %vm1683 = vcmp.eq.f32.partialorder %v1673, 0.0
        %v1684 = vand.u32 %v1673, 2147483648
        %v1685 = vsel %vm1683, %v1684, %v1682
        %v1686 = vadd.f32 %v1685, 1e-06
        %v1687 = vrcp.pop %v1686
        %v1688 = vmul.f32 %v1686, %v1687
        %v1689 = vsub.f32 1.0, %v1688
        %v1690 = vmul.f32 %v1687, %v1689
        %v1691 = vadd.f32 %v1687, %v1690
        %vm1692 = vweird.f32 %v1686
        %vm1693 = vweird.f32 %v1687
        %vm1694 = vmor %vm1692, %vm1693
        %v1695 = vsel %vm1694, %v1687, %v1691
        %v1696 = vand.u32 2147483647, %v1686
        %vm1697 = vcmp.eq.f32.partialorder %v1696, 8.507059e+37
        %v1698 = vand.u32 %v1686, 2147483648
        %v1699 = vor.u32 1.1754944e-38, %v1698
        %v1700 = vsel %vm1697, %v1699, %v1695
        %v1701 = vmul.f32 1.0, %v1700
        %v1702 = vmul.f32 %v1668, %v1701
        %v1703 = vperm.slane %v1662, 0
        %v1704 = vmul.f32 %v1702, %v1703
        %v1705 = vperm.slane %v1663, 0
        %v1706 = vadd.f32 %v1704, %v1705
        %v1707 = vpack.c.bf16 %v1706, %v1706
        %v1708 = vld [vmem:[%s13] sm:$0xf]
        %v1709 = vld [vmem:[%s13 + $0x4] sm:$0xf]
        %v1710 = vld [vmem:[%s13 + $0x8] sm:$0xf]
        %v1711 = vld [vmem:[%s13 + $0xc] sm:$0xf]
        %v1712 = vld [vmem:[%s14] sm:$0x1]
        %v1714 = vperm.slane %v1712, 0
        %v1720 = vunpack.c.l.b16 %v1708
        %v1721 = vunpack.c.l.b16 %v1709
        %v1722 = vunpack.c.l.b16 %v1710
        %v1723 = vunpack.c.l.b16 %v1711
        %v1724 = vpack.c.b16 %v1721, %v1720
        %v1725 = vpack.c.b16 %v1723, %v1722
        %v1729 = vsel %vm668, %v1707, 0
        %1731 = vmatpush.bf16.msra.mxu0 0
        %1732 = vmatpush.bf16.msra.mxu0 0
        %1733 = vmatpush.bf16.msra.mxu0 0
        %1734 = vmatpush.bf16.msra.mxu0 0
        %1735 = vmatpush.bf16.msra.mxu0 0
        %1736 = vmatpush.bf16.msra.mxu0 0
        %1737 = vmatpush.bf16.msra.mxu0 %v1725
        %1738 = vmatpush.bf16.msra.mxu0 %v1724
        %1739 = vmatmul.bf16.gmra.mxu0 %v1729
        %v1740 = vpop.f32.mrf.mxu0
        %v1741 = vadd.f32 %v1714, %v1740
        %v1742 = vpop.f32.mrf.mxu0
        %1743 = vdwg.mxu0
        %v1744 = vmax.f32 %v1741, 0.0
        %v1745 = vpack.c.bf16 %v1744, %v1744
        %v1746 = vld [vmem:[%s15] sm:$0xf]
        %v1747 = vld [vmem:[%s15 + $0x4] sm:$0xf]
        %v1748 = vld [vmem:[%s15 + $0x8] sm:$0xf]
        %v1749 = vld [vmem:[%s15 + $0xc] sm:$0xf]
        %v1750 = vld [vmem:[%s15 + $0x10] sm:$0xf]
        %v1751 = vld [vmem:[%s15 + $0x14] sm:$0xf]
        %v1752 = vld [vmem:[%s15 + $0x18] sm:$0xf]
        %v1753 = vld [vmem:[%s15 + $0x1c] sm:$0xf]
        %v1754 = vld [vmem:[%s16] sm:$0x1]
        %v1756 = vperm.slane %v1754, 0
        %v1766 = vunpack.c.l.b16 %v1746
        %v1767 = vunpack.c.l.b16 %v1747
        %v1768 = vunpack.c.l.b16 %v1748
        %v1769 = vunpack.c.l.b16 %v1749
        %v1770 = vunpack.c.l.b16 %v1750
        %v1771 = vunpack.c.l.b16 %v1751
        %v1772 = vunpack.c.l.b16 %v1752
        %v1773 = vunpack.c.l.b16 %v1753
        %v1774 = vpack.c.b16 %v1767, %v1766
        %v1775 = vpack.c.b16 %v1769, %v1768
        %v1776 = vpack.c.b16 %v1771, %v1770
        %v1777 = vpack.c.b16 %v1773, %v1772
        %v1783 = vsel %vm1223, %v1745, 0
        %1785 = vmatpush.bf16.msra.mxu0 0
        %1786 = vmatpush.bf16.msra.mxu0 0
        %1787 = vmatpush.bf16.msra.mxu0 0
        %1788 = vmatpush.bf16.msra.mxu0 0
        %1789 = vmatpush.bf16.msra.mxu0 %v1777
        %1790 = vmatpush.bf16.msra.mxu0 %v1776
        %1791 = vmatpush.bf16.msra.mxu0 %v1775
        %1792 = vmatpush.bf16.msra.mxu0 %v1774
        %1793 = vmatmul.bf16.gmra.mxu0 %v1783
        %v1794 = vpop.f32.mrf.mxu0
        %v1795 = vadd.f32 %v1756, %v1794
        %v1796 = vpop.f32.mrf.mxu0
        %1797 = vdwg.mxu0
        %v1798 = vadd.f32 %v1661, %v1795
        %v1799 = vld [vmem:[%s17 + $0x4] sm:$0x1]
        %v1800 = vld [vmem:[%s18 + $0x4] sm:$0x1]
        %v1801 = vsel %vm668, %v1798, 0.0
        %1802 = vadd.xlane.f32.xlu0 %v1801
        %v1803 = vpop.xlane.xlu0 %1802
        %v1804 = vmul.f32 %v1803, %v678
        %v1805 = vsub.f32 %v1798, %v1804
        %v1806 = vmul.f32 %v1805, %v1805
        %v1807 = vsel %vm668, %v1806, 0.0
        %1808 = vadd.xlane.f32.xlu0 %v1807
        %v1809 = vpop.xlane.xlu0 %1808
        %v1810 = vmul.f32 %v1809, %v691
        %v1811 = vrsqrt.pop %v1810
        %v1812 = vmul.f32 %v1811, %v1810
        %v1813 = vmul.f32 %v1812, %v1811
        %v1814 = vmul.f32 0.5, %v1813
        %v1815 = vsub.f32 1.5, %v1814
        %v1816 = vmul.f32 %v1811, %v1815
        %v1817 = vmul.f32 %v1810, %v1816
        %vm1818 = vcmp.eq.f32.partialorder %v1810, inf
        %v1819 = vsel %vm1818, %v1810, %v1817
        %vm1820 = vcmp.eq.f32.partialorder %v1810, 0.0
        %v1821 = vand.u32 %v1810, 2147483648
        %v1822 = vsel %vm1820, %v1821, %v1819
        %v1823 = vadd.f32 %v1822, 1e-06
        %v1824 = vrcp.pop %v1823
        %v1825 = vmul.f32 %v1823, %v1824
        %v1826 = vsub.f32 1.0, %v1825
        %v1827 = vmul.f32 %v1824, %v1826
        %v1828 = vadd.f32 %v1824, %v1827
        %vm1829 = vweird.f32 %v1823
        %vm1830 = vweird.f32 %v1824
        %vm1831 = vmor %vm1829, %vm1830
        %v1832 = vsel %vm1831, %v1824, %v1828
        %v1833 = vand.u32 2147483647, %v1823
        %vm1834 = vcmp.eq.f32.partialorder %v1833, 8.507059e+37
        %v1835 = vand.u32 %v1823, 2147483648
        %v1836 = vor.u32 1.1754944e-38, %v1835
        %v1837 = vsel %vm1834, %v1836, %v1832
        %v1838 = vmul.f32 1.0, %v1837
        %v1839 = vmul.f32 %v1805, %v1838
        %v1840 = vperm.slane %v1799, 0
        %v1841 = vmul.f32 %v1839, %v1840
        %v1842 = vperm.slane %v1800, 0
        %v1843 = vadd.f32 %v1841, %v1842
        %v1844 = vpack.c.bf16 %v1843, %v1843
        %v1845 = vld [vmem:[%s9] sm:$0xf]
        %v1846 = vld [vmem:[%s9 + $0x4] sm:$0xf]
        %v1847 = vld [vmem:[%s9 + $0x8] sm:$0xf]
        %v1848 = vld [vmem:[%s9 + $0xc] sm:$0xf]
        %v1853 = vunpack.c.l.b16 %v1845
        %v1854 = vunpack.c.l.b16 %v1846
        %v1855 = vunpack.c.l.b16 %v1847
        %v1856 = vunpack.c.l.b16 %v1848
        %v1857 = vpack.c.b16 %v1854, %v1853
        %v1858 = vpack.c.b16 %v1856, %v1855
        %v1862 = vsel %vm668, %v1844, 0
        %1864 = vmatpush.bf16.msra.mxu0 0
        %1865 = vmatpush.bf16.msra.mxu0 0
        %1866 = vmatpush.bf16.msra.mxu0 0
        %1867 = vmatpush.bf16.msra.mxu0 0
        %1868 = vmatpush.bf16.msra.mxu0 0
        %1869 = vmatpush.bf16.msra.mxu0 0
        %1870 = vmatpush.bf16.msra.mxu0 %v1858
        %1871 = vmatpush.bf16.msra.mxu0 %v1857
        %1872 = vmatmul.bf16.gmra.mxu0 %v1862
        %v1873 = vpop.f32.mrf.mxu0
        %v1874 = vadd.f32 0.0, %v1873
        %v1875 = vpop.f32.mrf.mxu0
        %1876 = vdwg.mxu0
        %v1877 = vld [vmem:[%s10] sm:$0xf]
        %v1878 = vld [vmem:[%s10 + $0x4] sm:$0xf]
        %v1879 = vld [vmem:[%s10 + $0x8] sm:$0xf]
        %v1880 = vld [vmem:[%s10 + $0xc] sm:$0xf]
        %v1885 = vunpack.c.l.b16 %v1877
        %v1886 = vunpack.c.l.b16 %v1878
        %v1887 = vunpack.c.l.b16 %v1879
        %v1888 = vunpack.c.l.b16 %v1880
        %v1889 = vpack.c.b16 %v1886, %v1885
        %v1890 = vpack.c.b16 %v1888, %v1887
        %v1894 = vsel %vm668, %v663, 0
        %1896 = vmatpush.bf16.msra.mxu0 0
        %1897 = vmatpush.bf16.msra.mxu0 0
        %1898 = vmatpush.bf16.msra.mxu0 0
        %1899 = vmatpush.bf16.msra.mxu0 0
        %1900 = vmatpush.bf16.msra.mxu0 0
        %1901 = vmatpush.bf16.msra.mxu0 0
        %1902 = vmatpush.bf16.msra.mxu0 %v1890
        %1903 = vmatpush.bf16.msra.mxu0 %v1889
        %1904 = vmatmul.bf16.gmra.mxu0 %v1894
        %v1905 = vpop.f32.mrf.mxu0
        %v1906 = vadd.f32 0.0, %v1905
        %v1907 = vpop.f32.mrf.mxu0
        %1908 = vdwg.mxu0
        %v1909 = vld [vmem:[%s11] sm:$0xf]
        %v1910 = vld [vmem:[%s11 + $0x4] sm:$0xf]
        %v1911 = vld [vmem:[%s11 + $0x8] sm:$0xf]
        %v1912 = vld [vmem:[%s11 + $0xc] sm:$0xf]
        %v1917 = vunpack.c.l.b16 %v1909
        %v1918 = vunpack.c.l.b16 %v1910
        %v1919 = vunpack.c.l.b16 %v1911
        %v1920 = vunpack.c.l.b16 %v1912
        %v1921 = vpack.c.b16 %v1918, %v1917
        %v1922 = vpack.c.b16 %v1920, %v1919
        %1925 = vmatpush.bf16.msra.mxu0 0
        %1926 = vmatpush.bf16.msra.mxu0 0
        %1927 = vmatpush.bf16.msra.mxu0 0
        %1928 = vmatpush.bf16.msra.mxu0 0
        %1929 = vmatpush.bf16.msra.mxu0 0
        %1930 = vmatpush.bf16.msra.mxu0 0
        %1931 = vmatpush.bf16.msra.mxu0 %v1922
        %1932 = vmatpush.bf16.msra.mxu0 %v1921
        %1933 = vmatmul.bf16.gmra.mxu0 %v1894
        %v1934 = vpop.f32.mrf.mxu0
        %v1935 = vadd.f32 0.0, %v1934
        %v1936 = vpop.f32.mrf.mxu0
        %1937 = vdwg.mxu0
        %v1938 = vpack.c.bf16 %v1874, %v1874
        %v1939 = vpack.c.bf16 %v1906, %v1906
        %v1940 = vpack.c.bf16 %v1935, %v1935
        %v1942 = vsel %vm823, %v1938, 0
        %v1945 = vsel %vm823, %v1939, 0
        %1947 = vmatpush.bf16.xpose.msra.mxu0 0
        %1948 = vmatpush.bf16.xpose.msra.mxu0 0
        %1949 = vmatpush.bf16.xpose.msra.mxu0 0
        %1950 = vmatpush.bf16.xpose.msra.mxu0 0
        %1951 = vmatpush.bf16.xpose.msra.mxu0 0
        %1952 = vmatpush.bf16.xpose.msra.mxu0 0
        %1953 = vmatpush.bf16.xpose.msra.mxu0 0
        %1954 = vmatpush.bf16.xpose.msra.mxu0 %v1945
        %1955 = vmatmul.bf16.gmra.mxu0 %v1942
        %v1956 = vpop.f32.mrf.mxu0
        %v1957 = vadd.f32 0.0, %v1956
        %v1958 = vpop.f32.mrf.mxu0
        %1959 = vdwg.mxu0
        %vm1960 = vcmask 31744
        %v1961 = vsel %vm1960, %v1957, -inf
        %1962 = vmax.xlane.f32.xlu0 %v1961
        %v1963 = vpop.xlane.xlu0 %1962
        %v1964 = vsub.f32 %v1957, %v1963
        %v1965 = vmul.f32 %v1964, 1.442695
        %v1966 = vpow.pop %v1965
        %v1967 = vsel %vm1960, %v1966, 0.0
        %1968 = vadd.xlane.f32.xlu0 %v1967
        %v1969 = vpop.xlane.xlu0 %1968
        %v1970 = vrcp.pop %v1969
        %v1971 = vmul.f32 %v1966, %v1970
        %v1972 = vpack.c.bf16 %v1971, %v1971
        %v1974 = vsel %vm1960, %v1972, 0
        %vm1976 = vcmask 1041408
        %v1978 = vsel %vm1976, %v1940, 0
        %1980 = vmatpush.bf16.msra.mxu0 0
        %1981 = vmatpush.bf16.msra.mxu0 0
        %1982 = vmatpush.bf16.msra.mxu0 0
        %1983 = vmatpush.bf16.msra.mxu0 0
        %1984 = vmatpush.bf16.msra.mxu0 0
        %1985 = vmatpush.bf16.msra.mxu0 0
        %1986 = vmatpush.bf16.msra.mxu0 0
        %1987 = vmatpush.bf16.msra.mxu0 %v1978
        %1988 = vmatmul.bf16.gmra.mxu0 %v1974
        %v1989 = vpop.f32.mrf.mxu0
        %v1990 = vadd.f32 0.0, %v1989
        %v1991 = vpop.f32.mrf.mxu0
        %1992 = vdwg.mxu0
        %v1994 = vunpack.c.l.b16 %v1938
        %v1995 = vpack.c.b16 %v1994, %v1994
        %1996 = vrot.lane.b32.xlu0 %v1995, 120
        %v1997 = vpop.permute.xlu0 %1996
        %v1999 = vunpack.c.l.b16 %v1939
        %v2000 = vpack.c.b16 %v1999, %v1999
        %2001 = vrot.lane.b32.xlu0 %v2000, 120
        %v2002 = vpop.permute.xlu0 %2001
        %v2004 = vsel %vm823, %v1997, 0
        %v2007 = vsel %vm823, %v2002, 0
        %2009 = vmatpush.bf16.xpose.msra.mxu0 0
        %2010 = vmatpush.bf16.xpose.msra.mxu0 0
        %2011 = vmatpush.bf16.xpose.msra.mxu0 0
        %2012 = vmatpush.bf16.xpose.msra.mxu0 0
        %2013 = vmatpush.bf16.xpose.msra.mxu0 0
        %2014 = vmatpush.bf16.xpose.msra.mxu0 0
        %2015 = vmatpush.bf16.xpose.msra.mxu0 0
        %2016 = vmatpush.bf16.xpose.msra.mxu0 %v2007
        %2017 = vmatmul.bf16.gmra.mxu0 %v2004
        %v2018 = vpop.f32.mrf.mxu0
        %v2019 = vadd.f32 0.0, %v2018
        %v2020 = vpop.f32.mrf.mxu0
        %2021 = vdwg.mxu0
        %v2022 = vsel %vm1960, %v2019, -inf
        %2023 = vmax.xlane.f32.xlu0 %v2022
        %v2024 = vpop.xlane.xlu0 %2023
        %v2025 = vsub.f32 %v2019, %v2024
        %v2026 = vmul.f32 %v2025, 1.442695
        %v2027 = vpow.pop %v2026
        %v2028 = vsel %vm1960, %v2027, 0.0
        %2029 = vadd.xlane.f32.xlu0 %v2028
        %v2030 = vpop.xlane.xlu0 %2029
        %v2031 = vrcp.pop %v2030
        %v2032 = vmul.f32 %v2027, %v2031
        %v2033 = vpack.c.bf16 %v2032, %v2032
        %v2035 = vunpack.c.l.b16 %v1940
        %v2036 = vpack.c.b16 %v2035, %v2035
        %2037 = vrot.lane.b32.xlu0 %v2036, 120
        %v2038 = vpop.permute.xlu0 %2037
        %v2040 = vsel %vm1960, %v2033, 0
        %v2043 = vsel %vm1976, %v2038, 0
        %2045 = vmatpush.bf16.msra.mxu0 0
        %2046 = vmatpush.bf16.msra.mxu0 0
        %2047 = vmatpush.bf16.msra.mxu0 0
        %2048 = vmatpush.bf16.msra.mxu0 0
        %2049 = vmatpush.bf16.msra.mxu0 0
        %2050 = vmatpush.bf16.msra.mxu0 0
        %2051 = vmatpush.bf16.msra.mxu0 0
        %2052 = vmatpush.bf16.msra.mxu0 %v2043
        %2053 = vmatmul.bf16.gmra.mxu0 %v2040
        %v2054 = vpop.f32.mrf.mxu0
        %v2055 = vadd.f32 0.0, %v2054
        %v2056 = vpop.f32.mrf.mxu0
        %2057 = vdwg.mxu0
        %2058 = vrot.lane.b32.xlu0 %v1995, 112
        %v2059 = vpop.permute.xlu0 %2058
        %2060 = vrot.lane.b32.xlu0 %v2000, 112
        %v2061 = vpop.permute.xlu0 %2060
        %v2063 = vsel %vm823, %v2059, 0
        %v2066 = vsel %vm823, %v2061, 0
        %2068 = vmatpush.bf16.xpose.msra.mxu0 0
        %2069 = vmatpush.bf16.xpose.msra.mxu0 0
        %2070 = vmatpush.bf16.xpose.msra.mxu0 0
        %2071 = vmatpush.bf16.xpose.msra.mxu0 0
        %2072 = vmatpush.bf16.xpose.msra.mxu0 0
        %2073 = vmatpush.bf16.xpose.msra.mxu0 0
        %2074 = vmatpush.bf16.xpose.msra.mxu0 0
        %2075 = vmatpush.bf16.xpose.msra.mxu0 %v2066
        %2076 = vmatmul.bf16.gmra.mxu0 %v2063
        %v2077 = vpop.f32.mrf.mxu0
        %v2078 = vadd.f32 0.0, %v2077
        %v2079 = vpop.f32.mrf.mxu0
        %2080 = vdwg.mxu0
        %v2081 = vsel %vm1960, %v2078, -inf
        %2082 = vmax.xlane.f32.xlu0 %v2081
        %v2083 = vpop.xlane.xlu0 %2082
        %v2084 = vsub.f32 %v2078, %v2083
        %v2085 = vmul.f32 %v2084, 1.442695
        %v2086 = vpow.pop %v2085
        %v2087 = vsel %vm1960, %v2086, 0.0
        %2088 = vadd.xlane.f32.xlu0 %v2087
        %v2089 = vpop.xlane.xlu0 %2088
        %v2090 = vrcp.pop %v2089
        %v2091 = vmul.f32 %v2086, %v2090
        %v2092 = vpack.c.bf16 %v2091, %v2091
        %2093 = vrot.lane.b32.xlu0 %v2036, 112
        %v2094 = vpop.permute.xlu0 %2093
        %v2096 = vsel %vm1960, %v2092, 0
        %v2099 = vsel %vm1976, %v2094, 0
        %2101 = vmatpush.bf16.msra.mxu0 0
        %2102 = vmatpush.bf16.msra.mxu0 0
        %2103 = vmatpush.bf16.msra.mxu0 0
        %2104 = vmatpush.bf16.msra.mxu0 0
        %2105 = vmatpush.bf16.msra.mxu0 0
        %2106 = vmatpush.bf16.msra.mxu0 0
        %2107 = vmatpush.bf16.msra.mxu0 0
        %2108 = vmatpush.bf16.msra.mxu0 %v2099
        %2109 = vmatmul.bf16.gmra.mxu0 %v2096
        %v2110 = vpop.f32.mrf.mxu0
        %v2111 = vadd.f32 0.0, %v2110
        %v2112 = vpop.f32.mrf.mxu0
        %2113 = vdwg.mxu0
        %2114 = vrot.lane.b32.xlu0 %v1995, 104
        %v2115 = vpop.permute.xlu0 %2114
        %2116 = vrot.lane.b32.xlu0 %v2000, 104
        %v2117 = vpop.permute.xlu0 %2116
        %v2119 = vsel %vm823, %v2115, 0
        %v2122 = vsel %vm823, %v2117, 0
        %2124 = vmatpush.bf16.xpose.msra.mxu0 0
        %2125 = vmatpush.bf16.xpose.msra.mxu0 0
        %2126 = vmatpush.bf16.xpose.msra.mxu0 0
        %2127 = vmatpush.bf16.xpose.msra.mxu0 0
        %2128 = vmatpush.bf16.xpose.msra.mxu0 0
        %2129 = vmatpush.bf16.xpose.msra.mxu0 0
        %2130 = vmatpush.bf16.xpose.msra.mxu0 0
        %2131 = vmatpush.bf16.xpose.msra.mxu0 %v2122
        %2132 = vmatmul.bf16.gmra.mxu0 %v2119
        %v2133 = vpop.f32.mrf.mxu0
        %v2134 = vadd.f32 0.0, %v2133
        %v2135 = vpop.f32.mrf.mxu0
        %2136 = vdwg.mxu0
        %v2137 = vsel %vm1960, %v2134, -inf
        %2138 = vmax.xlane.f32.xlu0 %v2137
        %v2139 = vpop.xlane.xlu0 %2138
        %v2140 = vsub.f32 %v2134, %v2139
        %v2141 = vmul.f32 %v2140, 1.442695
        %v2142 = vpow.pop %v2141
        %v2143 = vsel %vm1960, %v2142, 0.0
        %2144 = vadd.xlane.f32.xlu0 %v2143
        %v2145 = vpop.xlane.xlu0 %2144
        %v2146 = vrcp.pop %v2145
        %v2147 = vmul.f32 %v2142, %v2146
        %v2148 = vpack.c.bf16 %v2147, %v2147
        %2149 = vrot.lane.b32.xlu0 %v2036, 104
        %v2150 = vpop.permute.xlu0 %2149
        %v2152 = vsel %vm1960, %v2148, 0
        %v2155 = vsel %vm1976, %v2150, 0
        %2157 = vmatpush.bf16.msra.mxu0 0
        %2158 = vmatpush.bf16.msra.mxu0 0
        %2159 = vmatpush.bf16.msra.mxu0 0
        %2160 = vmatpush.bf16.msra.mxu0 0
        %2161 = vmatpush.bf16.msra.mxu0 0
        %2162 = vmatpush.bf16.msra.mxu0 0
        %2163 = vmatpush.bf16.msra.mxu0 0
        %2164 = vmatpush.bf16.msra.mxu0 %v2155
        %2165 = vmatmul.bf16.gmra.mxu0 %v2152
        %v2166 = vpop.f32.mrf.mxu0
        %v2167 = vadd.f32 0.0, %v2166
        %v2168 = vpop.f32.mrf.mxu0
        %2169 = vdwg.mxu0
        %2171 = vrot.lane.b32.xlu0 %v2055, 8
        %v2172 = vpop.permute.xlu0 %2171
        %2175 = vrot.lane.b32.xlu0 %v2111, 16
        %v2176 = vpop.permute.xlu0 %2175
        %2179 = vrot.lane.b32.xlu0 %v2167, 24
        %v2180 = vpop.permute.xlu0 %2179
        %v2182 = vsel %vm823, %v1990, %v2172
        %v2183 = vsel %vm1065, %v2182, %v2176
        %v2184 = vsel %vm1067, %v2183, %v2180
        %v2185 = vpack.c.bf16 %v2184, %v2184
        %v2186 = vld [vmem:[%s12] sm:$0xf]
        %v2187 = vld [vmem:[%s12 + $0x4] sm:$0xf]
        %v2188 = vld [vmem:[%s12 + $0x8] sm:$0xf]
        %v2189 = vld [vmem:[%s12 + $0xc] sm:$0xf]
        %v2194 = vunpack.c.l.b16 %v2186
        %v2195 = vunpack.c.l.b16 %v2187
        %v2196 = vunpack.c.l.b16 %v2188
        %v2197 = vunpack.c.l.b16 %v2189
        %v2198 = vpack.c.b16 %v2195, %v2194
        %v2199 = vpack.c.b16 %v2197, %v2196
        %v2203 = vsel %vm668, %v2185, 0
        %2205 = vmatpush.bf16.msra.mxu0 0
        %2206 = vmatpush.bf16.msra.mxu0 0
        %2207 = vmatpush.bf16.msra.mxu0 0
        %2208 = vmatpush.bf16.msra.mxu0 0
        %2209 = vmatpush.bf16.msra.mxu0 0
        %2210 = vmatpush.bf16.msra.mxu0 0
        %2211 = vmatpush.bf16.msra.mxu0 %v2199
        %2212 = vmatpush.bf16.msra.mxu0 %v2198
        %2213 = vmatmul.bf16.gmra.mxu0 %v2203
        %v2214 = vpop.f32.mrf.mxu0
        %v2215 = vadd.f32 0.0, %v2214
        %v2216 = vpop.f32.mrf.mxu0
        %2217 = vdwg.mxu0
        %v2218 = vadd.f32 %v1798, %v2215
        %v2219 = vld [vmem:[%s17 + $0x5] sm:$0x1]
        %v2220 = vld [vmem:[%s18 + $0x5] sm:$0x1]
        %v2221 = vsel %vm668, %v2218, 0.0
        %2222 = vadd.xlane.f32.xlu0 %v2221
        %v2223 = vpop.xlane.xlu0 %2222
        %v2224 = vmul.f32 %v2223, %v678
        %v2225 = vsub.f32 %v2218, %v2224
        %v2226 = vmul.f32 %v2225, %v2225
        %v2227 = vsel %vm668, %v2226, 0.0
        %2228 = vadd.xlane.f32.xlu0 %v2227
        %v2229 = vpop.xlane.xlu0 %2228
        %v2230 = vmul.f32 %v2229, %v691
        %v2231 = vrsqrt.pop %v2230
        %v2232 = vmul.f32 %v2231, %v2230
        %v2233 = vmul.f32 %v2232, %v2231
        %v2234 = vmul.f32 0.5, %v2233
        %v2235 = vsub.f32 1.5, %v2234
        %v2236 = vmul.f32 %v2231, %v2235
        %v2237 = vmul.f32 %v2230, %v2236
        %vm2238 = vcmp.eq.f32.partialorder %v2230, inf
        %v2239 = vsel %vm2238, %v2230, %v2237
        %vm2240 = vcmp.eq.f32.partialorder %v2230, 0.0
        %v2241 = vand.u32 %v2230, 2147483648
        %v2242 = vsel %vm2240, %v2241, %v2239
        %v2243 = vadd.f32 %v2242, 1e-06
        %v2244 = vrcp.pop %v2243
        %v2245 = vmul.f32 %v2243, %v2244
        %v2246 = vsub.f32 1.0, %v2245
        %v2247 = vmul.f32 %v2244, %v2246
        %v2248 = vadd.f32 %v2244, %v2247
        %vm2249 = vweird.f32 %v2243
        %vm2250 = vweird.f32 %v2244
        %vm2251 = vmor %vm2249, %vm2250
        %v2252 = vsel %vm2251, %v2244, %v2248
        %v2253 = vand.u32 2147483647, %v2243
        %vm2254 = vcmp.eq.f32.partialorder %v2253, 8.507059e+37
        %v2255 = vand.u32 %v2243, 2147483648
        %v2256 = vor.u32 1.1754944e-38, %v2255
        %v2257 = vsel %vm2254, %v2256, %v2252
        %v2258 = vmul.f32 1.0, %v2257
        %v2259 = vmul.f32 %v2225, %v2258
        %v2260 = vperm.slane %v2219, 0
        %v2261 = vmul.f32 %v2259, %v2260
        %v2262 = vperm.slane %v2220, 0
        %v2263 = vadd.f32 %v2261, %v2262
        %v2264 = vpack.c.bf16 %v2263, %v2263
        %v2265 = vld [vmem:[%s13] sm:$0xf]
        %v2266 = vld [vmem:[%s13 + $0x4] sm:$0xf]
        %v2267 = vld [vmem:[%s13 + $0x8] sm:$0xf]
        %v2268 = vld [vmem:[%s13 + $0xc] sm:$0xf]
        %v2269 = vld [vmem:[%s14] sm:$0x1]
        %v2271 = vperm.slane %v2269, 0
        %v2277 = vunpack.c.l.b16 %v2265
        %v2278 = vunpack.c.l.b16 %v2266
        %v2279 = vunpack.c.l.b16 %v2267
        %v2280 = vunpack.c.l.b16 %v2268
        %v2281 = vpack.c.b16 %v2278, %v2277
        %v2282 = vpack.c.b16 %v2280, %v2279
        %v2286 = vsel %vm668, %v2264, 0
        %2288 = vmatpush.bf16.msra.mxu0 0
        %2289 = vmatpush.bf16.msra.mxu0 0
        %2290 = vmatpush.bf16.msra.mxu0 0
        %2291 = vmatpush.bf16.msra.mxu0 0
        %2292 = vmatpush.bf16.msra.mxu0 0
        %2293 = vmatpush.bf16.msra.mxu0 0
        %2294 = vmatpush.bf16.msra.mxu0 %v2282
        %2295 = vmatpush.bf16.msra.mxu0 %v2281
        %2296 = vmatmul.bf16.gmra.mxu0 %v2286
        %v2297 = vpop.f32.mrf.mxu0
        %v2298 = vadd.f32 %v2271, %v2297
        %v2299 = vpop.f32.mrf.mxu0
        %2300 = vdwg.mxu0
        %v2301 = vmax.f32 %v2298, 0.0
        %v2302 = vpack.c.bf16 %v2301, %v2301
        %v2303 = vld [vmem:[%s15] sm:$0xf]
        %v2304 = vld [vmem:[%s15 + $0x4] sm:$0xf]
        %v2305 = vld [vmem:[%s15 + $0x8] sm:$0xf]
        %v2306 = vld [vmem:[%s15 + $0xc] sm:$0xf]
        %v2307 = vld [vmem:[%s15 + $0x10] sm:$0xf]
        %v2308 = vld [vmem:[%s15 + $0x14] sm:$0xf]
        %v2309 = vld [vmem:[%s15 + $0x18] sm:$0xf]
        %v2310 = vld [vmem:[%s15 + $0x1c] sm:$0xf]
        %v2311 = vld [vmem:[%s16] sm:$0x1]
        %v2313 = vperm.slane %v2311, 0
        %v2323 = vunpack.c.l.b16 %v2303
        %v2324 = vunpack.c.l.b16 %v2304
        %v2325 = vunpack.c.l.b16 %v2305
        %v2326 = vunpack.c.l.b16 %v2306
        %v2327 = vunpack.c.l.b16 %v2307
        %v2328 = vunpack.c.l.b16 %v2308
        %v2329 = vunpack.c.l.b16 %v2309
        %v2330 = vunpack.c.l.b16 %v2310
        %v2331 = vpack.c.b16 %v2324, %v2323
        %v2332 = vpack.c.b16 %v2326, %v2325
        %v2333 = vpack.c.b16 %v2328, %v2327
        %v2334 = vpack.c.b16 %v2330, %v2329
        %v2340 = vsel %vm1223, %v2302, 0
        %2342 = vmatpush.bf16.msra.mxu0 0
        %2343 = vmatpush.bf16.msra.mxu0 0
        %2344 = vmatpush.bf16.msra.mxu0 0
        %2345 = vmatpush.bf16.msra.mxu0 0
        %2346 = vmatpush.bf16.msra.mxu0 %v2334
        %2347 = vmatpush.bf16.msra.mxu0 %v2333
        %2348 = vmatpush.bf16.msra.mxu0 %v2332
        %2349 = vmatpush.bf16.msra.mxu0 %v2331
        %2350 = vmatmul.bf16.gmra.mxu0 %v2340
        %v2351 = vpop.f32.mrf.mxu0
        %v2352 = vadd.f32 %v2313, %v2351
        %v2353 = vpop.f32.mrf.mxu0
        %2354 = vdwg.mxu0
        %v2355 = vadd.f32 %v2218, %v2352
        %2356 = vst.msk [vmem:[%s641] sm:$0xff] %vm668, %v2355
        %s2357 = sand.u32 %s465, 1
        %s2358 = scalar_lea.sflag [#allocation3], %s2357
        %s2359 = sand.u32 %s465, 1
        %s2360 = smul.addr %s2359, 8
        %s2361 = scalar_lea.vmem [#allocation2], %s2360
        // Predicated region
        $region97: #{encoder_block_forward.1} parent=95 // pred_check
          %p2362 = pneg %p475
        $region98: #{encoder_block_forward.1} parent=95 // pred_check_branch
          %2364 = sbr.rel (%p2362) target = $region100
        $region99: #{encoder_block_forward.1} parent=95 // pred_region
          %2366 = vsyncadd %s2358, 0
          %s2367 = smul.addr %s33, 8
          %s2368 = scalar_lea.hbm %s19, %s2367
          %s2370 = sshll.u32 %s2361, 4
          %s2371 = int_to_ptr.vmem [resolvable:$true] %s2370
          %s2372 = sshll.u32 %s2368, 4
          %s2373 = int_to_ptr.hbm [resolvable:$true] %s2372
          %2375 = dma.vmem_to_hbm [thread:$0]  %s2371, 128, %s2373, %s2358
        $region100: #{encoder_block_forward.1} parent=95 // pred_fallthru
          _
      $region96: #{encoder_block_forward.1} parent=5 // pred_fallthru
        _
      %p2376 = scmp.le.s32.totalorder 2, %s28
      // Predicated region
      $region101: #{encoder_block_forward.1} parent=5 // pred_check
        %p2377 = pneg %p2376
      $region102: #{encoder_block_forward.1} parent=5 // pred_check_branch
        %2379 = sbr.rel (%p2377) target = $region104
      $region103: #{encoder_block_forward.1} parent=5 // pred_region
        %s2380 = ssub.s32 %s28, 2
        // Predicated region
        $region105: #{encoder_block_forward.1} parent=103 // pred_check
          %p2381 = pneg %p481
        $region106: #{encoder_block_forward.1} parent=103 // pred_check_branch
          %2383 = sbr.rel (%p2381) target = $region108
        $region107: #{encoder_block_forward.1} parent=103 // pred_region
          %s2384 = sand.u32 %s466, 1
          %s2385 = scalar_lea.sflag [#allocation3], %s2384
          %s2386 = sand.u32 %s466, 1
          %s2387 = smul.addr %s2386, 8
          %s2388 = scalar_lea.vmem [#allocation2], %s2387
          %2390 = dma.done %s2385, 128
        $region108: #{encoder_block_forward.1} parent=103 // pred_fallthru
          _
      $region104: #{encoder_block_forward.1} parent=5 // pred_fallthru
        _
    $region6: #{encoder_block_forward.1} parent=1 // loop_footer
      %s32 = sadd.s32 1, %s28
    $region7: #{encoder_block_forward.1} parent=1 // loop_footer_branch
      %27 = sbr.rel target = $region3
    $region8: #{encoder_block_forward.1} parent=1 // loop_exit
      _
    %2391 = vsyncpa [#allocation3], 1
    %s2392 = scalar_lea.sflag [#allocation3], 1
    %2393 = vsyncpa %s2392, 1

</llo_original>
